<compile_context>
chip_gen: v7x
topology: tpu7x:2x2x1
jax: 0.10.0
libtpu: 0.0.40
codegen_flags: <defaults>
</compile_context>

<pallas_src>
import math

import jax
import jax.numpy as jnp
import numpy as np
from jax.experimental import pallas as pl
from jax.experimental.pallas import tpu as pltpu


def _make_kernel(num_layers, hidden_size, embed_dim, seqlen, batch, matmul_dtype):
    L, H, E, B = num_layers, hidden_size, embed_dim, batch
    md = matmul_dtype

    def kernel(*refs):
        # refs layout:
        #   ipt, w_ih0, w_hh0,
        #   w_ih[1..L-1], w_hh[1..L-1], bias[0..L-1], fc_w, fc_b,
        #   out, hs_scratch
        idx = 0
        ipt_ref = refs[idx]; idx += 1
        w_ih0_ref = refs[idx]; idx += 1
        w_hh0_ref = refs[idx]; idx += 1
        w_ih_refs = refs[idx:idx + (L - 1)]; idx += L - 1
        w_hh_refs = refs[idx:idx + (L - 1)]; idx += L - 1
        bias_refs = refs[idx:idx + L]; idx += L
        fc_w_ref = refs[idx]; idx += 1
        fc_b_ref = refs[idx]; idx += 1
        out_ref = refs[idx]; idx += 1
        hs_ref = refs[idx]                       # (seqlen*B, H) f32 VMEM scratch

        # ---------- Hoisted, loop-invariant work ----------
        # Time-invariant layer-0 input projection (+ pre-summed biases).
        gates0_const = (
            jnp.dot(ipt_ref[...].astype(md), w_ih0_ref[...],
                    preferred_element_type=jnp.float32)
            + bias_refs[0][...])                                 # (B, 4H) f32
        w_hh0 = w_hh0_ref[...]                                   # (H, 4H)
        w_ih = [r[...] for r in w_ih_refs]                       # (H, 4H) each
        w_hh = [r[...] for r in w_hh_refs]                       # (H, 4H) each
        # Pre-broadcast layer >= 1 biases once (no per-iteration broadcast_in_dim).
        bias = [jnp.broadcast_to(bias_refs[l][...], (B, 4 * H))
                for l in range(1, L)]

        def lstm_cell(gates, c_prev):
            # One sigmoid + one tanh on the full (B, 4H) gates, then slice
            # i/f/g/o (PyTorch gate order): 2 serialized EUP ops instead of 4.
            sig = jax.nn.sigmoid(gates)
            tnh = jnp.tanh(gates)
            i_g = sig[:, 0 * H:1 * H]
            f_g = sig[:, 1 * H:2 * H]
            g_g = tnh[:, 2 * H:3 * H]
            o_g = sig[:, 3 * H:4 * H]
            c_new = f_g * c_prev + i_g * g_g
            h_new = o_g * jnp.tanh(c_new)
            return h_new, c_new

        # h/c carried as values (vregs) across the unrolled time loop.
        h = [jnp.zeros((B, H), jnp.float32) for _ in range(L)]
        c = [jnp.zeros((B, H), jnp.float32) for _ in range(L)]

        # ---------- Recurrence: only dependent matmuls + gate math ----------
        for t in range(seqlen):
            # Layer 0: only the recurrent matmul is on the per-step chain.
            gates = gates0_const + jnp.dot(h[0].astype(md), w_hh0,
                                           preferred_element_type=jnp.float32)
            h[0], c[0] = lstm_cell(gates, c[0])
            x = h[0]
            # Layers >= 1: two pipelined MXU pushes, no XLU lane concat.
            for l in range(1, L):
                gates = (jnp.dot(x.astype(md), w_ih[l - 1],
                                 preferred_element_type=jnp.float32)
                         + jnp.dot(h[l].astype(md), w_hh[l - 1],
                                   preferred_element_type=jnp.float32)
                         + bias[l - 1])
                h[l], c[l] = lstm_cell(gates, c[l])
                x = h[l]
            # Off-critical-path store of this step's top-layer hidden state.
            hs_ref[t * B:(t + 1) * B, :] = x

        # ---------- Deferred fc + ReLU: one batched matmul ----------
        y = (jnp.dot(hs_ref[...].astype(md), fc_w_ref[...],
                     preferred_element_type=jnp.float32)
             + fc_b_ref[...])                                    # (seqlen*B, E)
        y = jnp.maximum(y, 0.0)
        # Scatter rows (t*B + b) into the lane-dense (B, seqlen*E) output slab.
        for t in range(seqlen):
            out_ref[:, t * E:(t + 1) * E] = (
                y[t * B:(t + 1) * B, :].astype(out_ref.dtype))

    return kernel


def word_decoder_forward(ipt, params, seqlen, matmul_dtype=jnp.bfloat16):
    """ipt: (B, in_dim) f32; returns (B, seqlen, embed_dim) f32.

    matmul_dtype=jnp.bfloat16 (default, all TPU generations: the MXU is
    bf16-native, f32 operands are multi-pass) casts only the matmul operands;
    accumulation and all gate elementwise math stay f32.  Pass
    matmul_dtype=jnp.float32 for a near-bit-exact check against an f32 ref.
    """
    w_ih_T, w_hh_T, b_ih, b_hh, fc_w_T, fc_b = params
    L = len(w_ih_T)
    B, _ = ipt.shape
    H = w_hh_T[0].shape[0]
    E = fc_w_T.shape[1]
    md = matmul_dtype

    # Wrapper-side param prep: weights pre-cast to the matmul dtype, layer>=1
    # ih/hh kept SEPARATE (two dots in-kernel, no lane concat), the two LSTM
    # biases pre-summed in f32.
    w_ih0 = w_ih_T[0].astype(md)                             # (in_dim, 4H)
    w_hh0 = w_hh_T[0].astype(md)                             # (H, 4H)
    w_ih_rest = [w_ih_T[l].astype(md) for l in range(1, L)]  # (H, 4H)
    w_hh_rest = [w_hh_T[l].astype(md) for l in range(1, L)]  # (H, 4H)
    biases = [(b_ih[l] + b_hh[l]).astype(jnp.float32) for l in range(L)]  # (1,4H)
    fc_w = fc_w_T.astype(md)                                 # (H, E)
    fc_b32 = fc_b.astype(jnp.float32)                        # (1, E)

    in_arrays = ([ipt, w_ih0, w_hh0] + w_ih_rest + w_hh_rest
                 + biases + [fc_w, fc_b32])
    vmem_spec = pl.BlockSpec(memory_space=pltpu.MemorySpace.VMEM)

    out_shape = jax.ShapeDtypeStruct((B, seqlen * E), jnp.float32)
    scratch_shapes = [pltpu.VMEM((seqlen * B, H), jnp.float32)]

    # Explicit VMEM budget (no grid => no double-buffering): actual footprint
    # x2 + headroom, clamped to stay under v7x's 64 MiB physical VMEM.
    vmem_bytes = sum(a.size * a.dtype.itemsize for a in in_arrays)
    vmem_bytes += math.prod(out_shape.shape) * np.dtype(out_shape.dtype).itemsize
    vmem_bytes += seqlen * B * H * 4
    vmem_limit = int(min(max(2 * vmem_bytes + (1 << 20), 4 << 20), 60 << 20))

    out = pl.pallas_call(
        _make_kernel(L, H, E, seqlen, B, md),
        out_shape=out_shape,
        in_specs=[vmem_spec] * len(in_arrays),
        out_specs=vmem_spec,
        scratch_shapes=scratch_shapes,
        compiler_params=pltpu.CompilerParams(vmem_limit_bytes=vmem_limit),
    )(*in_arrays)

    # (B, seqlen*E) -> (B, seqlen, E): a free reshape (no transpose copy),
    # matching PyTorch batch_first layout.
    return out.reshape(B, seqlen, E)


def init_params(key, in_dim, hidden_size, embed_dim, num_layers):
    """Deterministic init mirroring the parameter shapes of nn.LSTM + nn.Linear."""
    H = hidden_size
    k = 1.0 / jnp.sqrt(H)
    keys = jax.random.split(key, 4 * num_layers + 2)
    w_ih_T, w_hh_T, b_ih, b_hh = [], [], [], []
    ki = 0
    for l in range(num_layers):
        d_in = in_dim if l == 0 else H
        # PyTorch stores weight_ih_l{l}: (4H, d_in); we pre-transpose for x @ W^T.
        w_ih_T.append(jax.random.uniform(keys[ki], (d_in, 4 * H), jnp.float32, -k, k)); ki += 1
        w_hh_T.append(jax.random.uniform(keys[ki], (H, 4 * H), jnp.float32, -k, k)); ki += 1
        b_ih.append(jax.random.uniform(keys[ki], (1, 4 * H), jnp.float32, -k, k)); ki += 1
        b_hh.append(jax.random.uniform(keys[ki], (1, 4 * H), jnp.float32, -k, k)); ki += 1
    kf = 1.0 / jnp.sqrt(H)
    fc_w_T = jax.random.uniform(keys[ki], (H, embed_dim), jnp.float32, -kf, kf); ki += 1
    fc_b = jax.random.uniform(keys[ki], (1, embed_dim), jnp.float32, -kf, kf)
    return w_ih_T, w_hh_T, b_ih, b_hh, fc_w_T, fc_b


def reference_forward(ipt, params, seqlen):
    """Pure-JAX f32 reference of the same forward pass (correctness check)."""
    w_ih_T, w_hh_T, b_ih, b_hh, fc_w_T, fc_b = params
    L = len(w_ih_T)
    B = ipt.shape[0]
    H = w_hh_T[0].shape[0]
    h = [jnp.zeros((B, H), jnp.float32) for _ in range(L)]
    c = [jnp.zeros((B, H), jnp.float32) for _ in range(L)]
    outs = []
    for _ in range(seqlen):
        x = ipt
        for l in range(L):
            gates = x @ w_ih_T[l] + h[l] @ w_hh_T[l] + b_ih[l] + b_hh[l]
            i_g = jax.nn.sigmoid(gates[:, 0 * H:1 * H])
            f_g = jax.nn.sigmoid(gates[:, 1 * H:2 * H])
            g_g = jnp.tanh(gates[:, 2 * H:3 * H])
            o_g = jax.nn.sigmoid(gates[:, 3 * H:4 * H])
            c[l] = f_g * c[l] + i_g * g_g
            h[l] = o_g * jnp.tanh(c[l])
            x = h[l]
        outs.append(jnp.maximum(x @ fc_w_T + fc_b, 0.0))
    return jnp.stack(outs, axis=1)  # (B, seqlen, E)


if __name__ == "__main__":
    # Small shapes consistent with WordDecoder(in_dim, hidden_size, embed_dim, num_layer, droprate)
    B, in_dim, hidden_size, embed_dim, num_layers, seqlen = 8, 16, 32, 16, 2, 8

    key = jax.random.PRNGKey(0)
    k_params, k_input = jax.random.split(key)
    params = init_params(k_params, in_dim, hidden_size, embed_dim, num_layers)
    ipt = jax.random.normal(k_input, (B, in_dim), jnp.float32)

    ref = reference_forward(ipt, params, seqlen)

    # f32 matmul-operand path: tight check against the f32 reference.
    out_f32 = jax.block_until_ready(
        word_decoder_forward(ipt, params, seqlen, matmul_dtype=jnp.float32))
    assert out_f32.shape == (B, seqlen, embed_dim), out_f32.shape
    assert jnp.allclose(out_f32, ref, atol=1e-5, rtol=1e-5), \
        float(jnp.max(jnp.abs(out_f32 - ref)))

    # Default bf16 matmul-operand path (all TPU generations), relaxed tolerance.
    out_bf16 = jax.block_until_ready(word_decoder_forward(ipt, params, seqlen))
    assert out_bf16.shape == (B, seqlen, embed_dim), out_bf16.shape
    assert jnp.allclose(out_bf16, ref, atol=5e-2, rtol=5e-2), \
        float(jnp.max(jnp.abs(out_bf16 - ref)))

    print("KERNEL_OK")
</pallas_src>

<mosaic_0001>
module attributes {stable_mosaic.version = 11 : i64} {
  func.func @kernel(%arg0: memref<8x16xf32, #tpu.memory_space<vmem>>, %arg1: memref<16x128xf32, #tpu.memory_space<vmem>>, %arg2: memref<32x128xf32, #tpu.memory_space<vmem>>, %arg3: memref<32x128xf32, #tpu.memory_space<vmem>>, %arg4: memref<32x128xf32, #tpu.memory_space<vmem>>, %arg5: memref<1x128xf32, #tpu.memory_space<vmem>>, %arg6: memref<1x128xf32, #tpu.memory_space<vmem>>, %arg7: memref<32x16xf32, #tpu.memory_space<vmem>>, %arg8: memref<1x16xf32, #tpu.memory_space<vmem>>, %arg9: memref<8x128xf32, #tpu.memory_space<vmem>>, %arg10: memref<64x32xf32, #tpu.memory_space<vmem>>) attributes {dimension_semantics = [], scalar_prefetch = 0 : i64, scratch_operands = 1 : i64, tpu.core_type = #tpu.core_type<tc>} {
    %c0 = arith.constant 0 : index
    %c0_0 = arith.constant 0 : index
    %0 = vector.load %arg0[%c0, %c0_0] : memref<8x16xf32, #tpu.memory_space<vmem>>, vector<8x16xf32>
    %c0_1 = arith.constant 0 : index
    %c0_2 = arith.constant 0 : index
    %1 = vector.load %arg1[%c0_1, %c0_2] : memref<16x128xf32, #tpu.memory_space<vmem>>, vector<16x128xf32>
    %cst = arith.constant dense<0.000000e+00> : vector<8x128xf32>
    %2 = tpu.matmul %0, %1, %cst {dimension_numbers = #tpu.dot_dimension_numbers<[1], [0], [0], [1], [0, 0, 1, 1], [], []>} : vector<8x16xf32>, vector<16x128xf32>, vector<8x128xf32> -> vector<8x128xf32>
    %c0_3 = arith.constant 0 : index
    %c0_4 = arith.constant 0 : index
    %3 = vector.load %arg5[%c0_3, %c0_4] : memref<1x128xf32, #tpu.memory_space<vmem>>, vector<1x128xf32>
    %4 = vector.broadcast %3 : vector<1x128xf32> to vector<8x128xf32>
    %5 = arith.addf %2, %4 : vector<8x128xf32>
    %c0_5 = arith.constant 0 : index
    %c0_6 = arith.constant 0 : index
    %6 = vector.load %arg2[%c0_5, %c0_6] : memref<32x128xf32, #tpu.memory_space<vmem>>, vector<32x128xf32>
    %c0_7 = arith.constant 0 : index
    %c0_8 = arith.constant 0 : index
    %7 = vector.load %arg3[%c0_7, %c0_8] : memref<32x128xf32, #tpu.memory_space<vmem>>, vector<32x128xf32>
    %c0_9 = arith.constant 0 : index
    %c0_10 = arith.constant 0 : index
    %8 = vector.load %arg4[%c0_9, %c0_10] : memref<32x128xf32, #tpu.memory_space<vmem>>, vector<32x128xf32>
    %c0_11 = arith.constant 0 : index
    %c0_12 = arith.constant 0 : index
    %9 = vector.load %arg6[%c0_11, %c0_12] : memref<1x128xf32, #tpu.memory_space<vmem>>, vector<1x128xf32>
    %10 = vector.shape_cast %9 : vector<1x128xf32> to vector<1x128xf32>
    %11 = vector.broadcast %10 : vector<1x128xf32> to vector<8x128xf32>
    %cst_13 = arith.constant 0.000000e+00 : f32
    %12 = vector.broadcast %cst_13 : f32 to vector<8x32xf32>
    %cst_14 = arith.constant 0.000000e+00 : f32
    %13 = vector.broadcast %cst_14 : f32 to vector<8x32xf32>
    %cst_15 = arith.constant 0.000000e+00 : f32
    %14 = vector.broadcast %cst_15 : f32 to vector<8x32xf32>
    %cst_16 = arith.constant 0.000000e+00 : f32
    %15 = vector.broadcast %cst_16 : f32 to vector<8x32xf32>
    %cst_17 = arith.constant dense<0.000000e+00> : vector<8x128xf32>
    %16 = tpu.matmul %12, %6, %cst_17 {dimension_numbers = #tpu.dot_dimension_numbers<[1], [0], [0], [1], [0, 0, 1, 1], [], []>} : vector<8x32xf32>, vector<32x128xf32>, vector<8x128xf32> -> vector<8x128xf32>
    %17 = arith.addf %5, %16 : vector<8x128xf32>
    %18 = arith.negf %17 : vector<8x128xf32>
    %19 = math.exp %18 : vector<8x128xf32>
    %cst_18 = arith.constant 1.000000e+00 : f32
    %20 = vector.broadcast %cst_18 : f32 to vector<8x128xf32>
    %21 = arith.addf %20, %19 : vector<8x128xf32>
    %22 = arith.divf %20, %21 : vector<8x128xf32>
    %23 = math.tanh %17 : vector<8x128xf32>
    %24 = vector.extract_strided_slice %22 {offsets = [0, 0], sizes = [8, 32], strides = [1, 1]} : vector<8x128xf32> to vector<8x32xf32>
    %25 = vector.extract_strided_slice %22 {offsets = [0, 32], sizes = [8, 32], strides = [1, 1]} : vector<8x128xf32> to vector<8x32xf32>
    %26 = vector.extract_strided_slice %23 {offsets = [0, 64], sizes = [8, 32], strides = [1, 1]} : vector<8x128xf32> to vector<8x32xf32>
    %27 = vector.extract_strided_slice %22 {offsets = [0, 96], sizes = [8, 32], strides = [1, 1]} : vector<8x128xf32> to vector<8x32xf32>
    %28 = arith.mulf %25, %14 : vector<8x32xf32>
    %29 = arith.mulf %24, %26 : vector<8x32xf32>
    %30 = arith.addf %28, %29 : vector<8x32xf32>
    %31 = math.tanh %30 : vector<8x32xf32>
    %32 = arith.mulf %27, %31 : vector<8x32xf32>
    %cst_19 = arith.constant dense<0.000000e+00> : vector<8x128xf32>
    %33 = tpu.matmul %32, %7, %cst_19 {dimension_numbers = #tpu.dot_dimension_numbers<[1], [0], [0], [1], [0, 0, 1, 1], [], []>} : vector<8x32xf32>, vector<32x128xf32>, vector<8x128xf32> -> vector<8x128xf32>
    %cst_20 = arith.constant dense<0.000000e+00> : vector<8x128xf32>
    %34 = tpu.matmul %13, %8, %cst_20 {dimension_numbers = #tpu.dot_dimension_numbers<[1], [0], [0], [1], [0, 0, 1, 1], [], []>} : vector<8x32xf32>, vector<32x128xf32>, vector<8x128xf32> -> vector<8x128xf32>
    %35 = arith.addf %33, %34 : vector<8x128xf32>
    %36 = arith.addf %35, %11 : vector<8x128xf32>
    %37 = arith.negf %36 : vector<8x128xf32>
    %38 = math.exp %37 : vector<8x128xf32>
    %cst_21 = arith.constant 1.000000e+00 : f32
    %39 = vector.broadcast %cst_21 : f32 to vector<8x128xf32>
    %40 = arith.addf %39, %38 : vector<8x128xf32>
    %41 = arith.divf %39, %40 : vector<8x128xf32>
    %42 = math.tanh %36 : vector<8x128xf32>
    %43 = vector.extract_strided_slice %41 {offsets = [0, 0], sizes = [8, 32], strides = [1, 1]} : vector<8x128xf32> to vector<8x32xf32>
    %44 = vector.extract_strided_slice %41 {offsets = [0, 32], sizes = [8, 32], strides = [1, 1]} : vector<8x128xf32> to vector<8x32xf32>
    %45 = vector.extract_strided_slice %42 {offsets = [0, 64], sizes = [8, 32], strides = [1, 1]} : vector<8x128xf32> to vector<8x32xf32>
    %46 = vector.extract_strided_slice %41 {offsets = [0, 96], sizes = [8, 32], strides = [1, 1]} : vector<8x128xf32> to vector<8x32xf32>
    %47 = arith.mulf %44, %15 : vector<8x32xf32>
    %48 = arith.mulf %43, %45 : vector<8x32xf32>
    %49 = arith.addf %47, %48 : vector<8x32xf32>
    %50 = math.tanh %49 : vector<8x32xf32>
    %51 = arith.mulf %46, %50 : vector<8x32xf32>
    %c0_22 = arith.constant 0 : index
    %c0_23 = arith.constant 0 : index
    %52 = vector.load %arg10[%c0_22, %c0_23] : memref<64x32xf32, #tpu.memory_space<vmem>>, vector<8x32xf32>
    tpu.vector_store %arg10[%c0_22, %c0_23], %51 {strides = array<i32>} : memref<64x32xf32, #tpu.memory_space<vmem>>, vector<8x32xf32>,
    %cst_24 = arith.constant dense<0.000000e+00> : vector<8x128xf32>
    %53 = tpu.matmul %32, %6, %cst_24 {dimension_numbers = #tpu.dot_dimension_numbers<[1], [0], [0], [1], [0, 0, 1, 1], [], []>} : vector<8x32xf32>, vector<32x128xf32>, vector<8x128xf32> -> vector<8x128xf32>
    %54 = arith.addf %5, %53 : vector<8x128xf32>
    %55 = arith.negf %54 : vector<8x128xf32>
    %56 = math.exp %55 : vector<8x128xf32>
    %cst_25 = arith.constant 1.000000e+00 : f32
    %57 = vector.broadcast %cst_25 : f32 to vector<8x128xf32>
    %58 = arith.addf %57, %56 : vector<8x128xf32>
    %59 = arith.divf %57, %58 : vector<8x128xf32>
    %60 = math.tanh %54 : vector<8x128xf32>
    %61 = vector.extract_strided_slice %59 {offsets = [0, 0], sizes = [8, 32], strides = [1, 1]} : vector<8x128xf32> to vector<8x32xf32>
    %62 = vector.extract_strided_slice %59 {offsets = [0, 32], sizes = [8, 32], strides = [1, 1]} : vector<8x128xf32> to vector<8x32xf32>
    %63 = vector.extract_strided_slice %60 {offsets = [0, 64], sizes = [8, 32], strides = [1, 1]} : vector<8x128xf32> to vector<8x32xf32>
    %64 = vector.extract_strided_slice %59 {offsets = [0, 96], sizes = [8, 32], strides = [1, 1]} : vector<8x128xf32> to vector<8x32xf32>
    %65 = arith.mulf %62, %30 : vector<8x32xf32>
    %66 = arith.mulf %61, %63 : vector<8x32xf32>
    %67 = arith.addf %65, %66 : vector<8x32xf32>
    %68 = math.tanh %67 : vector<8x32xf32>
    %69 = arith.mulf %64, %68 : vector<8x32xf32>
    %cst_26 = arith.constant dense<0.000000e+00> : vector<8x128xf32>
    %70 = tpu.matmul %69, %7, %cst_26 {dimension_numbers = #tpu.dot_dimension_numbers<[1], [0], [0], [1], [0, 0, 1, 1], [], []>} : vector<8x32xf32>, vector<32x128xf32>, vector<8x128xf32> -> vector<8x128xf32>
    %cst_27 = arith.constant dense<0.000000e+00> : vector<8x128xf32>
    %71 = tpu.matmul %51, %8, %cst_27 {dimension_numbers = #tpu.dot_dimension_numbers<[1], [0], [0], [1], [0, 0, 1, 1], [], []>} : vector<8x32xf32>, vector<32x128xf32>, vector<8x128xf32> -> vector<8x128xf32>
    %72 = arith.addf %70, %71 : vector<8x128xf32>
    %73 = arith.addf %72, %11 : vector<8x128xf32>
    %74 = arith.negf %73 : vector<8x128xf32>
    %75 = math.exp %74 : vector<8x128xf32>
    %cst_28 = arith.constant 1.000000e+00 : f32
    %76 = vector.broadcast %cst_28 : f32 to vector<8x128xf32>
    %77 = arith.addf %76, %75 : vector<8x128xf32>
    %78 = arith.divf %76, %77 : vector<8x128xf32>
    %79 = math.tanh %73 : vector<8x128xf32>
    %80 = vector.extract_strided_slice %78 {offsets = [0, 0], sizes = [8, 32], strides = [1, 1]} : vector<8x128xf32> to vector<8x32xf32>
    %81 = vector.extract_strided_slice %78 {offsets = [0, 32], sizes = [8, 32], strides = [1, 1]} : vector<8x128xf32> to vector<8x32xf32>
    %82 = vector.extract_strided_slice %79 {offsets = [0, 64], sizes = [8, 32], strides = [1, 1]} : vector<8x128xf32> to vector<8x32xf32>
    %83 = vector.extract_strided_slice %78 {offsets = [0, 96], sizes = [8, 32], strides = [1, 1]} : vector<8x128xf32> to vector<8x32xf32>
    %84 = arith.mulf %81, %49 : vector<8x32xf32>
    %85 = arith.mulf %80, %82 : vector<8x32xf32>
    %86 = arith.addf %84, %85 : vector<8x32xf32>
    %87 = math.tanh %86 : vector<8x32xf32>
    %88 = arith.mulf %83, %87 : vector<8x32xf32>
    %c8 = arith.constant 8 : index
    %c0_29 = arith.constant 0 : index
    %89 = vector.load %arg10[%c8, %c0_29] : memref<64x32xf32, #tpu.memory_space<vmem>>, vector<8x32xf32>
    tpu.vector_store %arg10[%c8, %c0_29], %88 {strides = array<i32>} : memref<64x32xf32, #tpu.memory_space<vmem>>, vector<8x32xf32>,
    %cst_30 = arith.constant dense<0.000000e+00> : vector<8x128xf32>
    %90 = tpu.matmul %69, %6, %cst_30 {dimension_numbers = #tpu.dot_dimension_numbers<[1], [0], [0], [1], [0, 0, 1, 1], [], []>} : vector<8x32xf32>, vector<32x128xf32>, vector<8x128xf32> -> vector<8x128xf32>
    %91 = arith.addf %5, %90 : vector<8x128xf32>
    %92 = arith.negf %91 : vector<8x128xf32>
    %93 = math.exp %92 : vector<8x128xf32>
    %cst_31 = arith.constant 1.000000e+00 : f32
    %94 = vector.broadcast %cst_31 : f32 to vector<8x128xf32>
    %95 = arith.addf %94, %93 : vector<8x128xf32>
    %96 = arith.divf %94, %95 : vector<8x128xf32>
    %97 = math.tanh %91 : vector<8x128xf32>
    %98 = vector.extract_strided_slice %96 {offsets = [0, 0], sizes = [8, 32], strides = [1, 1]} : vector<8x128xf32> to vector<8x32xf32>
    %99 = vector.extract_strided_slice %96 {offsets = [0, 32], sizes = [8, 32], strides = [1, 1]} : vector<8x128xf32> to vector<8x32xf32>
    %100 = vector.extract_strided_slice %97 {offsets = [0, 64], sizes = [8, 32], strides = [1, 1]} : vector<8x128xf32> to vector<8x32xf32>
    %101 = vector.extract_strided_slice %96 {offsets = [0, 96], sizes = [8, 32], strides = [1, 1]} : vector<8x128xf32> to vector<8x32xf32>
    %102 = arith.mulf %99, %67 : vector<8x32xf32>
    %103 = arith.mulf %98, %100 : vector<8x32xf32>
    %104 = arith.addf %102, %103 : vector<8x32xf32>
    %105 = math.tanh %104 : vector<8x32xf32>
    %106 = arith.mulf %101, %105 : vector<8x32xf32>
    %cst_32 = arith.constant dense<0.000000e+00> : vector<8x128xf32>
    %107 = tpu.matmul %106, %7, %cst_32 {dimension_numbers = #tpu.dot_dimension_numbers<[1], [0], [0], [1], [0, 0, 1, 1], [], []>} : vector<8x32xf32>, vector<32x128xf32>, vector<8x128xf32> -> vector<8x128xf32>
    %cst_33 = arith.constant dense<0.000000e+00> : vector<8x128xf32>
    %108 = tpu.matmul %88, %8, %cst_33 {dimension_numbers = #tpu.dot_dimension_numbers<[1], [0], [0], [1], [0, 0, 1, 1], [], []>} : vector<8x32xf32>, vector<32x128xf32>, vector<8x128xf32> -> vector<8x128xf32>
    %109 = arith.addf %107, %108 : vector<8x128xf32>
    %110 = arith.addf %109, %11 : vector<8x128xf32>
    %111 = arith.negf %110 : vector<8x128xf32>
    %112 = math.exp %111 : vector<8x128xf32>
    %cst_34 = arith.constant 1.000000e+00 : f32
    %113 = vector.broadcast %cst_34 : f32 to vector<8x128xf32>
    %114 = arith.addf %113, %112 : vector<8x128xf32>
    %115 = arith.divf %113, %114 : vector<8x128xf32>
    %116 = math.tanh %110 : vector<8x128xf32>
    %117 = vector.extract_strided_slice %115 {offsets = [0, 0], sizes = [8, 32], strides = [1, 1]} : vector<8x128xf32> to vector<8x32xf32>
    %118 = vector.extract_strided_slice %115 {offsets = [0, 32], sizes = [8, 32], strides = [1, 1]} : vector<8x128xf32> to vector<8x32xf32>
    %119 = vector.extract_strided_slice %116 {offsets = [0, 64], sizes = [8, 32], strides = [1, 1]} : vector<8x128xf32> to vector<8x32xf32>
    %120 = vector.extract_strided_slice %115 {offsets = [0, 96], sizes = [8, 32], strides = [1, 1]} : vector<8x128xf32> to vector<8x32xf32>
    %121 = arith.mulf %118, %86 : vector<8x32xf32>
    %122 = arith.mulf %117, %119 : vector<8x32xf32>
    %123 = arith.addf %121, %122 : vector<8x32xf32>
    %124 = math.tanh %123 : vector<8x32xf32>
    %125 = arith.mulf %120, %124 : vector<8x32xf32>
    %c16 = arith.constant 16 : index
    %c0_35 = arith.constant 0 : index
    %126 = vector.load %arg10[%c16, %c0_35] : memref<64x32xf32, #tpu.memory_space<vmem>>, vector<8x32xf32>
    tpu.vector_store %arg10[%c16, %c0_35], %125 {strides = array<i32>} : memref<64x32xf32, #tpu.memory_space<vmem>>, vector<8x32xf32>,
    %cst_36 = arith.constant dense<0.000000e+00> : vector<8x128xf32>
    %127 = tpu.matmul %106, %6, %cst_36 {dimension_numbers = #tpu.dot_dimension_numbers<[1], [0], [0], [1], [0, 0, 1, 1], [], []>} : vector<8x32xf32>, vector<32x128xf32>, vector<8x128xf32> -> vector<8x128xf32>
    %128 = arith.addf %5, %127 : vector<8x128xf32>
    %129 = arith.negf %128 : vector<8x128xf32>
    %130 = math.exp %129 : vector<8x128xf32>
    %cst_37 = arith.constant 1.000000e+00 : f32
    %131 = vector.broadcast %cst_37 : f32 to vector<8x128xf32>
    %132 = arith.addf %131, %130 : vector<8x128xf32>
    %133 = arith.divf %131, %132 : vector<8x128xf32>
    %134 = math.tanh %128 : vector<8x128xf32>
    %135 = vector.extract_strided_slice %133 {offsets = [0, 0], sizes = [8, 32], strides = [1, 1]} : vector<8x128xf32> to vector<8x32xf32>
    %136 = vector.extract_strided_slice %133 {offsets = [0, 32], sizes = [8, 32], strides = [1, 1]} : vector<8x128xf32> to vector<8x32xf32>
    %137 = vector.extract_strided_slice %134 {offsets = [0, 64], sizes = [8, 32], strides = [1, 1]} : vector<8x128xf32> to vector<8x32xf32>
    %138 = vector.extract_strided_slice %133 {offsets = [0, 96], sizes = [8, 32], strides = [1, 1]} : vector<8x128xf32> to vector<8x32xf32>
    %139 = arith.mulf %136, %104 : vector<8x32xf32>
    %140 = arith.mulf %135, %137 : vector<8x32xf32>
    %141 = arith.addf %139, %140 : vector<8x32xf32>
    %142 = math.tanh %141 : vector<8x32xf32>
    %143 = arith.mulf %138, %142 : vector<8x32xf32>
    %cst_38 = arith.constant dense<0.000000e+00> : vector<8x128xf32>
    %144 = tpu.matmul %143, %7, %cst_38 {dimension_numbers = #tpu.dot_dimension_numbers<[1], [0], [0], [1], [0, 0, 1, 1], [], []>} : vector<8x32xf32>, vector<32x128xf32>, vector<8x128xf32> -> vector<8x128xf32>
    %cst_39 = arith.constant dense<0.000000e+00> : vector<8x128xf32>
    %145 = tpu.matmul %125, %8, %cst_39 {dimension_numbers = #tpu.dot_dimension_numbers<[1], [0], [0], [1], [0, 0, 1, 1], [], []>} : vector<8x32xf32>, vector<32x128xf32>, vector<8x128xf32> -> vector<8x128xf32>
    %146 = arith.addf %144, %145 : vector<8x128xf32>
    %147 = arith.addf %146, %11 : vector<8x128xf32>
    %148 = arith.negf %147 : vector<8x128xf32>
    %149 = math.exp %148 : vector<8x128xf32>
    %cst_40 = arith.constant 1.000000e+00 : f32
    %150 = vector.broadcast %cst_40 : f32 to vector<8x128xf32>
    %151 = arith.addf %150, %149 : vector<8x128xf32>
    %152 = arith.divf %150, %151 : vector<8x128xf32>
    %153 = math.tanh %147 : vector<8x128xf32>
    %154 = vector.extract_strided_slice %152 {offsets = [0, 0], sizes = [8, 32], strides = [1, 1]} : vector<8x128xf32> to vector<8x32xf32>
    %155 = vector.extract_strided_slice %152 {offsets = [0, 32], sizes = [8, 32], strides = [1, 1]} : vector<8x128xf32> to vector<8x32xf32>
    %156 = vector.extract_strided_slice %153 {offsets = [0, 64], sizes = [8, 32], strides = [1, 1]} : vector<8x128xf32> to vector<8x32xf32>
    %157 = vector.extract_strided_slice %152 {offsets = [0, 96], sizes = [8, 32], strides = [1, 1]} : vector<8x128xf32> to vector<8x32xf32>
    %158 = arith.mulf %155, %123 : vector<8x32xf32>
    %159 = arith.mulf %154, %156 : vector<8x32xf32>
    %160 = arith.addf %158, %159 : vector<8x32xf32>
    %161 = math.tanh %160 : vector<8x32xf32>
    %162 = arith.mulf %157, %161 : vector<8x32xf32>
    %c24 = arith.constant 24 : index
    %c0_41 = arith.constant 0 : index
    %163 = vector.load %arg10[%c24, %c0_41] : memref<64x32xf32, #tpu.memory_space<vmem>>, vector<8x32xf32>
    tpu.vector_store %arg10[%c24, %c0_41], %162 {strides = array<i32>} : memref<64x32xf32, #tpu.memory_space<vmem>>, vector<8x32xf32>,
    %cst_42 = arith.constant dense<0.000000e+00> : vector<8x128xf32>
    %164 = tpu.matmul %143, %6, %cst_42 {dimension_numbers = #tpu.dot_dimension_numbers<[1], [0], [0], [1], [0, 0, 1, 1], [], []>} : vector<8x32xf32>, vector<32x128xf32>, vector<8x128xf32> -> vector<8x128xf32>
    %165 = arith.addf %5, %164 : vector<8x128xf32>
    %166 = arith.negf %165 : vector<8x128xf32>
    %167 = math.exp %166 : vector<8x128xf32>
    %cst_43 = arith.constant 1.000000e+00 : f32
    %168 = vector.broadcast %cst_43 : f32 to vector<8x128xf32>
    %169 = arith.addf %168, %167 : vector<8x128xf32>
    %170 = arith.divf %168, %169 : vector<8x128xf32>
    %171 = math.tanh %165 : vector<8x128xf32>
    %172 = vector.extract_strided_slice %170 {offsets = [0, 0], sizes = [8, 32], strides = [1, 1]} : vector<8x128xf32> to vector<8x32xf32>
    %173 = vector.extract_strided_slice %170 {offsets = [0, 32], sizes = [8, 32], strides = [1, 1]} : vector<8x128xf32> to vector<8x32xf32>
    %174 = vector.extract_strided_slice %171 {offsets = [0, 64], sizes = [8, 32], strides = [1, 1]} : vector<8x128xf32> to vector<8x32xf32>
    %175 = vector.extract_strided_slice %170 {offsets = [0, 96], sizes = [8, 32], strides = [1, 1]} : vector<8x128xf32> to vector<8x32xf32>
    %176 = arith.mulf %173, %141 : vector<8x32xf32>
    %177 = arith.mulf %172, %174 : vector<8x32xf32>
    %178 = arith.addf %176, %177 : vector<8x32xf32>
    %179 = math.tanh %178 : vector<8x32xf32>
    %180 = arith.mulf %175, %179 : vector<8x32xf32>
    %cst_44 = arith.constant dense<0.000000e+00> : vector<8x128xf32>
    %181 = tpu.matmul %180, %7, %cst_44 {dimension_numbers = #tpu.dot_dimension_numbers<[1], [0], [0], [1], [0, 0, 1, 1], [], []>} : vector<8x32xf32>, vector<32x128xf32>, vector<8x128xf32> -> vector<8x128xf32>
    %cst_45 = arith.constant dense<0.000000e+00> : vector<8x128xf32>
    %182 = tpu.matmul %162, %8, %cst_45 {dimension_numbers = #tpu.dot_dimension_numbers<[1], [0], [0], [1], [0, 0, 1, 1], [], []>} : vector<8x32xf32>, vector<32x128xf32>, vector<8x128xf32> -> vector<8x128xf32>
    %183 = arith.addf %181, %182 : vector<8x128xf32>
    %184 = arith.addf %183, %11 : vector<8x128xf32>
    %185 = arith.negf %184 : vector<8x128xf32>
    %186 = math.exp %185 : vector<8x128xf32>
    %cst_46 = arith.constant 1.000000e+00 : f32
    %187 = vector.broadcast %cst_46 : f32 to vector<8x128xf32>
    %188 = arith.addf %187, %186 : vector<8x128xf32>
    %189 = arith.divf %187, %188 : vector<8x128xf32>
    %190 = math.tanh %184 : vector<8x128xf32>
    %191 = vector.extract_strided_slice %189 {offsets = [0, 0], sizes = [8, 32], strides = [1, 1]} : vector<8x128xf32> to vector<8x32xf32>
    %192 = vector.extract_strided_slice %189 {offsets = [0, 32], sizes = [8, 32], strides = [1, 1]} : vector<8x128xf32> to vector<8x32xf32>
    %193 = vector.extract_strided_slice %190 {offsets = [0, 64], sizes = [8, 32], strides = [1, 1]} : vector<8x128xf32> to vector<8x32xf32>
    %194 = vector.extract_strided_slice %189 {offsets = [0, 96], sizes = [8, 32], strides = [1, 1]} : vector<8x128xf32> to vector<8x32xf32>
    %195 = arith.mulf %192, %160 : vector<8x32xf32>
    %196 = arith.mulf %191, %193 : vector<8x32xf32>
    %197 = arith.addf %195, %196 : vector<8x32xf32>
    %198 = math.tanh %197 : vector<8x32xf32>
    %199 = arith.mulf %194, %198 : vector<8x32xf32>
    %c32 = arith.constant 32 : index
    %c0_47 = arith.constant 0 : index
    %200 = vector.load %arg10[%c32, %c0_47] : memref<64x32xf32, #tpu.memory_space<vmem>>, vector<8x32xf32>
    tpu.vector_store %arg10[%c32, %c0_47], %199 {strides = array<i32>} : memref<64x32xf32, #tpu.memory_space<vmem>>, vector<8x32xf32>,
    %cst_48 = arith.constant dense<0.000000e+00> : vector<8x128xf32>
    %201 = tpu.matmul %180, %6, %cst_48 {dimension_numbers = #tpu.dot_dimension_numbers<[1], [0], [0], [1], [0, 0, 1, 1], [], []>} : vector<8x32xf32>, vector<32x128xf32>, vector<8x128xf32> -> vector<8x128xf32>
    %202 = arith.addf %5, %201 : vector<8x128xf32>
    %203 = arith.negf %202 : vector<8x128xf32>
    %204 = math.exp %203 : vector<8x128xf32>
    %cst_49 = arith.constant 1.000000e+00 : f32
    %205 = vector.broadcast %cst_49 : f32 to vector<8x128xf32>
    %206 = arith.addf %205, %204 : vector<8x128xf32>
    %207 = arith.divf %205, %206 : vector<8x128xf32>
    %208 = math.tanh %202 : vector<8x128xf32>
    %209 = vector.extract_strided_slice %207 {offsets = [0, 0], sizes = [8, 32], strides = [1, 1]} : vector<8x128xf32> to vector<8x32xf32>
    %210 = vector.extract_strided_slice %207 {offsets = [0, 32], sizes = [8, 32], strides = [1, 1]} : vector<8x128xf32> to vector<8x32xf32>
    %211 = vector.extract_strided_slice %208 {offsets = [0, 64], sizes = [8, 32], strides = [1, 1]} : vector<8x128xf32> to vector<8x32xf32>
    %212 = vector.extract_strided_slice %207 {offsets = [0, 96], sizes = [8, 32], strides = [1, 1]} : vector<8x128xf32> to vector<8x32xf32>
    %213 = arith.mulf %210, %178 : vector<8x32xf32>
    %214 = arith.mulf %209, %211 : vector<8x32xf32>
    %215 = arith.addf %213, %214 : vector<8x32xf32>
    %216 = math.tanh %215 : vector<8x32xf32>
    %217 = arith.mulf %212, %216 : vector<8x32xf32>
    %cst_50 = arith.constant dense<0.000000e+00> : vector<8x128xf32>
    %218 = tpu.matmul %217, %7, %cst_50 {dimension_numbers = #tpu.dot_dimension_numbers<[1], [0], [0], [1], [0, 0, 1, 1], [], []>} : vector<8x32xf32>, vector<32x128xf32>, vector<8x128xf32> -> vector<8x128xf32>
    %cst_51 = arith.constant dense<0.000000e+00> : vector<8x128xf32>
    %219 = tpu.matmul %199, %8, %cst_51 {dimension_numbers = #tpu.dot_dimension_numbers<[1], [0], [0], [1], [0, 0, 1, 1], [], []>} : vector<8x32xf32>, vector<32x128xf32>, vector<8x128xf32> -> vector<8x128xf32>
    %220 = arith.addf %218, %219 : vector<8x128xf32>
    %221 = arith.addf %220, %11 : vector<8x128xf32>
    %222 = arith.negf %221 : vector<8x128xf32>
    %223 = math.exp %222 : vector<8x128xf32>
    %cst_52 = arith.constant 1.000000e+00 : f32
    %224 = vector.broadcast %cst_52 : f32 to vector<8x128xf32>
    %225 = arith.addf %224, %223 : vector<8x128xf32>
    %226 = arith.divf %224, %225 : vector<8x128xf32>
    %227 = math.tanh %221 : vector<8x128xf32>
    %228 = vector.extract_strided_slice %226 {offsets = [0, 0], sizes = [8, 32], strides = [1, 1]} : vector<8x128xf32> to vector<8x32xf32>
    %229 = vector.extract_strided_slice %226 {offsets = [0, 32], sizes = [8, 32], strides = [1, 1]} : vector<8x128xf32> to vector<8x32xf32>
    %230 = vector.extract_strided_slice %227 {offsets = [0, 64], sizes = [8, 32], strides = [1, 1]} : vector<8x128xf32> to vector<8x32xf32>
    %231 = vector.extract_strided_slice %226 {offsets = [0, 96], sizes = [8, 32], strides = [1, 1]} : vector<8x128xf32> to vector<8x32xf32>
    %232 = arith.mulf %229, %197 : vector<8x32xf32>
    %233 = arith.mulf %228, %230 : vector<8x32xf32>
    %234 = arith.addf %232, %233 : vector<8x32xf32>
    %235 = math.tanh %234 : vector<8x32xf32>
    %236 = arith.mulf %231, %235 : vector<8x32xf32>
    %c40 = arith.constant 40 : index
    %c0_53 = arith.constant 0 : index
    %237 = vector.load %arg10[%c40, %c0_53] : memref<64x32xf32, #tpu.memory_space<vmem>>, vector<8x32xf32>
    tpu.vector_store %arg10[%c40, %c0_53], %236 {strides = array<i32>} : memref<64x32xf32, #tpu.memory_space<vmem>>, vector<8x32xf32>,
    %cst_54 = arith.constant dense<0.000000e+00> : vector<8x128xf32>
    %238 = tpu.matmul %217, %6, %cst_54 {dimension_numbers = #tpu.dot_dimension_numbers<[1], [0], [0], [1], [0, 0, 1, 1], [], []>} : vector<8x32xf32>, vector<32x128xf32>, vector<8x128xf32> -> vector<8x128xf32>
    %239 = arith.addf %5, %238 : vector<8x128xf32>
    %240 = arith.negf %239 : vector<8x128xf32>
    %241 = math.exp %240 : vector<8x128xf32>
    %cst_55 = arith.constant 1.000000e+00 : f32
    %242 = vector.broadcast %cst_55 : f32 to vector<8x128xf32>
    %243 = arith.addf %242, %241 : vector<8x128xf32>
    %244 = arith.divf %242, %243 : vector<8x128xf32>
    %245 = math.tanh %239 : vector<8x128xf32>
    %246 = vector.extract_strided_slice %244 {offsets = [0, 0], sizes = [8, 32], strides = [1, 1]} : vector<8x128xf32> to vector<8x32xf32>
    %247 = vector.extract_strided_slice %244 {offsets = [0, 32], sizes = [8, 32], strides = [1, 1]} : vector<8x128xf32> to vector<8x32xf32>
    %248 = vector.extract_strided_slice %245 {offsets = [0, 64], sizes = [8, 32], strides = [1, 1]} : vector<8x128xf32> to vector<8x32xf32>
    %249 = vector.extract_strided_slice %244 {offsets = [0, 96], sizes = [8, 32], strides = [1, 1]} : vector<8x128xf32> to vector<8x32xf32>
    %250 = arith.mulf %247, %215 : vector<8x32xf32>
    %251 = arith.mulf %246, %248 : vector<8x32xf32>
    %252 = arith.addf %250, %251 : vector<8x32xf32>
    %253 = math.tanh %252 : vector<8x32xf32>
    %254 = arith.mulf %249, %253 : vector<8x32xf32>
    %cst_56 = arith.constant dense<0.000000e+00> : vector<8x128xf32>
    %255 = tpu.matmul %254, %7, %cst_56 {dimension_numbers = #tpu.dot_dimension_numbers<[1], [0], [0], [1], [0, 0, 1, 1], [], []>} : vector<8x32xf32>, vector<32x128xf32>, vector<8x128xf32> -> vector<8x128xf32>
    %cst_57 = arith.constant dense<0.000000e+00> : vector<8x128xf32>
    %256 = tpu.matmul %236, %8, %cst_57 {dimension_numbers = #tpu.dot_dimension_numbers<[1], [0], [0], [1], [0, 0, 1, 1], [], []>} : vector<8x32xf32>, vector<32x128xf32>, vector<8x128xf32> -> vector<8x128xf32>
    %257 = arith.addf %255, %256 : vector<8x128xf32>
    %258 = arith.addf %257, %11 : vector<8x128xf32>
    %259 = arith.negf %258 : vector<8x128xf32>
    %260 = math.exp %259 : vector<8x128xf32>
    %cst_58 = arith.constant 1.000000e+00 : f32
    %261 = vector.broadcast %cst_58 : f32 to vector<8x128xf32>
    %262 = arith.addf %261, %260 : vector<8x128xf32>
    %263 = arith.divf %261, %262 : vector<8x128xf32>
    %264 = math.tanh %258 : vector<8x128xf32>
    %265 = vector.extract_strided_slice %263 {offsets = [0, 0], sizes = [8, 32], strides = [1, 1]} : vector<8x128xf32> to vector<8x32xf32>
    %266 = vector.extract_strided_slice %263 {offsets = [0, 32], sizes = [8, 32], strides = [1, 1]} : vector<8x128xf32> to vector<8x32xf32>
    %267 = vector.extract_strided_slice %264 {offsets = [0, 64], sizes = [8, 32], strides = [1, 1]} : vector<8x128xf32> to vector<8x32xf32>
    %268 = vector.extract_strided_slice %263 {offsets = [0, 96], sizes = [8, 32], strides = [1, 1]} : vector<8x128xf32> to vector<8x32xf32>
    %269 = arith.mulf %266, %234 : vector<8x32xf32>
    %270 = arith.mulf %265, %267 : vector<8x32xf32>
    %271 = arith.addf %269, %270 : vector<8x32xf32>
    %272 = math.tanh %271 : vector<8x32xf32>
    %273 = arith.mulf %268, %272 : vector<8x32xf32>
    %c48 = arith.constant 48 : index
    %c0_59 = arith.constant 0 : index
    %274 = vector.load %arg10[%c48, %c0_59] : memref<64x32xf32, #tpu.memory_space<vmem>>, vector<8x32xf32>
    tpu.vector_store %arg10[%c48, %c0_59], %273 {strides = array<i32>} : memref<64x32xf32, #tpu.memory_space<vmem>>, vector<8x32xf32>,
    %cst_60 = arith.constant dense<0.000000e+00> : vector<8x128xf32>
    %275 = tpu.matmul %254, %6, %cst_60 {dimension_numbers = #tpu.dot_dimension_numbers<[1], [0], [0], [1], [0, 0, 1, 1], [], []>} : vector<8x32xf32>, vector<32x128xf32>, vector<8x128xf32> -> vector<8x128xf32>
    %276 = arith.addf %5, %275 : vector<8x128xf32>
    %277 = arith.negf %276 : vector<8x128xf32>
    %278 = math.exp %277 : vector<8x128xf32>
    %cst_61 = arith.constant 1.000000e+00 : f32
    %279 = vector.broadcast %cst_61 : f32 to vector<8x128xf32>
    %280 = arith.addf %279, %278 : vector<8x128xf32>
    %281 = arith.divf %279, %280 : vector<8x128xf32>
    %282 = math.tanh %276 : vector<8x128xf32>
    %283 = vector.extract_strided_slice %281 {offsets = [0, 0], sizes = [8, 32], strides = [1, 1]} : vector<8x128xf32> to vector<8x32xf32>
    %284 = vector.extract_strided_slice %281 {offsets = [0, 32], sizes = [8, 32], strides = [1, 1]} : vector<8x128xf32> to vector<8x32xf32>
    %285 = vector.extract_strided_slice %282 {offsets = [0, 64], sizes = [8, 32], strides = [1, 1]} : vector<8x128xf32> to vector<8x32xf32>
    %286 = vector.extract_strided_slice %281 {offsets = [0, 96], sizes = [8, 32], strides = [1, 1]} : vector<8x128xf32> to vector<8x32xf32>
    %287 = arith.mulf %284, %252 : vector<8x32xf32>
    %288 = arith.mulf %283, %285 : vector<8x32xf32>
    %289 = arith.addf %287, %288 : vector<8x32xf32>
    %290 = math.tanh %289 : vector<8x32xf32>
    %291 = arith.mulf %286, %290 : vector<8x32xf32>
    %cst_62 = arith.constant dense<0.000000e+00> : vector<8x128xf32>
    %292 = tpu.matmul %291, %7, %cst_62 {dimension_numbers = #tpu.dot_dimension_numbers<[1], [0], [0], [1], [0, 0, 1, 1], [], []>} : vector<8x32xf32>, vector<32x128xf32>, vector<8x128xf32> -> vector<8x128xf32>
    %cst_63 = arith.constant dense<0.000000e+00> : vector<8x128xf32>
    %293 = tpu.matmul %273, %8, %cst_63 {dimension_numbers = #tpu.dot_dimension_numbers<[1], [0], [0], [1], [0, 0, 1, 1], [], []>} : vector<8x32xf32>, vector<32x128xf32>, vector<8x128xf32> -> vector<8x128xf32>
    %294 = arith.addf %292, %293 : vector<8x128xf32>
    %295 = arith.addf %294, %11 : vector<8x128xf32>
    %296 = arith.negf %295 : vector<8x128xf32>
    %297 = math.exp %296 : vector<8x128xf32>
    %cst_64 = arith.constant 1.000000e+00 : f32
    %298 = vector.broadcast %cst_64 : f32 to vector<8x128xf32>
    %299 = arith.addf %298, %297 : vector<8x128xf32>
    %300 = arith.divf %298, %299 : vector<8x128xf32>
    %301 = math.tanh %295 : vector<8x128xf32>
    %302 = vector.extract_strided_slice %300 {offsets = [0, 0], sizes = [8, 32], strides = [1, 1]} : vector<8x128xf32> to vector<8x32xf32>
    %303 = vector.extract_strided_slice %300 {offsets = [0, 32], sizes = [8, 32], strides = [1, 1]} : vector<8x128xf32> to vector<8x32xf32>
    %304 = vector.extract_strided_slice %301 {offsets = [0, 64], sizes = [8, 32], strides = [1, 1]} : vector<8x128xf32> to vector<8x32xf32>
    %305 = vector.extract_strided_slice %300 {offsets = [0, 96], sizes = [8, 32], strides = [1, 1]} : vector<8x128xf32> to vector<8x32xf32>
    %306 = arith.mulf %303, %271 : vector<8x32xf32>
    %307 = arith.mulf %302, %304 : vector<8x32xf32>
    %308 = arith.addf %306, %307 : vector<8x32xf32>
    %309 = math.tanh %308 : vector<8x32xf32>
    %310 = arith.mulf %305, %309 : vector<8x32xf32>
    %c56 = arith.constant 56 : index
    %c0_65 = arith.constant 0 : index
    %311 = vector.load %arg10[%c56, %c0_65] : memref<64x32xf32, #tpu.memory_space<vmem>>, vector<8x32xf32>
    tpu.vector_store %arg10[%c56, %c0_65], %310 {strides = array<i32>} : memref<64x32xf32, #tpu.memory_space<vmem>>, vector<8x32xf32>,
    %c0_66 = arith.constant 0 : index
    %c0_67 = arith.constant 0 : index
    %312 = vector.load %arg10[%c0_66, %c0_67] : memref<64x32xf32, #tpu.memory_space<vmem>>, vector<64x32xf32>
    %c0_68 = arith.constant 0 : index
    %c0_69 = arith.constant 0 : index
    %313 = vector.load %arg7[%c0_68, %c0_69] : memref<32x16xf32, #tpu.memory_space<vmem>>, vector<32x16xf32>
    %cst_70 = arith.constant dense<0.000000e+00> : vector<64x16xf32>
    %314 = tpu.matmul %312, %313, %cst_70 {dimension_numbers = #tpu.dot_dimension_numbers<[1], [0], [0], [1], [0, 0, 1, 1], [], []>} : vector<64x32xf32>, vector<32x16xf32>, vector<64x16xf32> -> vector<64x16xf32>
    %c0_71 = arith.constant 0 : index
    %c0_72 = arith.constant 0 : index
    %315 = vector.load %arg8[%c0_71, %c0_72] : memref<1x16xf32, #tpu.memory_space<vmem>>, vector<1x16xf32>
    %316 = vector.broadcast %315 : vector<1x16xf32> to vector<64x16xf32>
    %317 = arith.addf %314, %316 : vector<64x16xf32>
    %cst_73 = arith.constant 0.000000e+00 : f32
    %318 = vector.broadcast %cst_73 : f32 to vector<64x16xf32>
    %319 = arith.maximumf %317, %318 : vector<64x16xf32>
    %320 = vector.extract_strided_slice %319 {offsets = [0, 0], sizes = [8, 16], strides = [1, 1]} : vector<64x16xf32> to vector<8x16xf32>
    %c0_74 = arith.constant 0 : index
    %c0_75 = arith.constant 0 : index
    %321 = vector.load %arg9[%c0_74, %c0_75] : memref<8x128xf32, #tpu.memory_space<vmem>>, vector<8x16xf32>
    tpu.vector_store %arg9[%c0_74, %c0_75], %320 {strides = array<i32>} : memref<8x128xf32, #tpu.memory_space<vmem>>, vector<8x16xf32>,
    %322 = vector.extract_strided_slice %319 {offsets = [8, 0], sizes = [8, 16], strides = [1, 1]} : vector<64x16xf32> to vector<8x16xf32>
    %c0_76 = arith.constant 0 : index
    %c16_77 = arith.constant 16 : index
    %323 = vector.load %arg9[%c0_76, %c16_77] : memref<8x128xf32, #tpu.memory_space<vmem>>, vector<8x16xf32>
    tpu.vector_store %arg9[%c0_76, %c16_77], %322 {strides = array<i32>} : memref<8x128xf32, #tpu.memory_space<vmem>>, vector<8x16xf32>,
    %324 = vector.extract_strided_slice %319 {offsets = [16, 0], sizes = [8, 16], strides = [1, 1]} : vector<64x16xf32> to vector<8x16xf32>
    %c0_78 = arith.constant 0 : index
    %c32_79 = arith.constant 32 : index
    %325 = vector.load %arg9[%c0_78, %c32_79] : memref<8x128xf32, #tpu.memory_space<vmem>>, vector<8x16xf32>
    tpu.vector_store %arg9[%c0_78, %c32_79], %324 {strides = array<i32>} : memref<8x128xf32, #tpu.memory_space<vmem>>, vector<8x16xf32>,
    %326 = vector.extract_strided_slice %319 {offsets = [24, 0], sizes = [8, 16], strides = [1, 1]} : vector<64x16xf32> to vector<8x16xf32>
    %c0_80 = arith.constant 0 : index
    %c48_81 = arith.constant 48 : index
    %327 = vector.load %arg9[%c0_80, %c48_81] : memref<8x128xf32, #tpu.memory_space<vmem>>, vector<8x16xf32>
    tpu.vector_store %arg9[%c0_80, %c48_81], %326 {strides = array<i32>} : memref<8x128xf32, #tpu.memory_space<vmem>>, vector<8x16xf32>,
    %328 = vector.extract_strided_slice %319 {offsets = [32, 0], sizes = [8, 16], strides = [1, 1]} : vector<64x16xf32> to vector<8x16xf32>
    %c0_82 = arith.constant 0 : index
    %c64 = arith.constant 64 : index
    %329 = vector.load %arg9[%c0_82, %c64] : memref<8x128xf32, #tpu.memory_space<vmem>>, vector<8x16xf32>
    tpu.vector_store %arg9[%c0_82, %c64], %328 {strides = array<i32>} : memref<8x128xf32, #tpu.memory_space<vmem>>, vector<8x16xf32>,
    %330 = vector.extract_strided_slice %319 {offsets = [40, 0], sizes = [8, 16], strides = [1, 1]} : vector<64x16xf32> to vector<8x16xf32>
    %c0_83 = arith.constant 0 : index
    %c80 = arith.constant 80 : index
    %331 = vector.load %arg9[%c0_83, %c80] : memref<8x128xf32, #tpu.memory_space<vmem>>, vector<8x16xf32>
    tpu.vector_store %arg9[%c0_83, %c80], %330 {strides = array<i32>} : memref<8x128xf32, #tpu.memory_space<vmem>>, vector<8x16xf32>,
    %332 = vector.extract_strided_slice %319 {offsets = [48, 0], sizes = [8, 16], strides = [1, 1]} : vector<64x16xf32> to vector<8x16xf32>
    %c0_84 = arith.constant 0 : index
    %c96 = arith.constant 96 : index
    %333 = vector.load %arg9[%c0_84, %c96] : memref<8x128xf32, #tpu.memory_space<vmem>>, vector<8x16xf32>
    tpu.vector_store %arg9[%c0_84, %c96], %332 {strides = array<i32>} : memref<8x128xf32, #tpu.memory_space<vmem>>, vector<8x16xf32>,
    %334 = vector.extract_strided_slice %319 {offsets = [56, 0], sizes = [8, 16], strides = [1, 1]} : vector<64x16xf32> to vector<8x16xf32>
    %c0_85 = arith.constant 0 : index
    %c112 = arith.constant 112 : index
    %335 = vector.load %arg9[%c0_85, %c112] : memref<8x128xf32, #tpu.memory_space<vmem>>, vector<8x16xf32>
    tpu.vector_store %arg9[%c0_85, %c112], %334 {strides = array<i32>} : memref<8x128xf32, #tpu.memory_space<vmem>>, vector<8x16xf32>,
    return
  }
}

</mosaic_0001>

<llo_original>
// kernel: tpu_custom_call.1
$region0: #{tpu_custom_call.1}
  #allocation0 [shape = 'u32[]', space=smem, size = 0x4, offset = 0x4, fixed_abs, tag = 'smem constant byte address 0x4 - core index']
  #allocation1 [shape = 'u32[144,128]{1,0:T(1,128)}', space=vmem, size = 0x12000, scoped, tag = 'internal scratch']
  #allocation2 [shape = 'f32[64,32]{1,0:T(8,128)}', space=vmem, size = 0x8000, scoped, tag = 'scratch operand']
  %s0 = inlined_call_operand.hbm [shape: f32[8,16], index: 0, kind: input, shape index: {}]
  %s1 = inlined_call_operand.vmem [shape: f32[16,128], index: 1, kind: input, shape index: {}]
  %s2 = inlined_call_operand.vmem [shape: f32[32,128], index: 2, kind: input, shape index: {}]
  %s3 = inlined_call_operand.hbm [shape: f32[32,128], index: 3, kind: input, shape index: {}]
  %s4 = inlined_call_operand.hbm [shape: f32[32,128], index: 4, kind: input, shape index: {}]
  %s5 = inlined_call_operand.vmem [shape: f32[1,128], index: 5, kind: input, shape index: {}]
  %s6 = inlined_call_operand.vmem [shape: f32[1,128], index: 6, kind: input, shape index: {}]
  %s7 = inlined_call_operand.vmem [shape: f32[32,16], index: 7, kind: input, shape index: {}]
  %s8 = inlined_call_operand.vmem [shape: f32[1,16], index: 8, kind: input, shape index: {}]
  %s9 = inlined_call_operand.hbm [shape: f32[8,128], index: 9, kind: output, shape index: {}]
  %s10 = sld [smem:[#allocation0]]
  $region58: #{tpu_custom_call.1} parent=0
    _
  %s12 = ssub.s32 1, %s10
  %s13 = scalar_select 0, %s12, %s10
  $region1: #{tpu_custom_call.1} parent=0
    #allocation3 [shape = 'u8[4096]{0}', space=vmem, size = 0x1000, scoped, tag = 'input window, operand 0, single buffered']
    #allocation4 [shape = 's32[1]{0}', space=sflag, size = 0x4, scoped, tag = 'scoped memory for tpu_custom_call.1']
    #allocation5 [shape = 's32[1]{0}', space=sflag, size = 0x4, scoped, tag = 'scoped memory for tpu_custom_call.1']
    #allocation6 [shape = 'u8[16384]{0}', space=vmem, size = 0x4000, scoped, tag = 'input window, operand 3, single buffered']
    #allocation7 [shape = 's32[1]{0}', space=sflag, size = 0x4, scoped, tag = 'scoped memory for tpu_custom_call.1']
    #allocation8 [shape = 'u8[16384]{0}', space=vmem, size = 0x4000, scoped, tag = 'input window, operand 4, single buffered']
    #allocation9 [shape = 'u8[4096]{0}', space=vmem, size = 0x1000, scoped, tag = 'output window, operand 0, single buffered']
    %14 = vsyncpa [#allocation4], 0
    %15 = vsyncpa [#allocation7], 0
    %16 = vsyncpa [#allocation5], 0
    // Predicated region
    $region2: #{tpu_custom_call.1} parent=1 // pred_check
      _
    $region3: #{tpu_custom_call.1} parent=1 // pred_check_branch
      %18 = sbr.rel (0) target = $region5
    $region4: #{tpu_custom_call.1} parent=1 // pred_region
      %s20 = ssub.s32 128, 128
      %21 = vsyncadd [#allocation4], %s20
      %s23 = sshll.u32 [#allocation3], 4
      %s24 = int_to_ptr.vmem [resolvable:$true] %s23
      %26 = dma.hbm_to_vmem [thread:$0]  %s0, 128, %s24, [#allocation4]
    $region5: #{tpu_custom_call.1} parent=1 // pred_fallthru
      _
    // Predicated region
    $region6: #{tpu_custom_call.1} parent=1 // pred_check
      _
    $region7: #{tpu_custom_call.1} parent=1 // pred_check_branch
      %28 = sbr.rel (0) target = $region9
    $region8: #{tpu_custom_call.1} parent=1 // pred_region
      _
    $region9: #{tpu_custom_call.1} parent=1 // pred_fallthru
      _
    // Predicated region
    $region10: #{tpu_custom_call.1} parent=1 // pred_check
      _
    $region11: #{tpu_custom_call.1} parent=1 // pred_check_branch
      %30 = sbr.rel (0) target = $region13
    $region12: #{tpu_custom_call.1} parent=1 // pred_region
      _
    $region13: #{tpu_custom_call.1} parent=1 // pred_fallthru
      _
    // Predicated region
    $region14: #{tpu_custom_call.1} parent=1 // pred_check
      _
    $region15: #{tpu_custom_call.1} parent=1 // pred_check_branch
      %32 = sbr.rel (0) target = $region17
    $region16: #{tpu_custom_call.1} parent=1 // pred_region
      %s34 = ssub.s32 512, 512
      %35 = vsyncadd [#allocation7], %s34
      %s36 = sshll.u32 [#allocation6], 4
      %s37 = int_to_ptr.vmem [resolvable:$true] %s36
      %42 = dma.hbm_to_vmem [thread:$0]  %s3, 512, %s37, [#allocation7], 128, 128, 8
    $region17: #{tpu_custom_call.1} parent=1 // pred_fallthru
      _
    // Predicated region
    $region18: #{tpu_custom_call.1} parent=1 // pred_check
      _
    $region19: #{tpu_custom_call.1} parent=1 // pred_check_branch
      %44 = sbr.rel (0) target = $region21
    $region20: #{tpu_custom_call.1} parent=1 // pred_region
      %s46 = ssub.s32 512, 512
      %47 = vsyncadd [#allocation7], %s46
      %s48 = sshll.u32 [#allocation8], 4
      %s49 = int_to_ptr.vmem [resolvable:$true] %s48
      %54 = dma.hbm_to_vmem [thread:$0]  %s4, 512, %s49, [#allocation7], 128, 128, 8
    $region21: #{tpu_custom_call.1} parent=1 // pred_fallthru
      _
    // Predicated region
    $region22: #{tpu_custom_call.1} parent=1 // pred_check
      _
    $region23: #{tpu_custom_call.1} parent=1 // pred_check_branch
      %56 = sbr.rel (0) target = $region25
    $region24: #{tpu_custom_call.1} parent=1 // pred_region
      _
    $region25: #{tpu_custom_call.1} parent=1 // pred_fallthru
      _
    // Predicated region
    $region26: #{tpu_custom_call.1} parent=1 // pred_check
      _
    $region27: #{tpu_custom_call.1} parent=1 // pred_check_branch
      %58 = sbr.rel (0) target = $region29
    $region28: #{tpu_custom_call.1} parent=1 // pred_region
      _
    $region29: #{tpu_custom_call.1} parent=1 // pred_fallthru
      _
    // Predicated region
    $region30: #{tpu_custom_call.1} parent=1 // pred_check
      _
    $region31: #{tpu_custom_call.1} parent=1 // pred_check_branch
      %60 = sbr.rel (0) target = $region33
    $region32: #{tpu_custom_call.1} parent=1 // pred_region
      _
    $region33: #{tpu_custom_call.1} parent=1 // pred_fallthru
      _
    // Predicated region
    $region34: #{tpu_custom_call.1} parent=1 // pred_check
      _
    $region35: #{tpu_custom_call.1} parent=1 // pred_check_branch
      %62 = sbr.rel (0) target = $region37
    $region36: #{tpu_custom_call.1} parent=1 // pred_region
      _
    $region37: #{tpu_custom_call.1} parent=1 // pred_fallthru
      _
    // Predicated region
    $region38: #{tpu_custom_call.1} parent=1 // pred_check
      _
    $region39: #{tpu_custom_call.1} parent=1 // pred_check_branch
      %64 = sbr.rel (0) target = $region41
    $region40: #{tpu_custom_call.1} parent=1 // pred_region
      %65 = dma.done [#allocation4], 128
    $region41: #{tpu_custom_call.1} parent=1 // pred_fallthru
      _
    // Predicated region
    $region42: #{tpu_custom_call.1} parent=1 // pred_check
      _
    $region43: #{tpu_custom_call.1} parent=1 // pred_check_branch
      %67 = sbr.rel (0) target = $region45
    $region44: #{tpu_custom_call.1} parent=1 // pred_region
      %68 = dma.done [#allocation7], 512
    $region45: #{tpu_custom_call.1} parent=1 // pred_fallthru
      _
    // Predicated region
    $region46: #{tpu_custom_call.1} parent=1 // pred_check
      _
    $region47: #{tpu_custom_call.1} parent=1 // pred_check_branch
      %70 = sbr.rel (0) target = $region49
    $region48: #{tpu_custom_call.1} parent=1 // pred_region
      %71 = dma.done [#allocation7], 512
    $region49: #{tpu_custom_call.1} parent=1 // pred_fallthru
      _
    %v72 = vld [vmem:[#allocation3] sm:$0xff]
    %v73 = vld [vmem:[%s1] sm:$0xff]
    %v74 = vld [vmem:[%s1 + $0x8] sm:$0xff]
    %v75 = vld [vmem:[%s5] sm:$0x1]
    %v77 = vlaneseq
    %v78 = vshrl.u32 %v77, 7
    %v79 = vsub.s32 0, %v78
    %v80 = vrot.slane %v75, %v79
    %vm82 = vcmask 130048
    %v84 = vsel %vm82, %v72, 0
    %86 = vmatprep.subr.mxu0 0.0
    %87 = vmatpush1.msra.mxu0 %v73
    %88 = vmatprep.subr.mxu0 0.0
    %89 = vmatpush1.msra.mxu0 %v74
    %90 = vmatprep.subr.mxu0 0.0
    %91 = vmatpush1.msra.mxu0 0.0
    %92 = vmatprep.subr.mxu0 0.0
    %93 = vmatpush1.msra.mxu0 0.0
    %94 = vmatprep.subr.mxu0 0.0
    %95 = vmatpush1.msra.mxu0 0.0
    %96 = vmatprep.subr.mxu0 0.0
    %97 = vmatpush1.msra.mxu0 0.0
    %98 = vmatprep.subr.mxu0 0.0
    %99 = vmatpush1.msra.mxu0 0.0
    %100 = vmatprep.subr.mxu0 0.0
    %101 = vmatpush1.msra.mxu0 0.0
    %102 = vmatprep.subr.mxu0 0.0
    %103 = vmatpush1.msra.mxu0 0.0
    %104 = vmatprep.subr.mxu0 0.0
    %105 = vmatpush1.msra.mxu0 0.0
    %106 = vmatprep.subr.mxu0 0.0
    %107 = vmatpush1.msra.mxu0 0.0
    %108 = vmatprep.subr.mxu0 0.0
    %109 = vmatpush1.msra.mxu0 0.0
    %110 = vmatprep.subr.mxu0 0.0
    %111 = vmatpush1.msra.mxu0 0.0
    %112 = vmatprep.subr.mxu0 0.0
    %113 = vmatpush1.msra.mxu0 0.0
    %114 = vmatprep.subr.mxu0 0.0
    %115 = vmatpush1.msra.mxu0 0.0
    %116 = vmatprep.subr.mxu0 0.0
    %117 = vmatpush1.msra.mxu0 0.0
    %118 = vmatprep.subr.mxu0 0.0
    %119 = vmatpush1.msra.mxu0 0.0
    %120 = vmatprep.subr.mxu0 0.0
    %121 = vmatpush1.msra.mxu0 0.0
    %122 = vmatprep.subr.mxu0 0.0
    %123 = vmatpush1.msra.mxu0 0.0
    %124 = vmatprep.subr.mxu0 0.0
    %125 = vmatpush1.msra.mxu0 0.0
    %126 = vmatprep.subr.mxu0 0.0
    %127 = vmatpush1.msra.mxu0 0.0
    %128 = vmatprep.subr.mxu0 0.0
    %129 = vmatpush1.msra.mxu0 0.0
    %130 = vmatprep.subr.mxu0 0.0
    %131 = vmatpush1.msra.mxu0 0.0
    %132 = vmatprep.subr.mxu0 0.0
    %133 = vmatpush1.msra.mxu0 0.0
    %134 = vmatprep.subr.mxu0 0.0
    %135 = vmatpush1.msra.mxu0 0.0
    %136 = vmatprep.subr.mxu0 0.0
    %137 = vmatpush1.msra.mxu0 0.0
    %138 = vmatprep.subr.mxu0 0.0
    %139 = vmatpush1.msra.mxu0 0.0
    %140 = vmatprep.subr.mxu0 0.0
    %141 = vmatpush1.msra.mxu0 0.0
    %142 = vmatprep.subr.mxu0 0.0
    %143 = vmatpush1.msra.mxu0 0.0
    %144 = vmatprep.subr.mxu0 0.0
    %145 = vmatpush1.msra.mxu0 0.0
    %146 = vmatprep.subr.mxu0 0.0
    %147 = vmatpush1.msra.mxu0 0.0
    %148 = vmatprep.subr.mxu0 0.0
    %149 = vmatpush1.msra.mxu0 0.0
    %150 = vmatprep.mubr.f32.mxu0 0.0
    %151 = vmatmul.mubr.f32.gmra.mrb[0].mxu0 %v84
    %v152 = vpop.f32.mrb[0].mxu0
    %v153 = vadd.f32 %v80, %v152
    %v154 = vpop.f32.mrb[0].mxu0
    %155 = vdwg.mxu0
    %v156 = vld [vmem:[%s2] sm:$0xff]
    %v157 = vld [vmem:[%s2 + $0x8] sm:$0xff]
    %v158 = vld [vmem:[%s2 + $0x10] sm:$0xff]
    %v159 = vld [vmem:[%s2 + $0x18] sm:$0xff]
    %v160 = vld [vmem:[#allocation6] sm:$0xff]
    %v161 = vld [vmem:[#allocation6 + $0x8] sm:$0xff]
    %v162 = vld [vmem:[#allocation6 + $0x10] sm:$0xff]
    %v163 = vld [vmem:[#allocation6 + $0x18] sm:$0xff]
    %v164 = vld [vmem:[#allocation8] sm:$0xff]
    %v165 = vld [vmem:[#allocation8 + $0x8] sm:$0xff]
    %v166 = vld [vmem:[#allocation8 + $0x10] sm:$0xff]
    %v167 = vld [vmem:[#allocation8 + $0x18] sm:$0xff]
    %v168 = vld [vmem:[%s6] sm:$0x1]
    %v170 = vlaneseq
    %v171 = vshrl.u32 %v170, 7
    %v172 = vsub.s32 0, %v171
    %v173 = vrot.slane %v168, %v172
    %vm175 = vcmask 261120
    %v177 = vsel %vm175, 0.0, 0
    %179 = vmatprep.subr.mxu0 0.0
    %180 = vmatpush1.msra.mxu0 %v156
    %181 = vmatprep.subr.mxu0 0.0
    %182 = vmatpush1.msra.mxu0 %v157
    %183 = vmatprep.subr.mxu0 0.0
    %184 = vmatpush1.msra.mxu0 %v158
    %185 = vmatprep.subr.mxu0 0.0
    %186 = vmatpush1.msra.mxu0 %v159
    %187 = vmatprep.subr.mxu0 0.0
    %188 = vmatpush1.msra.mxu0 0.0
    %189 = vmatprep.subr.mxu0 0.0
    %190 = vmatpush1.msra.mxu0 0.0
    %191 = vmatprep.subr.mxu0 0.0
    %192 = vmatpush1.msra.mxu0 0.0
    %193 = vmatprep.subr.mxu0 0.0
    %194 = vmatpush1.msra.mxu0 0.0
    %195 = vmatprep.subr.mxu0 0.0
    %196 = vmatpush1.msra.mxu0 0.0
    %197 = vmatprep.subr.mxu0 0.0
    %198 = vmatpush1.msra.mxu0 0.0
    %199 = vmatprep.subr.mxu0 0.0
    %200 = vmatpush1.msra.mxu0 0.0
    %201 = vmatprep.subr.mxu0 0.0
    %202 = vmatpush1.msra.mxu0 0.0
    %203 = vmatprep.subr.mxu0 0.0
    %204 = vmatpush1.msra.mxu0 0.0
    %205 = vmatprep.subr.mxu0 0.0
    %206 = vmatpush1.msra.mxu0 0.0
    %207 = vmatprep.subr.mxu0 0.0
    %208 = vmatpush1.msra.mxu0 0.0
    %209 = vmatprep.subr.mxu0 0.0
    %210 = vmatpush1.msra.mxu0 0.0
    %211 = vmatprep.subr.mxu0 0.0
    %212 = vmatpush1.msra.mxu0 0.0
    %213 = vmatprep.subr.mxu0 0.0
    %214 = vmatpush1.msra.mxu0 0.0
    %215 = vmatprep.subr.mxu0 0.0
    %216 = vmatpush1.msra.mxu0 0.0
    %217 = vmatprep.subr.mxu0 0.0
    %218 = vmatpush1.msra.mxu0 0.0
    %219 = vmatprep.subr.mxu0 0.0
    %220 = vmatpush1.msra.mxu0 0.0
    %221 = vmatprep.subr.mxu0 0.0
    %222 = vmatpush1.msra.mxu0 0.0
    %223 = vmatprep.subr.mxu0 0.0
    %224 = vmatpush1.msra.mxu0 0.0
    %225 = vmatprep.subr.mxu0 0.0
    %226 = vmatpush1.msra.mxu0 0.0
    %227 = vmatprep.subr.mxu0 0.0
    %228 = vmatpush1.msra.mxu0 0.0
    %229 = vmatprep.subr.mxu0 0.0
    %230 = vmatpush1.msra.mxu0 0.0
    %231 = vmatprep.subr.mxu0 0.0
    %232 = vmatpush1.msra.mxu0 0.0
    %233 = vmatprep.subr.mxu0 0.0
    %234 = vmatpush1.msra.mxu0 0.0
    %235 = vmatprep.subr.mxu0 0.0
    %236 = vmatpush1.msra.mxu0 0.0
    %237 = vmatprep.subr.mxu0 0.0
    %238 = vmatpush1.msra.mxu0 0.0
    %239 = vmatprep.subr.mxu0 0.0
    %240 = vmatpush1.msra.mxu0 0.0
    %241 = vmatprep.subr.mxu0 0.0
    %242 = vmatpush1.msra.mxu0 0.0
    %243 = vmatprep.mubr.f32.mxu0 0.0
    %244 = vmatmul.mubr.f32.gmra.mrb[0].mxu0 %v177
    %v245 = vpop.f32.mrb[0].mxu0
    %v246 = vadd.f32 0.0, %v245
    %v247 = vpop.f32.mrb[0].mxu0
    %248 = vdwg.mxu0
    %v249 = vadd.f32 %v153, %v246
    %v250 = vxor.u32 %v249, 2147483648
    %v251 = vmul.f32 %v250, 1.442695
    %v252 = vpow.pop %v251
    %v253 = vadd.f32 %v252, 1.0
    %v254 = vrcp.pop %v253
    %v255 = vmul.f32 1.0, %v254
    %v256 = vtanh.pop %v249
    %v257 = vmul.f32 %v255, 0.0
    %259 = vrot.lane.b32.xlu0 %v256, 64
    %v260 = vpop.permute.xlu0 %259
    %v262 = vmul.f32 %v255, %v260
    %264 = vrot.lane.b32.xlu0 %v262, 32
    %v265 = vpop.permute.xlu0 %264
    %v267 = vadd.f32 %v257, %v265
    %v268 = vtanh.pop %v267
    %270 = vrot.lane.b32.xlu0 %v268, 64
    %v271 = vpop.permute.xlu0 %270
    %v273 = vmul.f32 %v255, %v271
    %274 = vmatprep.subr.mxu0 0.0
    %275 = vmatpush1.msra.mxu0 %v164
    %276 = vmatprep.subr.mxu0 0.0
    %277 = vmatpush1.msra.mxu0 %v165
    %278 = vmatprep.subr.mxu0 0.0
    %279 = vmatpush1.msra.mxu0 %v166
    %280 = vmatprep.subr.mxu0 0.0
    %281 = vmatpush1.msra.mxu0 %v167
    %282 = vmatprep.subr.mxu0 0.0
    %283 = vmatpush1.msra.mxu0 0.0
    %284 = vmatprep.subr.mxu0 0.0
    %285 = vmatpush1.msra.mxu0 0.0
    %286 = vmatprep.subr.mxu0 0.0
    %287 = vmatpush1.msra.mxu0 0.0
    %288 = vmatprep.subr.mxu0 0.0
    %289 = vmatpush1.msra.mxu0 0.0
    %290 = vmatprep.subr.mxu0 0.0
    %291 = vmatpush1.msra.mxu0 0.0
    %292 = vmatprep.subr.mxu0 0.0
    %293 = vmatpush1.msra.mxu0 0.0
    %294 = vmatprep.subr.mxu0 0.0
    %295 = vmatpush1.msra.mxu0 0.0
    %296 = vmatprep.subr.mxu0 0.0
    %297 = vmatpush1.msra.mxu0 0.0
    %298 = vmatprep.subr.mxu0 0.0
    %299 = vmatpush1.msra.mxu0 0.0
    %300 = vmatprep.subr.mxu0 0.0
    %301 = vmatpush1.msra.mxu0 0.0
    %302 = vmatprep.subr.mxu0 0.0
    %303 = vmatpush1.msra.mxu0 0.0
    %304 = vmatprep.subr.mxu0 0.0
    %305 = vmatpush1.msra.mxu0 0.0
    %306 = vmatprep.subr.mxu0 0.0
    %307 = vmatpush1.msra.mxu0 0.0
    %308 = vmatprep.subr.mxu0 0.0
    %309 = vmatpush1.msra.mxu0 0.0
    %310 = vmatprep.subr.mxu0 0.0
    %311 = vmatpush1.msra.mxu0 0.0
    %312 = vmatprep.subr.mxu0 0.0
    %313 = vmatpush1.msra.mxu0 0.0
    %314 = vmatprep.subr.mxu0 0.0
    %315 = vmatpush1.msra.mxu0 0.0
    %316 = vmatprep.subr.mxu0 0.0
    %317 = vmatpush1.msra.mxu0 0.0
    %318 = vmatprep.subr.mxu0 0.0
    %319 = vmatpush1.msra.mxu0 0.0
    %320 = vmatprep.subr.mxu0 0.0
    %321 = vmatpush1.msra.mxu0 0.0
    %322 = vmatprep.subr.mxu0 0.0
    %323 = vmatpush1.msra.mxu0 0.0
    %324 = vmatprep.subr.mxu0 0.0
    %325 = vmatpush1.msra.mxu0 0.0
    %326 = vmatprep.subr.mxu0 0.0
    %327 = vmatpush1.msra.mxu0 0.0
    %328 = vmatprep.subr.mxu0 0.0
    %329 = vmatpush1.msra.mxu0 0.0
    %330 = vmatprep.subr.mxu0 0.0
    %331 = vmatpush1.msra.mxu0 0.0
    %332 = vmatprep.subr.mxu0 0.0
    %333 = vmatpush1.msra.mxu0 0.0
    %334 = vmatprep.subr.mxu0 0.0
    %335 = vmatpush1.msra.mxu0 0.0
    %336 = vmatprep.subr.mxu0 0.0
    %337 = vmatpush1.msra.mxu0 0.0
    %338 = vmatprep.mubr.f32.mxu0 0.0
    %339 = vmatmul.mubr.f32.gmra.mrb[0].mxu0 %v177
    %v340 = vpop.f32.mrb[0].mxu0
    %v341 = vadd.f32 0.0, %v340
    %v342 = vpop.f32.mrb[0].mxu0
    %343 = vdwg.mxu0
    %345 = vrot.lane.b32.xlu0 %v273, 32
    %v346 = vpop.permute.xlu0 %345
    %v347 = vsel %vm175, %v346, 0
    %349 = vmatprep.subr.mxu0 0.0
    %350 = vmatpush1.msra.mxu0 %v160
    %351 = vmatprep.subr.mxu0 0.0
    %352 = vmatpush1.msra.mxu0 %v161
    %353 = vmatprep.subr.mxu0 0.0
    %354 = vmatpush1.msra.mxu0 %v162
    %355 = vmatprep.subr.mxu0 0.0
    %356 = vmatpush1.msra.mxu0 %v163
    %357 = vmatprep.subr.mxu0 0.0
    %358 = vmatpush1.msra.mxu0 0.0
    %359 = vmatprep.subr.mxu0 0.0
    %360 = vmatpush1.msra.mxu0 0.0
    %361 = vmatprep.subr.mxu0 0.0
    %362 = vmatpush1.msra.mxu0 0.0
    %363 = vmatprep.subr.mxu0 0.0
    %364 = vmatpush1.msra.mxu0 0.0
    %365 = vmatprep.subr.mxu0 0.0
    %366 = vmatpush1.msra.mxu0 0.0
    %367 = vmatprep.subr.mxu0 0.0
    %368 = vmatpush1.msra.mxu0 0.0
    %369 = vmatprep.subr.mxu0 0.0
    %370 = vmatpush1.msra.mxu0 0.0
    %371 = vmatprep.subr.mxu0 0.0
    %372 = vmatpush1.msra.mxu0 0.0
    %373 = vmatprep.subr.mxu0 0.0
    %374 = vmatpush1.msra.mxu0 0.0
    %375 = vmatprep.subr.mxu0 0.0
    %376 = vmatpush1.msra.mxu0 0.0
    %377 = vmatprep.subr.mxu0 0.0
    %378 = vmatpush1.msra.mxu0 0.0
    %379 = vmatprep.subr.mxu0 0.0
    %380 = vmatpush1.msra.mxu0 0.0
    %381 = vmatprep.subr.mxu0 0.0
    %382 = vmatpush1.msra.mxu0 0.0
    %383 = vmatprep.subr.mxu0 0.0
    %384 = vmatpush1.msra.mxu0 0.0
    %385 = vmatprep.subr.mxu0 0.0
    %386 = vmatpush1.msra.mxu0 0.0
    %387 = vmatprep.subr.mxu0 0.0
    %388 = vmatpush1.msra.mxu0 0.0
    %389 = vmatprep.subr.mxu0 0.0
    %390 = vmatpush1.msra.mxu0 0.0
    %391 = vmatprep.subr.mxu0 0.0
    %392 = vmatpush1.msra.mxu0 0.0
    %393 = vmatprep.subr.mxu0 0.0
    %394 = vmatpush1.msra.mxu0 0.0
    %395 = vmatprep.subr.mxu0 0.0
    %396 = vmatpush1.msra.mxu0 0.0
    %397 = vmatprep.subr.mxu0 0.0
    %398 = vmatpush1.msra.mxu0 0.0
    %399 = vmatprep.subr.mxu0 0.0
    %400 = vmatpush1.msra.mxu0 0.0
    %401 = vmatprep.subr.mxu0 0.0
    %402 = vmatpush1.msra.mxu0 0.0
    %403 = vmatprep.subr.mxu0 0.0
    %404 = vmatpush1.msra.mxu0 0.0
    %405 = vmatprep.subr.mxu0 0.0
    %406 = vmatpush1.msra.mxu0 0.0
    %407 = vmatprep.subr.mxu0 0.0
    %408 = vmatpush1.msra.mxu0 0.0
    %409 = vmatprep.subr.mxu0 0.0
    %410 = vmatpush1.msra.mxu0 0.0
    %411 = vmatprep.subr.mxu0 0.0
    %412 = vmatpush1.msra.mxu0 0.0
    %413 = vmatprep.mubr.f32.mxu0 0.0
    %414 = vmatmul.mubr.f32.gmra.mrb[0].mxu0 %v347
    %v415 = vpop.f32.mrb[0].mxu0
    %v416 = vadd.f32 %v341, %v415
    %v417 = vpop.f32.mrb[0].mxu0
    %418 = vdwg.mxu0
    %v419 = vadd.f32 %v416, %v173
    %v420 = vxor.u32 %v419, 2147483648
    %v421 = vmul.f32 %v420, 1.442695
    %v422 = vpow.pop %v421
    %v423 = vadd.f32 %v422, 1.0
    %v424 = vrcp.pop %v423
    %v425 = vmul.f32 1.0, %v424
    %v426 = vtanh.pop %v419
    %v427 = vmul.f32 %v425, 0.0
    %429 = vrot.lane.b32.xlu0 %v426, 64
    %v430 = vpop.permute.xlu0 %429
    %v432 = vmul.f32 %v425, %v430
    %434 = vrot.lane.b32.xlu0 %v432, 32
    %v435 = vpop.permute.xlu0 %434
    %v437 = vadd.f32 %v427, %v435
    %v438 = vtanh.pop %v437
    %440 = vrot.lane.b32.xlu0 %v438, 64
    %v441 = vpop.permute.xlu0 %440
    %v443 = vmul.f32 %v425, %v441
    %445 = vrot.lane.b32.xlu0 %v443, 32
    %v446 = vpop.permute.xlu0 %445
    %448 = vst.msk [vmem:[#allocation2] sm:$0xff] %vm175, %v446
    %449 = vmatprep.subr.mxu0 0.0
    %450 = vmatpush1.msra.mxu0 %v156
    %451 = vmatprep.subr.mxu0 0.0
    %452 = vmatpush1.msra.mxu0 %v157
    %453 = vmatprep.subr.mxu0 0.0
    %454 = vmatpush1.msra.mxu0 %v158
    %455 = vmatprep.subr.mxu0 0.0
    %456 = vmatpush1.msra.mxu0 %v159
    %457 = vmatprep.subr.mxu0 0.0
    %458 = vmatpush1.msra.mxu0 0.0
    %459 = vmatprep.subr.mxu0 0.0
    %460 = vmatpush1.msra.mxu0 0.0
    %461 = vmatprep.subr.mxu0 0.0
    %462 = vmatpush1.msra.mxu0 0.0
    %463 = vmatprep.subr.mxu0 0.0
    %464 = vmatpush1.msra.mxu0 0.0
    %465 = vmatprep.subr.mxu0 0.0
    %466 = vmatpush1.msra.mxu0 0.0
    %467 = vmatprep.subr.mxu0 0.0
    %468 = vmatpush1.msra.mxu0 0.0
    %469 = vmatprep.subr.mxu0 0.0
    %470 = vmatpush1.msra.mxu0 0.0
    %471 = vmatprep.subr.mxu0 0.0
    %472 = vmatpush1.msra.mxu0 0.0
    %473 = vmatprep.subr.mxu0 0.0
    %474 = vmatpush1.msra.mxu0 0.0
    %475 = vmatprep.subr.mxu0 0.0
    %476 = vmatpush1.msra.mxu0 0.0
    %477 = vmatprep.subr.mxu0 0.0
    %478 = vmatpush1.msra.mxu0 0.0
    %479 = vmatprep.subr.mxu0 0.0
    %480 = vmatpush1.msra.mxu0 0.0
    %481 = vmatprep.subr.mxu0 0.0
    %482 = vmatpush1.msra.mxu0 0.0
    %483 = vmatprep.subr.mxu0 0.0
    %484 = vmatpush1.msra.mxu0 0.0
    %485 = vmatprep.subr.mxu0 0.0
    %486 = vmatpush1.msra.mxu0 0.0
    %487 = vmatprep.subr.mxu0 0.0
    %488 = vmatpush1.msra.mxu0 0.0
    %489 = vmatprep.subr.mxu0 0.0
    %490 = vmatpush1.msra.mxu0 0.0
    %491 = vmatprep.subr.mxu0 0.0
    %492 = vmatpush1.msra.mxu0 0.0
    %493 = vmatprep.subr.mxu0 0.0
    %494 = vmatpush1.msra.mxu0 0.0
    %495 = vmatprep.subr.mxu0 0.0
    %496 = vmatpush1.msra.mxu0 0.0
    %497 = vmatprep.subr.mxu0 0.0
    %498 = vmatpush1.msra.mxu0 0.0
    %499 = vmatprep.subr.mxu0 0.0
    %500 = vmatpush1.msra.mxu0 0.0
    %501 = vmatprep.subr.mxu0 0.0
    %502 = vmatpush1.msra.mxu0 0.0
    %503 = vmatprep.subr.mxu0 0.0
    %504 = vmatpush1.msra.mxu0 0.0
    %505 = vmatprep.subr.mxu0 0.0
    %506 = vmatpush1.msra.mxu0 0.0
    %507 = vmatprep.subr.mxu0 0.0
    %508 = vmatpush1.msra.mxu0 0.0
    %509 = vmatprep.subr.mxu0 0.0
    %510 = vmatpush1.msra.mxu0 0.0
    %511 = vmatprep.subr.mxu0 0.0
    %512 = vmatpush1.msra.mxu0 0.0
    %513 = vmatprep.mubr.f32.mxu0 0.0
    %514 = vmatmul.mubr.f32.gmra.mrb[0].mxu0 %v347
    %v515 = vpop.f32.mrb[0].mxu0
    %v516 = vadd.f32 0.0, %v515
    %v517 = vpop.f32.mrb[0].mxu0
    %518 = vdwg.mxu0
    %v519 = vadd.f32 %v153, %v516
    %v520 = vxor.u32 %v519, 2147483648
    %v521 = vmul.f32 %v520, 1.442695
    %v522 = vpow.pop %v521
    %v523 = vadd.f32 %v522, 1.0
    %v524 = vrcp.pop %v523
    %v525 = vmul.f32 1.0, %v524
    %v526 = vtanh.pop %v519
    %v527 = vmul.f32 %v525, %v267
    %529 = vrot.lane.b32.xlu0 %v526, 64
    %v530 = vpop.permute.xlu0 %529
    %v532 = vmul.f32 %v525, %v530
    %534 = vrot.lane.b32.xlu0 %v532, 32
    %v535 = vpop.permute.xlu0 %534
    %v537 = vadd.f32 %v527, %v535
    %v538 = vtanh.pop %v537
    %540 = vrot.lane.b32.xlu0 %v538, 64
    %v541 = vpop.permute.xlu0 %540
    %v543 = vmul.f32 %v525, %v541
    %v544 = vsel %vm175, %v446, 0
    %546 = vmatprep.subr.mxu0 0.0
    %547 = vmatpush1.msra.mxu0 %v164
    %548 = vmatprep.subr.mxu0 0.0
    %549 = vmatpush1.msra.mxu0 %v165
    %550 = vmatprep.subr.mxu0 0.0
    %551 = vmatpush1.msra.mxu0 %v166
    %552 = vmatprep.subr.mxu0 0.0
    %553 = vmatpush1.msra.mxu0 %v167
    %554 = vmatprep.subr.mxu0 0.0
    %555 = vmatpush1.msra.mxu0 0.0
    %556 = vmatprep.subr.mxu0 0.0
    %557 = vmatpush1.msra.mxu0 0.0
    %558 = vmatprep.subr.mxu0 0.0
    %559 = vmatpush1.msra.mxu0 0.0
    %560 = vmatprep.subr.mxu0 0.0
    %561 = vmatpush1.msra.mxu0 0.0
    %562 = vmatprep.subr.mxu0 0.0
    %563 = vmatpush1.msra.mxu0 0.0
    %564 = vmatprep.subr.mxu0 0.0
    %565 = vmatpush1.msra.mxu0 0.0
    %566 = vmatprep.subr.mxu0 0.0
    %567 = vmatpush1.msra.mxu0 0.0
    %568 = vmatprep.subr.mxu0 0.0
    %569 = vmatpush1.msra.mxu0 0.0
    %570 = vmatprep.subr.mxu0 0.0
    %571 = vmatpush1.msra.mxu0 0.0
    %572 = vmatprep.subr.mxu0 0.0
    %573 = vmatpush1.msra.mxu0 0.0
    %574 = vmatprep.subr.mxu0 0.0
    %575 = vmatpush1.msra.mxu0 0.0
    %576 = vmatprep.subr.mxu0 0.0
    %577 = vmatpush1.msra.mxu0 0.0
    %578 = vmatprep.subr.mxu0 0.0
    %579 = vmatpush1.msra.mxu0 0.0
    %580 = vmatprep.subr.mxu0 0.0
    %581 = vmatpush1.msra.mxu0 0.0
    %582 = vmatprep.subr.mxu0 0.0
    %583 = vmatpush1.msra.mxu0 0.0
    %584 = vmatprep.subr.mxu0 0.0
    %585 = vmatpush1.msra.mxu0 0.0
    %586 = vmatprep.subr.mxu0 0.0
    %587 = vmatpush1.msra.mxu0 0.0
    %588 = vmatprep.subr.mxu0 0.0
    %589 = vmatpush1.msra.mxu0 0.0
    %590 = vmatprep.subr.mxu0 0.0
    %591 = vmatpush1.msra.mxu0 0.0
    %592 = vmatprep.subr.mxu0 0.0
    %593 = vmatpush1.msra.mxu0 0.0
    %594 = vmatprep.subr.mxu0 0.0
    %595 = vmatpush1.msra.mxu0 0.0
    %596 = vmatprep.subr.mxu0 0.0
    %597 = vmatpush1.msra.mxu0 0.0
    %598 = vmatprep.subr.mxu0 0.0
    %599 = vmatpush1.msra.mxu0 0.0
    %600 = vmatprep.subr.mxu0 0.0
    %601 = vmatpush1.msra.mxu0 0.0
    %602 = vmatprep.subr.mxu0 0.0
    %603 = vmatpush1.msra.mxu0 0.0
    %604 = vmatprep.subr.mxu0 0.0
    %605 = vmatpush1.msra.mxu0 0.0
    %606 = vmatprep.subr.mxu0 0.0
    %607 = vmatpush1.msra.mxu0 0.0
    %608 = vmatprep.subr.mxu0 0.0
    %609 = vmatpush1.msra.mxu0 0.0
    %610 = vmatprep.mubr.f32.mxu0 0.0
    %611 = vmatmul.mubr.f32.gmra.mrb[0].mxu0 %v544
    %v612 = vpop.f32.mrb[0].mxu0
    %v613 = vadd.f32 0.0, %v612
    %v614 = vpop.f32.mrb[0].mxu0
    %615 = vdwg.mxu0
    %617 = vrot.lane.b32.xlu0 %v543, 32
    %v618 = vpop.permute.xlu0 %617
    %v619 = vsel %vm175, %v618, 0
    %621 = vmatprep.subr.mxu0 0.0
    %622 = vmatpush1.msra.mxu0 %v160
    %623 = vmatprep.subr.mxu0 0.0
    %624 = vmatpush1.msra.mxu0 %v161
    %625 = vmatprep.subr.mxu0 0.0
    %626 = vmatpush1.msra.mxu0 %v162
    %627 = vmatprep.subr.mxu0 0.0
    %628 = vmatpush1.msra.mxu0 %v163
    %629 = vmatprep.subr.mxu0 0.0
    %630 = vmatpush1.msra.mxu0 0.0
    %631 = vmatprep.subr.mxu0 0.0
    %632 = vmatpush1.msra.mxu0 0.0
    %633 = vmatprep.subr.mxu0 0.0
    %634 = vmatpush1.msra.mxu0 0.0
    %635 = vmatprep.subr.mxu0 0.0
    %636 = vmatpush1.msra.mxu0 0.0
    %637 = vmatprep.subr.mxu0 0.0
    %638 = vmatpush1.msra.mxu0 0.0
    %639 = vmatprep.subr.mxu0 0.0
    %640 = vmatpush1.msra.mxu0 0.0
    %641 = vmatprep.subr.mxu0 0.0
    %642 = vmatpush1.msra.mxu0 0.0
    %643 = vmatprep.subr.mxu0 0.0
    %644 = vmatpush1.msra.mxu0 0.0
    %645 = vmatprep.subr.mxu0 0.0
    %646 = vmatpush1.msra.mxu0 0.0
    %647 = vmatprep.subr.mxu0 0.0
    %648 = vmatpush1.msra.mxu0 0.0
    %649 = vmatprep.subr.mxu0 0.0
    %650 = vmatpush1.msra.mxu0 0.0
    %651 = vmatprep.subr.mxu0 0.0
    %652 = vmatpush1.msra.mxu0 0.0
    %653 = vmatprep.subr.mxu0 0.0
    %654 = vmatpush1.msra.mxu0 0.0
    %655 = vmatprep.subr.mxu0 0.0
    %656 = vmatpush1.msra.mxu0 0.0
    %657 = vmatprep.subr.mxu0 0.0
    %658 = vmatpush1.msra.mxu0 0.0
    %659 = vmatprep.subr.mxu0 0.0
    %660 = vmatpush1.msra.mxu0 0.0
    %661 = vmatprep.subr.mxu0 0.0
    %662 = vmatpush1.msra.mxu0 0.0
    %663 = vmatprep.subr.mxu0 0.0
    %664 = vmatpush1.msra.mxu0 0.0
    %665 = vmatprep.subr.mxu0 0.0
    %666 = vmatpush1.msra.mxu0 0.0
    %667 = vmatprep.subr.mxu0 0.0
    %668 = vmatpush1.msra.mxu0 0.0
    %669 = vmatprep.subr.mxu0 0.0
    %670 = vmatpush1.msra.mxu0 0.0
    %671 = vmatprep.subr.mxu0 0.0
    %672 = vmatpush1.msra.mxu0 0.0
    %673 = vmatprep.subr.mxu0 0.0
    %674 = vmatpush1.msra.mxu0 0.0
    %675 = vmatprep.subr.mxu0 0.0
    %676 = vmatpush1.msra.mxu0 0.0
    %677 = vmatprep.subr.mxu0 0.0
    %678 = vmatpush1.msra.mxu0 0.0
    %679 = vmatprep.subr.mxu0 0.0
    %680 = vmatpush1.msra.mxu0 0.0
    %681 = vmatprep.subr.mxu0 0.0
    %682 = vmatpush1.msra.mxu0 0.0
    %683 = vmatprep.subr.mxu0 0.0
    %684 = vmatpush1.msra.mxu0 0.0
    %685 = vmatprep.mubr.f32.mxu0 0.0
    %686 = vmatmul.mubr.f32.gmra.mrb[0].mxu0 %v619
    %v687 = vpop.f32.mrb[0].mxu0
    %v688 = vadd.f32 %v613, %v687
    %v689 = vpop.f32.mrb[0].mxu0
    %690 = vdwg.mxu0
    %v691 = vadd.f32 %v688, %v173
    %v692 = vxor.u32 %v691, 2147483648
    %v693 = vmul.f32 %v692, 1.442695
    %v694 = vpow.pop %v693
    %v695 = vadd.f32 %v694, 1.0
    %v696 = vrcp.pop %v695
    %v697 = vmul.f32 1.0, %v696
    %v698 = vtanh.pop %v691
    %v699 = vmul.f32 %v697, %v437
    %701 = vrot.lane.b32.xlu0 %v698, 64
    %v702 = vpop.permute.xlu0 %701
    %v704 = vmul.f32 %v697, %v702
    %706 = vrot.lane.b32.xlu0 %v704, 32
    %v707 = vpop.permute.xlu0 %706
    %v709 = vadd.f32 %v699, %v707
    %v710 = vtanh.pop %v709
    %712 = vrot.lane.b32.xlu0 %v710, 64
    %v713 = vpop.permute.xlu0 %712
    %v715 = vmul.f32 %v697, %v713
    %717 = vrot.lane.b32.xlu0 %v715, 32
    %v718 = vpop.permute.xlu0 %717
    %720 = vst.msk [vmem:[#allocation2 + $0x8] sm:$0xff] %vm175, %v718
    %721 = vmatprep.subr.mxu0 0.0
    %722 = vmatpush1.msra.mxu0 %v156
    %723 = vmatprep.subr.mxu0 0.0
    %724 = vmatpush1.msra.mxu0 %v157
    %725 = vmatprep.subr.mxu0 0.0
    %726 = vmatpush1.msra.mxu0 %v158
    %727 = vmatprep.subr.mxu0 0.0
    %728 = vmatpush1.msra.mxu0 %v159
    %729 = vmatprep.subr.mxu0 0.0
    %730 = vmatpush1.msra.mxu0 0.0
    %731 = vmatprep.subr.mxu0 0.0
    %732 = vmatpush1.msra.mxu0 0.0
    %733 = vmatprep.subr.mxu0 0.0
    %734 = vmatpush1.msra.mxu0 0.0
    %735 = vmatprep.subr.mxu0 0.0
    %736 = vmatpush1.msra.mxu0 0.0
    %737 = vmatprep.subr.mxu0 0.0
    %738 = vmatpush1.msra.mxu0 0.0
    %739 = vmatprep.subr.mxu0 0.0
    %740 = vmatpush1.msra.mxu0 0.0
    %741 = vmatprep.subr.mxu0 0.0
    %742 = vmatpush1.msra.mxu0 0.0
    %743 = vmatprep.subr.mxu0 0.0
    %744 = vmatpush1.msra.mxu0 0.0
    %745 = vmatprep.subr.mxu0 0.0
    %746 = vmatpush1.msra.mxu0 0.0
    %747 = vmatprep.subr.mxu0 0.0
    %748 = vmatpush1.msra.mxu0 0.0
    %749 = vmatprep.subr.mxu0 0.0
    %750 = vmatpush1.msra.mxu0 0.0
    %751 = vmatprep.subr.mxu0 0.0
    %752 = vmatpush1.msra.mxu0 0.0
    %753 = vmatprep.subr.mxu0 0.0
    %754 = vmatpush1.msra.mxu0 0.0
    %755 = vmatprep.subr.mxu0 0.0
    %756 = vmatpush1.msra.mxu0 0.0
    %757 = vmatprep.subr.mxu0 0.0
    %758 = vmatpush1.msra.mxu0 0.0
    %759 = vmatprep.subr.mxu0 0.0
    %760 = vmatpush1.msra.mxu0 0.0
    %761 = vmatprep.subr.mxu0 0.0
    %762 = vmatpush1.msra.mxu0 0.0
    %763 = vmatprep.subr.mxu0 0.0
    %764 = vmatpush1.msra.mxu0 0.0
    %765 = vmatprep.subr.mxu0 0.0
    %766 = vmatpush1.msra.mxu0 0.0
    %767 = vmatprep.subr.mxu0 0.0
    %768 = vmatpush1.msra.mxu0 0.0
    %769 = vmatprep.subr.mxu0 0.0
    %770 = vmatpush1.msra.mxu0 0.0
    %771 = vmatprep.subr.mxu0 0.0
    %772 = vmatpush1.msra.mxu0 0.0
    %773 = vmatprep.subr.mxu0 0.0
    %774 = vmatpush1.msra.mxu0 0.0
    %775 = vmatprep.subr.mxu0 0.0
    %776 = vmatpush1.msra.mxu0 0.0
    %777 = vmatprep.subr.mxu0 0.0
    %778 = vmatpush1.msra.mxu0 0.0
    %779 = vmatprep.subr.mxu0 0.0
    %780 = vmatpush1.msra.mxu0 0.0
    %781 = vmatprep.subr.mxu0 0.0
    %782 = vmatpush1.msra.mxu0 0.0
    %783 = vmatprep.subr.mxu0 0.0
    %784 = vmatpush1.msra.mxu0 0.0
    %785 = vmatprep.mubr.f32.mxu0 0.0
    %786 = vmatmul.mubr.f32.gmra.mrb[0].mxu0 %v619
    %v787 = vpop.f32.mrb[0].mxu0
    %v788 = vadd.f32 0.0, %v787
    %v789 = vpop.f32.mrb[0].mxu0
    %790 = vdwg.mxu0
    %v791 = vadd.f32 %v153, %v788
    %v792 = vxor.u32 %v791, 2147483648
    %v793 = vmul.f32 %v792, 1.442695
    %v794 = vpow.pop %v793
    %v795 = vadd.f32 %v794, 1.0
    %v796 = vrcp.pop %v795
    %v797 = vmul.f32 1.0, %v796
    %v798 = vtanh.pop %v791
    %v799 = vmul.f32 %v797, %v537
    %801 = vrot.lane.b32.xlu0 %v798, 64
    %v802 = vpop.permute.xlu0 %801
    %v804 = vmul.f32 %v797, %v802
    %806 = vrot.lane.b32.xlu0 %v804, 32
    %v807 = vpop.permute.xlu0 %806
    %v809 = vadd.f32 %v799, %v807
    %v810 = vtanh.pop %v809
    %812 = vrot.lane.b32.xlu0 %v810, 64
    %v813 = vpop.permute.xlu0 %812
    %v815 = vmul.f32 %v797, %v813
    %v816 = vsel %vm175, %v718, 0
    %818 = vmatprep.subr.mxu0 0.0
    %819 = vmatpush1.msra.mxu0 %v164
    %820 = vmatprep.subr.mxu0 0.0
    %821 = vmatpush1.msra.mxu0 %v165
    %822 = vmatprep.subr.mxu0 0.0
    %823 = vmatpush1.msra.mxu0 %v166
    %824 = vmatprep.subr.mxu0 0.0
    %825 = vmatpush1.msra.mxu0 %v167
    %826 = vmatprep.subr.mxu0 0.0
    %827 = vmatpush1.msra.mxu0 0.0
    %828 = vmatprep.subr.mxu0 0.0
    %829 = vmatpush1.msra.mxu0 0.0
    %830 = vmatprep.subr.mxu0 0.0
    %831 = vmatpush1.msra.mxu0 0.0
    %832 = vmatprep.subr.mxu0 0.0
    %833 = vmatpush1.msra.mxu0 0.0
    %834 = vmatprep.subr.mxu0 0.0
    %835 = vmatpush1.msra.mxu0 0.0
    %836 = vmatprep.subr.mxu0 0.0
    %837 = vmatpush1.msra.mxu0 0.0
    %838 = vmatprep.subr.mxu0 0.0
    %839 = vmatpush1.msra.mxu0 0.0
    %840 = vmatprep.subr.mxu0 0.0
    %841 = vmatpush1.msra.mxu0 0.0
    %842 = vmatprep.subr.mxu0 0.0
    %843 = vmatpush1.msra.mxu0 0.0
    %844 = vmatprep.subr.mxu0 0.0
    %845 = vmatpush1.msra.mxu0 0.0
    %846 = vmatprep.subr.mxu0 0.0
    %847 = vmatpush1.msra.mxu0 0.0
    %848 = vmatprep.subr.mxu0 0.0
    %849 = vmatpush1.msra.mxu0 0.0
    %850 = vmatprep.subr.mxu0 0.0
    %851 = vmatpush1.msra.mxu0 0.0
    %852 = vmatprep.subr.mxu0 0.0
    %853 = vmatpush1.msra.mxu0 0.0
    %854 = vmatprep.subr.mxu0 0.0
    %855 = vmatpush1.msra.mxu0 0.0
    %856 = vmatprep.subr.mxu0 0.0
    %857 = vmatpush1.msra.mxu0 0.0
    %858 = vmatprep.subr.mxu0 0.0
    %859 = vmatpush1.msra.mxu0 0.0
    %860 = vmatprep.subr.mxu0 0.0
    %861 = vmatpush1.msra.mxu0 0.0
    %862 = vmatprep.subr.mxu0 0.0
    %863 = vmatpush1.msra.mxu0 0.0
    %864 = vmatprep.subr.mxu0 0.0
    %865 = vmatpush1.msra.mxu0 0.0
    %866 = vmatprep.subr.mxu0 0.0
    %867 = vmatpush1.msra.mxu0 0.0
    %868 = vmatprep.subr.mxu0 0.0
    %869 = vmatpush1.msra.mxu0 0.0
    %870 = vmatprep.subr.mxu0 0.0
    %871 = vmatpush1.msra.mxu0 0.0
    %872 = vmatprep.subr.mxu0 0.0
    %873 = vmatpush1.msra.mxu0 0.0
    %874 = vmatprep.subr.mxu0 0.0
    %875 = vmatpush1.msra.mxu0 0.0
    %876 = vmatprep.subr.mxu0 0.0
    %877 = vmatpush1.msra.mxu0 0.0
    %878 = vmatprep.subr.mxu0 0.0
    %879 = vmatpush1.msra.mxu0 0.0
    %880 = vmatprep.subr.mxu0 0.0
    %881 = vmatpush1.msra.mxu0 0.0
    %882 = vmatprep.mubr.f32.mxu0 0.0
    %883 = vmatmul.mubr.f32.gmra.mrb[0].mxu0 %v816
    %v884 = vpop.f32.mrb[0].mxu0
    %v885 = vadd.f32 0.0, %v884
    %v886 = vpop.f32.mrb[0].mxu0
    %887 = vdwg.mxu0
    %889 = vrot.lane.b32.xlu0 %v815, 32
    %v890 = vpop.permute.xlu0 %889
    %v891 = vsel %vm175, %v890, 0
    %893 = vmatprep.subr.mxu0 0.0
    %894 = vmatpush1.msra.mxu0 %v160
    %895 = vmatprep.subr.mxu0 0.0
    %896 = vmatpush1.msra.mxu0 %v161
    %897 = vmatprep.subr.mxu0 0.0
    %898 = vmatpush1.msra.mxu0 %v162
    %899 = vmatprep.subr.mxu0 0.0
    %900 = vmatpush1.msra.mxu0 %v163
    %901 = vmatprep.subr.mxu0 0.0
    %902 = vmatpush1.msra.mxu0 0.0
    %903 = vmatprep.subr.mxu0 0.0
    %904 = vmatpush1.msra.mxu0 0.0
    %905 = vmatprep.subr.mxu0 0.0
    %906 = vmatpush1.msra.mxu0 0.0
    %907 = vmatprep.subr.mxu0 0.0
    %908 = vmatpush1.msra.mxu0 0.0
    %909 = vmatprep.subr.mxu0 0.0
    %910 = vmatpush1.msra.mxu0 0.0
    %911 = vmatprep.subr.mxu0 0.0
    %912 = vmatpush1.msra.mxu0 0.0
    %913 = vmatprep.subr.mxu0 0.0
    %914 = vmatpush1.msra.mxu0 0.0
    %915 = vmatprep.subr.mxu0 0.0
    %916 = vmatpush1.msra.mxu0 0.0
    %917 = vmatprep.subr.mxu0 0.0
    %918 = vmatpush1.msra.mxu0 0.0
    %919 = vmatprep.subr.mxu0 0.0
    %920 = vmatpush1.msra.mxu0 0.0
    %921 = vmatprep.subr.mxu0 0.0
    %922 = vmatpush1.msra.mxu0 0.0
    %923 = vmatprep.subr.mxu0 0.0
    %924 = vmatpush1.msra.mxu0 0.0
    %925 = vmatprep.subr.mxu0 0.0
    %926 = vmatpush1.msra.mxu0 0.0
    %927 = vmatprep.subr.mxu0 0.0
    %928 = vmatpush1.msra.mxu0 0.0
    %929 = vmatprep.subr.mxu0 0.0
    %930 = vmatpush1.msra.mxu0 0.0
    %931 = vmatprep.subr.mxu0 0.0
    %932 = vmatpush1.msra.mxu0 0.0
    %933 = vmatprep.subr.mxu0 0.0
    %934 = vmatpush1.msra.mxu0 0.0
    %935 = vmatprep.subr.mxu0 0.0
    %936 = vmatpush1.msra.mxu0 0.0
    %937 = vmatprep.subr.mxu0 0.0
    %938 = vmatpush1.msra.mxu0 0.0
    %939 = vmatprep.subr.mxu0 0.0
    %940 = vmatpush1.msra.mxu0 0.0
    %941 = vmatprep.subr.mxu0 0.0
    %942 = vmatpush1.msra.mxu0 0.0
    %943 = vmatprep.subr.mxu0 0.0
    %944 = vmatpush1.msra.mxu0 0.0
    %945 = vmatprep.subr.mxu0 0.0
    %946 = vmatpush1.msra.mxu0 0.0
    %947 = vmatprep.subr.mxu0 0.0
    %948 = vmatpush1.msra.mxu0 0.0
    %949 = vmatprep.subr.mxu0 0.0
    %950 = vmatpush1.msra.mxu0 0.0
    %951 = vmatprep.subr.mxu0 0.0
    %952 = vmatpush1.msra.mxu0 0.0
    %953 = vmatprep.subr.mxu0 0.0
    %954 = vmatpush1.msra.mxu0 0.0
    %955 = vmatprep.subr.mxu0 0.0
    %956 = vmatpush1.msra.mxu0 0.0
    %957 = vmatprep.mubr.f32.mxu0 0.0
    %958 = vmatmul.mubr.f32.gmra.mrb[0].mxu0 %v891
    %v959 = vpop.f32.mrb[0].mxu0
    %v960 = vadd.f32 %v885, %v959
    %v961 = vpop.f32.mrb[0].mxu0
    %962 = vdwg.mxu0
    %v963 = vadd.f32 %v960, %v173
    %v964 = vxor.u32 %v963, 2147483648
    %v965 = vmul.f32 %v964, 1.442695
    %v966 = vpow.pop %v965
    %v967 = vadd.f32 %v966, 1.0
    %v968 = vrcp.pop %v967
    %v969 = vmul.f32 1.0, %v968
    %v970 = vtanh.pop %v963
    %v971 = vmul.f32 %v969, %v709
    %973 = vrot.lane.b32.xlu0 %v970, 64
    %v974 = vpop.permute.xlu0 %973
    %v976 = vmul.f32 %v969, %v974
    %978 = vrot.lane.b32.xlu0 %v976, 32
    %v979 = vpop.permute.xlu0 %978
    %v981 = vadd.f32 %v971, %v979
    %v982 = vtanh.pop %v981
    %984 = vrot.lane.b32.xlu0 %v982, 64
    %v985 = vpop.permute.xlu0 %984
    %v987 = vmul.f32 %v969, %v985
    %989 = vrot.lane.b32.xlu0 %v987, 32
    %v990 = vpop.permute.xlu0 %989
    %992 = vst.msk [vmem:[#allocation2 + $0x10] sm:$0xff] %vm175, %v990
    %993 = vmatprep.subr.mxu0 0.0
    %994 = vmatpush1.msra.mxu0 %v156
    %995 = vmatprep.subr.mxu0 0.0
    %996 = vmatpush1.msra.mxu0 %v157
    %997 = vmatprep.subr.mxu0 0.0
    %998 = vmatpush1.msra.mxu0 %v158
    %999 = vmatprep.subr.mxu0 0.0
    %1000 = vmatpush1.msra.mxu0 %v159
    %1001 = vmatprep.subr.mxu0 0.0
    %1002 = vmatpush1.msra.mxu0 0.0
    %1003 = vmatprep.subr.mxu0 0.0
    %1004 = vmatpush1.msra.mxu0 0.0
    %1005 = vmatprep.subr.mxu0 0.0
    %1006 = vmatpush1.msra.mxu0 0.0
    %1007 = vmatprep.subr.mxu0 0.0
    %1008 = vmatpush1.msra.mxu0 0.0
    %1009 = vmatprep.subr.mxu0 0.0
    %1010 = vmatpush1.msra.mxu0 0.0
    %1011 = vmatprep.subr.mxu0 0.0
    %1012 = vmatpush1.msra.mxu0 0.0
    %1013 = vmatprep.subr.mxu0 0.0
    %1014 = vmatpush1.msra.mxu0 0.0
    %1015 = vmatprep.subr.mxu0 0.0
    %1016 = vmatpush1.msra.mxu0 0.0
    %1017 = vmatprep.subr.mxu0 0.0
    %1018 = vmatpush1.msra.mxu0 0.0
    %1019 = vmatprep.subr.mxu0 0.0
    %1020 = vmatpush1.msra.mxu0 0.0
    %1021 = vmatprep.subr.mxu0 0.0
    %1022 = vmatpush1.msra.mxu0 0.0
    %1023 = vmatprep.subr.mxu0 0.0
    %1024 = vmatpush1.msra.mxu0 0.0
    %1025 = vmatprep.subr.mxu0 0.0
    %1026 = vmatpush1.msra.mxu0 0.0
    %1027 = vmatprep.subr.mxu0 0.0
    %1028 = vmatpush1.msra.mxu0 0.0
    %1029 = vmatprep.subr.mxu0 0.0
    %1030 = vmatpush1.msra.mxu0 0.0
    %1031 = vmatprep.subr.mxu0 0.0
    %1032 = vmatpush1.msra.mxu0 0.0
    %1033 = vmatprep.subr.mxu0 0.0
    %1034 = vmatpush1.msra.mxu0 0.0
    %1035 = vmatprep.subr.mxu0 0.0
    %1036 = vmatpush1.msra.mxu0 0.0
    %1037 = vmatprep.subr.mxu0 0.0
    %1038 = vmatpush1.msra.mxu0 0.0
    %1039 = vmatprep.subr.mxu0 0.0
    %1040 = vmatpush1.msra.mxu0 0.0
    %1041 = vmatprep.subr.mxu0 0.0
    %1042 = vmatpush1.msra.mxu0 0.0
    %1043 = vmatprep.subr.mxu0 0.0
    %1044 = vmatpush1.msra.mxu0 0.0
    %1045 = vmatprep.subr.mxu0 0.0
    %1046 = vmatpush1.msra.mxu0 0.0
    %1047 = vmatprep.subr.mxu0 0.0
    %1048 = vmatpush1.msra.mxu0 0.0
    %1049 = vmatprep.subr.mxu0 0.0
    %1050 = vmatpush1.msra.mxu0 0.0
    %1051 = vmatprep.subr.mxu0 0.0
    %1052 = vmatpush1.msra.mxu0 0.0
    %1053 = vmatprep.subr.mxu0 0.0
    %1054 = vmatpush1.msra.mxu0 0.0
    %1055 = vmatprep.subr.mxu0 0.0
    %1056 = vmatpush1.msra.mxu0 0.0
    %1057 = vmatprep.mubr.f32.mxu0 0.0
    %1058 = vmatmul.mubr.f32.gmra.mrb[0].mxu0 %v891
    %v1059 = vpop.f32.mrb[0].mxu0
    %v1060 = vadd.f32 0.0, %v1059
    %v1061 = vpop.f32.mrb[0].mxu0
    %1062 = vdwg.mxu0
    %v1063 = vadd.f32 %v153, %v1060
    %v1064 = vxor.u32 %v1063, 2147483648
    %v1065 = vmul.f32 %v1064, 1.442695
    %v1066 = vpow.pop %v1065
    %v1067 = vadd.f32 %v1066, 1.0
    %v1068 = vrcp.pop %v1067
    %v1069 = vmul.f32 1.0, %v1068
    %v1070 = vtanh.pop %v1063
    %v1071 = vmul.f32 %v1069, %v809
    %1073 = vrot.lane.b32.xlu0 %v1070, 64
    %v1074 = vpop.permute.xlu0 %1073
    %v1076 = vmul.f32 %v1069, %v1074
    %1078 = vrot.lane.b32.xlu0 %v1076, 32
    %v1079 = vpop.permute.xlu0 %1078
    %v1081 = vadd.f32 %v1071, %v1079
    %v1082 = vtanh.pop %v1081
    %1084 = vrot.lane.b32.xlu0 %v1082, 64
    %v1085 = vpop.permute.xlu0 %1084
    %v1087 = vmul.f32 %v1069, %v1085
    %v1088 = vsel %vm175, %v990, 0
    %1090 = vmatprep.subr.mxu0 0.0
    %1091 = vmatpush1.msra.mxu0 %v164
    %1092 = vmatprep.subr.mxu0 0.0
    %1093 = vmatpush1.msra.mxu0 %v165
    %1094 = vmatprep.subr.mxu0 0.0
    %1095 = vmatpush1.msra.mxu0 %v166
    %1096 = vmatprep.subr.mxu0 0.0
    %1097 = vmatpush1.msra.mxu0 %v167
    %1098 = vmatprep.subr.mxu0 0.0
    %1099 = vmatpush1.msra.mxu0 0.0
    %1100 = vmatprep.subr.mxu0 0.0
    %1101 = vmatpush1.msra.mxu0 0.0
    %1102 = vmatprep.subr.mxu0 0.0
    %1103 = vmatpush1.msra.mxu0 0.0
    %1104 = vmatprep.subr.mxu0 0.0
    %1105 = vmatpush1.msra.mxu0 0.0
    %1106 = vmatprep.subr.mxu0 0.0
    %1107 = vmatpush1.msra.mxu0 0.0
    %1108 = vmatprep.subr.mxu0 0.0
    %1109 = vmatpush1.msra.mxu0 0.0
    %1110 = vmatprep.subr.mxu0 0.0
    %1111 = vmatpush1.msra.mxu0 0.0
    %1112 = vmatprep.subr.mxu0 0.0
    %1113 = vmatpush1.msra.mxu0 0.0
    %1114 = vmatprep.subr.mxu0 0.0
    %1115 = vmatpush1.msra.mxu0 0.0
    %1116 = vmatprep.subr.mxu0 0.0
    %1117 = vmatpush1.msra.mxu0 0.0
    %1118 = vmatprep.subr.mxu0 0.0
    %1119 = vmatpush1.msra.mxu0 0.0
    %1120 = vmatprep.subr.mxu0 0.0
    %1121 = vmatpush1.msra.mxu0 0.0
    %1122 = vmatprep.subr.mxu0 0.0
    %1123 = vmatpush1.msra.mxu0 0.0
    %1124 = vmatprep.subr.mxu0 0.0
    %1125 = vmatpush1.msra.mxu0 0.0
    %1126 = vmatprep.subr.mxu0 0.0
    %1127 = vmatpush1.msra.mxu0 0.0
    %1128 = vmatprep.subr.mxu0 0.0
    %1129 = vmatpush1.msra.mxu0 0.0
    %1130 = vmatprep.subr.mxu0 0.0
    %1131 = vmatpush1.msra.mxu0 0.0
    %1132 = vmatprep.subr.mxu0 0.0
    %1133 = vmatpush1.msra.mxu0 0.0
    %1134 = vmatprep.subr.mxu0 0.0
    %1135 = vmatpush1.msra.mxu0 0.0
    %1136 = vmatprep.subr.mxu0 0.0
    %1137 = vmatpush1.msra.mxu0 0.0
    %1138 = vmatprep.subr.mxu0 0.0
    %1139 = vmatpush1.msra.mxu0 0.0
    %1140 = vmatprep.subr.mxu0 0.0
    %1141 = vmatpush1.msra.mxu0 0.0
    %1142 = vmatprep.subr.mxu0 0.0
    %1143 = vmatpush1.msra.mxu0 0.0
    %1144 = vmatprep.subr.mxu0 0.0
    %1145 = vmatpush1.msra.mxu0 0.0
    %1146 = vmatprep.subr.mxu0 0.0
    %1147 = vmatpush1.msra.mxu0 0.0
    %1148 = vmatprep.subr.mxu0 0.0
    %1149 = vmatpush1.msra.mxu0 0.0
    %1150 = vmatprep.subr.mxu0 0.0
    %1151 = vmatpush1.msra.mxu0 0.0
    %1152 = vmatprep.subr.mxu0 0.0
    %1153 = vmatpush1.msra.mxu0 0.0
    %1154 = vmatprep.mubr.f32.mxu0 0.0
    %1155 = vmatmul.mubr.f32.gmra.mrb[0].mxu0 %v1088
    %v1156 = vpop.f32.mrb[0].mxu0
    %v1157 = vadd.f32 0.0, %v1156
    %v1158 = vpop.f32.mrb[0].mxu0
    %1159 = vdwg.mxu0
    %1161 = vrot.lane.b32.xlu0 %v1087, 32
    %v1162 = vpop.permute.xlu0 %1161
    %v1163 = vsel %vm175, %v1162, 0
    %1165 = vmatprep.subr.mxu0 0.0
    %1166 = vmatpush1.msra.mxu0 %v160
    %1167 = vmatprep.subr.mxu0 0.0
    %1168 = vmatpush1.msra.mxu0 %v161
    %1169 = vmatprep.subr.mxu0 0.0
    %1170 = vmatpush1.msra.mxu0 %v162
    %1171 = vmatprep.subr.mxu0 0.0
    %1172 = vmatpush1.msra.mxu0 %v163
    %1173 = vmatprep.subr.mxu0 0.0
    %1174 = vmatpush1.msra.mxu0 0.0
    %1175 = vmatprep.subr.mxu0 0.0
    %1176 = vmatpush1.msra.mxu0 0.0
    %1177 = vmatprep.subr.mxu0 0.0
    %1178 = vmatpush1.msra.mxu0 0.0
    %1179 = vmatprep.subr.mxu0 0.0
    %1180 = vmatpush1.msra.mxu0 0.0
    %1181 = vmatprep.subr.mxu0 0.0
    %1182 = vmatpush1.msra.mxu0 0.0
    %1183 = vmatprep.subr.mxu0 0.0
    %1184 = vmatpush1.msra.mxu0 0.0
    %1185 = vmatprep.subr.mxu0 0.0
    %1186 = vmatpush1.msra.mxu0 0.0
    %1187 = vmatprep.subr.mxu0 0.0
    %1188 = vmatpush1.msra.mxu0 0.0
    %1189 = vmatprep.subr.mxu0 0.0
    %1190 = vmatpush1.msra.mxu0 0.0
    %1191 = vmatprep.subr.mxu0 0.0
    %1192 = vmatpush1.msra.mxu0 0.0
    %1193 = vmatprep.subr.mxu0 0.0
    %1194 = vmatpush1.msra.mxu0 0.0
    %1195 = vmatprep.subr.mxu0 0.0
    %1196 = vmatpush1.msra.mxu0 0.0
    %1197 = vmatprep.subr.mxu0 0.0
    %1198 = vmatpush1.msra.mxu0 0.0
    %1199 = vmatprep.subr.mxu0 0.0
    %1200 = vmatpush1.msra.mxu0 0.0
    %1201 = vmatprep.subr.mxu0 0.0
    %1202 = vmatpush1.msra.mxu0 0.0
    %1203 = vmatprep.subr.mxu0 0.0
    %1204 = vmatpush1.msra.mxu0 0.0
    %1205 = vmatprep.subr.mxu0 0.0
    %1206 = vmatpush1.msra.mxu0 0.0
    %1207 = vmatprep.subr.mxu0 0.0
    %1208 = vmatpush1.msra.mxu0 0.0
    %1209 = vmatprep.subr.mxu0 0.0
    %1210 = vmatpush1.msra.mxu0 0.0
    %1211 = vmatprep.subr.mxu0 0.0
    %1212 = vmatpush1.msra.mxu0 0.0
    %1213 = vmatprep.subr.mxu0 0.0
    %1214 = vmatpush1.msra.mxu0 0.0
    %1215 = vmatprep.subr.mxu0 0.0
    %1216 = vmatpush1.msra.mxu0 0.0
    %1217 = vmatprep.subr.mxu0 0.0
    %1218 = vmatpush1.msra.mxu0 0.0
    %1219 = vmatprep.subr.mxu0 0.0
    %1220 = vmatpush1.msra.mxu0 0.0
    %1221 = vmatprep.subr.mxu0 0.0
    %1222 = vmatpush1.msra.mxu0 0.0
    %1223 = vmatprep.subr.mxu0 0.0
    %1224 = vmatpush1.msra.mxu0 0.0
    %1225 = vmatprep.subr.mxu0 0.0
    %1226 = vmatpush1.msra.mxu0 0.0
    %1227 = vmatprep.subr.mxu0 0.0
    %1228 = vmatpush1.msra.mxu0 0.0
    %1229 = vmatprep.mubr.f32.mxu0 0.0
    %1230 = vmatmul.mubr.f32.gmra.mrb[0].mxu0 %v1163
    %v1231 = vpop.f32.mrb[0].mxu0
    %v1232 = vadd.f32 %v1157, %v1231
    %v1233 = vpop.f32.mrb[0].mxu0
    %1234 = vdwg.mxu0
    %v1235 = vadd.f32 %v1232, %v173
    %v1236 = vxor.u32 %v1235, 2147483648
    %v1237 = vmul.f32 %v1236, 1.442695
    %v1238 = vpow.pop %v1237
    %v1239 = vadd.f32 %v1238, 1.0
    %v1240 = vrcp.pop %v1239
    %v1241 = vmul.f32 1.0, %v1240
    %v1242 = vtanh.pop %v1235
    %v1243 = vmul.f32 %v1241, %v981
    %1245 = vrot.lane.b32.xlu0 %v1242, 64
    %v1246 = vpop.permute.xlu0 %1245
    %v1248 = vmul.f32 %v1241, %v1246
    %1250 = vrot.lane.b32.xlu0 %v1248, 32
    %v1251 = vpop.permute.xlu0 %1250
    %v1253 = vadd.f32 %v1243, %v1251
    %v1254 = vtanh.pop %v1253
    %1256 = vrot.lane.b32.xlu0 %v1254, 64
    %v1257 = vpop.permute.xlu0 %1256
    %v1259 = vmul.f32 %v1241, %v1257
    %1261 = vrot.lane.b32.xlu0 %v1259, 32
    %v1262 = vpop.permute.xlu0 %1261
    %1264 = vst.msk [vmem:[#allocation2 + $0x18] sm:$0xff] %vm175, %v1262
    %1265 = vmatprep.subr.mxu0 0.0
    %1266 = vmatpush1.msra.mxu0 %v156
    %1267 = vmatprep.subr.mxu0 0.0
    %1268 = vmatpush1.msra.mxu0 %v157
    %1269 = vmatprep.subr.mxu0 0.0
    %1270 = vmatpush1.msra.mxu0 %v158
    %1271 = vmatprep.subr.mxu0 0.0
    %1272 = vmatpush1.msra.mxu0 %v159
    %1273 = vmatprep.subr.mxu0 0.0
    %1274 = vmatpush1.msra.mxu0 0.0
    %1275 = vmatprep.subr.mxu0 0.0
    %1276 = vmatpush1.msra.mxu0 0.0
    %1277 = vmatprep.subr.mxu0 0.0
    %1278 = vmatpush1.msra.mxu0 0.0
    %1279 = vmatprep.subr.mxu0 0.0
    %1280 = vmatpush1.msra.mxu0 0.0
    %1281 = vmatprep.subr.mxu0 0.0
    %1282 = vmatpush1.msra.mxu0 0.0
    %1283 = vmatprep.subr.mxu0 0.0
    %1284 = vmatpush1.msra.mxu0 0.0
    %1285 = vmatprep.subr.mxu0 0.0
    %1286 = vmatpush1.msra.mxu0 0.0
    %1287 = vmatprep.subr.mxu0 0.0
    %1288 = vmatpush1.msra.mxu0 0.0
    %1289 = vmatprep.subr.mxu0 0.0
    %1290 = vmatpush1.msra.mxu0 0.0
    %1291 = vmatprep.subr.mxu0 0.0
    %1292 = vmatpush1.msra.mxu0 0.0
    %1293 = vmatprep.subr.mxu0 0.0
    %1294 = vmatpush1.msra.mxu0 0.0
    %1295 = vmatprep.subr.mxu0 0.0
    %1296 = vmatpush1.msra.mxu0 0.0
    %1297 = vmatprep.subr.mxu0 0.0
    %1298 = vmatpush1.msra.mxu0 0.0
    %1299 = vmatprep.subr.mxu0 0.0
    %1300 = vmatpush1.msra.mxu0 0.0
    %1301 = vmatprep.subr.mxu0 0.0
    %1302 = vmatpush1.msra.mxu0 0.0
    %1303 = vmatprep.subr.mxu0 0.0
    %1304 = vmatpush1.msra.mxu0 0.0
    %1305 = vmatprep.subr.mxu0 0.0
    %1306 = vmatpush1.msra.mxu0 0.0
    %1307 = vmatprep.subr.mxu0 0.0
    %1308 = vmatpush1.msra.mxu0 0.0
    %1309 = vmatprep.subr.mxu0 0.0
    %1310 = vmatpush1.msra.mxu0 0.0
    %1311 = vmatprep.subr.mxu0 0.0
    %1312 = vmatpush1.msra.mxu0 0.0
    %1313 = vmatprep.subr.mxu0 0.0
    %1314 = vmatpush1.msra.mxu0 0.0
    %1315 = vmatprep.subr.mxu0 0.0
    %1316 = vmatpush1.msra.mxu0 0.0
    %1317 = vmatprep.subr.mxu0 0.0
    %1318 = vmatpush1.msra.mxu0 0.0
    %1319 = vmatprep.subr.mxu0 0.0
    %1320 = vmatpush1.msra.mxu0 0.0
    %1321 = vmatprep.subr.mxu0 0.0
    %1322 = vmatpush1.msra.mxu0 0.0
    %1323 = vmatprep.subr.mxu0 0.0
    %1324 = vmatpush1.msra.mxu0 0.0
    %1325 = vmatprep.subr.mxu0 0.0
    %1326 = vmatpush1.msra.mxu0 0.0
    %1327 = vmatprep.subr.mxu0 0.0
    %1328 = vmatpush1.msra.mxu0 0.0
    %1329 = vmatprep.mubr.f32.mxu0 0.0
    %1330 = vmatmul.mubr.f32.gmra.mrb[0].mxu0 %v1163
    %v1331 = vpop.f32.mrb[0].mxu0
    %v1332 = vadd.f32 0.0, %v1331
    %v1333 = vpop.f32.mrb[0].mxu0
    %1334 = vdwg.mxu0
    %v1335 = vadd.f32 %v153, %v1332
    %v1336 = vxor.u32 %v1335, 2147483648
    %v1337 = vmul.f32 %v1336, 1.442695
    %v1338 = vpow.pop %v1337
    %v1339 = vadd.f32 %v1338, 1.0
    %v1340 = vrcp.pop %v1339
    %v1341 = vmul.f32 1.0, %v1340
    %v1342 = vtanh.pop %v1335
    %v1343 = vmul.f32 %v1341, %v1081
    %1345 = vrot.lane.b32.xlu0 %v1342, 64
    %v1346 = vpop.permute.xlu0 %1345
    %v1348 = vmul.f32 %v1341, %v1346
    %1350 = vrot.lane.b32.xlu0 %v1348, 32
    %v1351 = vpop.permute.xlu0 %1350
    %v1353 = vadd.f32 %v1343, %v1351
    %v1354 = vtanh.pop %v1353
    %1356 = vrot.lane.b32.xlu0 %v1354, 64
    %v1357 = vpop.permute.xlu0 %1356
    %v1359 = vmul.f32 %v1341, %v1357
    %v1360 = vsel %vm175, %v1262, 0
    %1362 = vmatprep.subr.mxu0 0.0
    %1363 = vmatpush1.msra.mxu0 %v164
    %1364 = vmatprep.subr.mxu0 0.0
    %1365 = vmatpush1.msra.mxu0 %v165
    %1366 = vmatprep.subr.mxu0 0.0
    %1367 = vmatpush1.msra.mxu0 %v166
    %1368 = vmatprep.subr.mxu0 0.0
    %1369 = vmatpush1.msra.mxu0 %v167
    %1370 = vmatprep.subr.mxu0 0.0
    %1371 = vmatpush1.msra.mxu0 0.0
    %1372 = vmatprep.subr.mxu0 0.0
    %1373 = vmatpush1.msra.mxu0 0.0
    %1374 = vmatprep.subr.mxu0 0.0
    %1375 = vmatpush1.msra.mxu0 0.0
    %1376 = vmatprep.subr.mxu0 0.0
    %1377 = vmatpush1.msra.mxu0 0.0
    %1378 = vmatprep.subr.mxu0 0.0
    %1379 = vmatpush1.msra.mxu0 0.0
    %1380 = vmatprep.subr.mxu0 0.0
    %1381 = vmatpush1.msra.mxu0 0.0
    %1382 = vmatprep.subr.mxu0 0.0
    %1383 = vmatpush1.msra.mxu0 0.0
    %1384 = vmatprep.subr.mxu0 0.0
    %1385 = vmatpush1.msra.mxu0 0.0
    %1386 = vmatprep.subr.mxu0 0.0
    %1387 = vmatpush1.msra.mxu0 0.0
    %1388 = vmatprep.subr.mxu0 0.0
    %1389 = vmatpush1.msra.mxu0 0.0
    %1390 = vmatprep.subr.mxu0 0.0
    %1391 = vmatpush1.msra.mxu0 0.0
    %1392 = vmatprep.subr.mxu0 0.0
    %1393 = vmatpush1.msra.mxu0 0.0
    %1394 = vmatprep.subr.mxu0 0.0
    %1395 = vmatpush1.msra.mxu0 0.0
    %1396 = vmatprep.subr.mxu0 0.0
    %1397 = vmatpush1.msra.mxu0 0.0
    %1398 = vmatprep.subr.mxu0 0.0
    %1399 = vmatpush1.msra.mxu0 0.0
    %1400 = vmatprep.subr.mxu0 0.0
    %1401 = vmatpush1.msra.mxu0 0.0
    %1402 = vmatprep.subr.mxu0 0.0
    %1403 = vmatpush1.msra.mxu0 0.0
    %1404 = vmatprep.subr.mxu0 0.0
    %1405 = vmatpush1.msra.mxu0 0.0
    %1406 = vmatprep.subr.mxu0 0.0
    %1407 = vmatpush1.msra.mxu0 0.0
    %1408 = vmatprep.subr.mxu0 0.0
    %1409 = vmatpush1.msra.mxu0 0.0
    %1410 = vmatprep.subr.mxu0 0.0
    %1411 = vmatpush1.msra.mxu0 0.0
    %1412 = vmatprep.subr.mxu0 0.0
    %1413 = vmatpush1.msra.mxu0 0.0
    %1414 = vmatprep.subr.mxu0 0.0
    %1415 = vmatpush1.msra.mxu0 0.0
    %1416 = vmatprep.subr.mxu0 0.0
    %1417 = vmatpush1.msra.mxu0 0.0
    %1418 = vmatprep.subr.mxu0 0.0
    %1419 = vmatpush1.msra.mxu0 0.0
    %1420 = vmatprep.subr.mxu0 0.0
    %1421 = vmatpush1.msra.mxu0 0.0
    %1422 = vmatprep.subr.mxu0 0.0
    %1423 = vmatpush1.msra.mxu0 0.0
    %1424 = vmatprep.subr.mxu0 0.0
    %1425 = vmatpush1.msra.mxu0 0.0
    %1426 = vmatprep.mubr.f32.mxu0 0.0
    %1427 = vmatmul.mubr.f32.gmra.mrb[0].mxu0 %v1360
    %v1428 = vpop.f32.mrb[0].mxu0
    %v1429 = vadd.f32 0.0, %v1428
    %v1430 = vpop.f32.mrb[0].mxu0
    %1431 = vdwg.mxu0
    %1433 = vrot.lane.b32.xlu0 %v1359, 32
    %v1434 = vpop.permute.xlu0 %1433
    %v1435 = vsel %vm175, %v1434, 0
    %1437 = vmatprep.subr.mxu0 0.0
    %1438 = vmatpush1.msra.mxu0 %v160
    %1439 = vmatprep.subr.mxu0 0.0
    %1440 = vmatpush1.msra.mxu0 %v161
    %1441 = vmatprep.subr.mxu0 0.0
    %1442 = vmatpush1.msra.mxu0 %v162
    %1443 = vmatprep.subr.mxu0 0.0
    %1444 = vmatpush1.msra.mxu0 %v163
    %1445 = vmatprep.subr.mxu0 0.0
    %1446 = vmatpush1.msra.mxu0 0.0
    %1447 = vmatprep.subr.mxu0 0.0
    %1448 = vmatpush1.msra.mxu0 0.0
    %1449 = vmatprep.subr.mxu0 0.0
    %1450 = vmatpush1.msra.mxu0 0.0
    %1451 = vmatprep.subr.mxu0 0.0
    %1452 = vmatpush1.msra.mxu0 0.0
    %1453 = vmatprep.subr.mxu0 0.0
    %1454 = vmatpush1.msra.mxu0 0.0
    %1455 = vmatprep.subr.mxu0 0.0
    %1456 = vmatpush1.msra.mxu0 0.0
    %1457 = vmatprep.subr.mxu0 0.0
    %1458 = vmatpush1.msra.mxu0 0.0
    %1459 = vmatprep.subr.mxu0 0.0
    %1460 = vmatpush1.msra.mxu0 0.0
    %1461 = vmatprep.subr.mxu0 0.0
    %1462 = vmatpush1.msra.mxu0 0.0
    %1463 = vmatprep.subr.mxu0 0.0
    %1464 = vmatpush1.msra.mxu0 0.0
    %1465 = vmatprep.subr.mxu0 0.0
    %1466 = vmatpush1.msra.mxu0 0.0
    %1467 = vmatprep.subr.mxu0 0.0
    %1468 = vmatpush1.msra.mxu0 0.0
    %1469 = vmatprep.subr.mxu0 0.0
    %1470 = vmatpush1.msra.mxu0 0.0
    %1471 = vmatprep.subr.mxu0 0.0
    %1472 = vmatpush1.msra.mxu0 0.0
    %1473 = vmatprep.subr.mxu0 0.0
    %1474 = vmatpush1.msra.mxu0 0.0
    %1475 = vmatprep.subr.mxu0 0.0
    %1476 = vmatpush1.msra.mxu0 0.0
    %1477 = vmatprep.subr.mxu0 0.0
    %1478 = vmatpush1.msra.mxu0 0.0
    %1479 = vmatprep.subr.mxu0 0.0
    %1480 = vmatpush1.msra.mxu0 0.0
    %1481 = vmatprep.subr.mxu0 0.0
    %1482 = vmatpush1.msra.mxu0 0.0
    %1483 = vmatprep.subr.mxu0 0.0
    %1484 = vmatpush1.msra.mxu0 0.0
    %1485 = vmatprep.subr.mxu0 0.0
    %1486 = vmatpush1.msra.mxu0 0.0
    %1487 = vmatprep.subr.mxu0 0.0
    %1488 = vmatpush1.msra.mxu0 0.0
    %1489 = vmatprep.subr.mxu0 0.0
    %1490 = vmatpush1.msra.mxu0 0.0
    %1491 = vmatprep.subr.mxu0 0.0
    %1492 = vmatpush1.msra.mxu0 0.0
    %1493 = vmatprep.subr.mxu0 0.0
    %1494 = vmatpush1.msra.mxu0 0.0
    %1495 = vmatprep.subr.mxu0 0.0
    %1496 = vmatpush1.msra.mxu0 0.0
    %1497 = vmatprep.subr.mxu0 0.0
    %1498 = vmatpush1.msra.mxu0 0.0
    %1499 = vmatprep.subr.mxu0 0.0
    %1500 = vmatpush1.msra.mxu0 0.0
    %1501 = vmatprep.mubr.f32.mxu0 0.0
    %1502 = vmatmul.mubr.f32.gmra.mrb[0].mxu0 %v1435
    %v1503 = vpop.f32.mrb[0].mxu0
    %v1504 = vadd.f32 %v1429, %v1503
    %v1505 = vpop.f32.mrb[0].mxu0
    %1506 = vdwg.mxu0
    %v1507 = vadd.f32 %v1504, %v173
    %v1508 = vxor.u32 %v1507, 2147483648
    %v1509 = vmul.f32 %v1508, 1.442695
    %v1510 = vpow.pop %v1509
    %v1511 = vadd.f32 %v1510, 1.0
    %v1512 = vrcp.pop %v1511
    %v1513 = vmul.f32 1.0, %v1512
    %v1514 = vtanh.pop %v1507
    %v1515 = vmul.f32 %v1513, %v1253
    %1517 = vrot.lane.b32.xlu0 %v1514, 64
    %v1518 = vpop.permute.xlu0 %1517
    %v1520 = vmul.f32 %v1513, %v1518
    %1522 = vrot.lane.b32.xlu0 %v1520, 32
    %v1523 = vpop.permute.xlu0 %1522
    %v1525 = vadd.f32 %v1515, %v1523
    %v1526 = vtanh.pop %v1525
    %1528 = vrot.lane.b32.xlu0 %v1526, 64
    %v1529 = vpop.permute.xlu0 %1528
    %v1531 = vmul.f32 %v1513, %v1529
    %1533 = vrot.lane.b32.xlu0 %v1531, 32
    %v1534 = vpop.permute.xlu0 %1533
    %1536 = vst.msk [vmem:[#allocation2 + $0x20] sm:$0xff] %vm175, %v1534
    %1537 = vmatprep.subr.mxu0 0.0
    %1538 = vmatpush1.msra.mxu0 %v156
    %1539 = vmatprep.subr.mxu0 0.0
    %1540 = vmatpush1.msra.mxu0 %v157
    %1541 = vmatprep.subr.mxu0 0.0
    %1542 = vmatpush1.msra.mxu0 %v158
    %1543 = vmatprep.subr.mxu0 0.0
    %1544 = vmatpush1.msra.mxu0 %v159
    %1545 = vmatprep.subr.mxu0 0.0
    %1546 = vmatpush1.msra.mxu0 0.0
    %1547 = vmatprep.subr.mxu0 0.0
    %1548 = vmatpush1.msra.mxu0 0.0
    %1549 = vmatprep.subr.mxu0 0.0
    %1550 = vmatpush1.msra.mxu0 0.0
    %1551 = vmatprep.subr.mxu0 0.0
    %1552 = vmatpush1.msra.mxu0 0.0
    %1553 = vmatprep.subr.mxu0 0.0
    %1554 = vmatpush1.msra.mxu0 0.0
    %1555 = vmatprep.subr.mxu0 0.0
    %1556 = vmatpush1.msra.mxu0 0.0
    %1557 = vmatprep.subr.mxu0 0.0
    %1558 = vmatpush1.msra.mxu0 0.0
    %1559 = vmatprep.subr.mxu0 0.0
    %1560 = vmatpush1.msra.mxu0 0.0
    %1561 = vmatprep.subr.mxu0 0.0
    %1562 = vmatpush1.msra.mxu0 0.0
    %1563 = vmatprep.subr.mxu0 0.0
    %1564 = vmatpush1.msra.mxu0 0.0
    %1565 = vmatprep.subr.mxu0 0.0
    %1566 = vmatpush1.msra.mxu0 0.0
    %1567 = vmatprep.subr.mxu0 0.0
    %1568 = vmatpush1.msra.mxu0 0.0
    %1569 = vmatprep.subr.mxu0 0.0
    %1570 = vmatpush1.msra.mxu0 0.0
    %1571 = vmatprep.subr.mxu0 0.0
    %1572 = vmatpush1.msra.mxu0 0.0
    %1573 = vmatprep.subr.mxu0 0.0
    %1574 = vmatpush1.msra.mxu0 0.0
    %1575 = vmatprep.subr.mxu0 0.0
    %1576 = vmatpush1.msra.mxu0 0.0
    %1577 = vmatprep.subr.mxu0 0.0
    %1578 = vmatpush1.msra.mxu0 0.0
    %1579 = vmatprep.subr.mxu0 0.0
    %1580 = vmatpush1.msra.mxu0 0.0
    %1581 = vmatprep.subr.mxu0 0.0
    %1582 = vmatpush1.msra.mxu0 0.0
    %1583 = vmatprep.subr.mxu0 0.0
    %1584 = vmatpush1.msra.mxu0 0.0
    %1585 = vmatprep.subr.mxu0 0.0
    %1586 = vmatpush1.msra.mxu0 0.0
    %1587 = vmatprep.subr.mxu0 0.0
    %1588 = vmatpush1.msra.mxu0 0.0
    %1589 = vmatprep.subr.mxu0 0.0
    %1590 = vmatpush1.msra.mxu0 0.0
    %1591 = vmatprep.subr.mxu0 0.0
    %1592 = vmatpush1.msra.mxu0 0.0
    %1593 = vmatprep.subr.mxu0 0.0
    %1594 = vmatpush1.msra.mxu0 0.0
    %1595 = vmatprep.subr.mxu0 0.0
    %1596 = vmatpush1.msra.mxu0 0.0
    %1597 = vmatprep.subr.mxu0 0.0
    %1598 = vmatpush1.msra.mxu0 0.0
    %1599 = vmatprep.subr.mxu0 0.0
    %1600 = vmatpush1.msra.mxu0 0.0
    %1601 = vmatprep.mubr.f32.mxu0 0.0
    %1602 = vmatmul.mubr.f32.gmra.mrb[0].mxu0 %v1435
    %v1603 = vpop.f32.mrb[0].mxu0
    %v1604 = vadd.f32 0.0, %v1603
    %v1605 = vpop.f32.mrb[0].mxu0
    %1606 = vdwg.mxu0
    %v1607 = vadd.f32 %v153, %v1604
    %v1608 = vxor.u32 %v1607, 2147483648
    %v1609 = vmul.f32 %v1608, 1.442695
    %v1610 = vpow.pop %v1609
    %v1611 = vadd.f32 %v1610, 1.0
    %v1612 = vrcp.pop %v1611
    %v1613 = vmul.f32 1.0, %v1612
    %v1614 = vtanh.pop %v1607
    %v1615 = vmul.f32 %v1613, %v1353
    %1617 = vrot.lane.b32.xlu0 %v1614, 64
    %v1618 = vpop.permute.xlu0 %1617
    %v1620 = vmul.f32 %v1613, %v1618
    %1622 = vrot.lane.b32.xlu0 %v1620, 32
    %v1623 = vpop.permute.xlu0 %1622
    %v1625 = vadd.f32 %v1615, %v1623
    %v1626 = vtanh.pop %v1625
    %1628 = vrot.lane.b32.xlu0 %v1626, 64
    %v1629 = vpop.permute.xlu0 %1628
    %v1631 = vmul.f32 %v1613, %v1629
    %v1632 = vsel %vm175, %v1534, 0
    %1634 = vmatprep.subr.mxu0 0.0
    %1635 = vmatpush1.msra.mxu0 %v164
    %1636 = vmatprep.subr.mxu0 0.0
    %1637 = vmatpush1.msra.mxu0 %v165
    %1638 = vmatprep.subr.mxu0 0.0
    %1639 = vmatpush1.msra.mxu0 %v166
    %1640 = vmatprep.subr.mxu0 0.0
    %1641 = vmatpush1.msra.mxu0 %v167
    %1642 = vmatprep.subr.mxu0 0.0
    %1643 = vmatpush1.msra.mxu0 0.0
    %1644 = vmatprep.subr.mxu0 0.0
    %1645 = vmatpush1.msra.mxu0 0.0
    %1646 = vmatprep.subr.mxu0 0.0
    %1647 = vmatpush1.msra.mxu0 0.0
    %1648 = vmatprep.subr.mxu0 0.0
    %1649 = vmatpush1.msra.mxu0 0.0
    %1650 = vmatprep.subr.mxu0 0.0
    %1651 = vmatpush1.msra.mxu0 0.0
    %1652 = vmatprep.subr.mxu0 0.0
    %1653 = vmatpush1.msra.mxu0 0.0
    %1654 = vmatprep.subr.mxu0 0.0
    %1655 = vmatpush1.msra.mxu0 0.0
    %1656 = vmatprep.subr.mxu0 0.0
    %1657 = vmatpush1.msra.mxu0 0.0
    %1658 = vmatprep.subr.mxu0 0.0
    %1659 = vmatpush1.msra.mxu0 0.0
    %1660 = vmatprep.subr.mxu0 0.0
    %1661 = vmatpush1.msra.mxu0 0.0
    %1662 = vmatprep.subr.mxu0 0.0
    %1663 = vmatpush1.msra.mxu0 0.0
    %1664 = vmatprep.subr.mxu0 0.0
    %1665 = vmatpush1.msra.mxu0 0.0
    %1666 = vmatprep.subr.mxu0 0.0
    %1667 = vmatpush1.msra.mxu0 0.0
    %1668 = vmatprep.subr.mxu0 0.0
    %1669 = vmatpush1.msra.mxu0 0.0
    %1670 = vmatprep.subr.mxu0 0.0
    %1671 = vmatpush1.msra.mxu0 0.0
    %1672 = vmatprep.subr.mxu0 0.0
    %1673 = vmatpush1.msra.mxu0 0.0
    %1674 = vmatprep.subr.mxu0 0.0
    %1675 = vmatpush1.msra.mxu0 0.0
    %1676 = vmatprep.subr.mxu0 0.0
    %1677 = vmatpush1.msra.mxu0 0.0
    %1678 = vmatprep.subr.mxu0 0.0
    %1679 = vmatpush1.msra.mxu0 0.0
    %1680 = vmatprep.subr.mxu0 0.0
    %1681 = vmatpush1.msra.mxu0 0.0
    %1682 = vmatprep.subr.mxu0 0.0
    %1683 = vmatpush1.msra.mxu0 0.0
    %1684 = vmatprep.subr.mxu0 0.0
    %1685 = vmatpush1.msra.mxu0 0.0
    %1686 = vmatprep.subr.mxu0 0.0
    %1687 = vmatpush1.msra.mxu0 0.0
    %1688 = vmatprep.subr.mxu0 0.0
    %1689 = vmatpush1.msra.mxu0 0.0
    %1690 = vmatprep.subr.mxu0 0.0
    %1691 = vmatpush1.msra.mxu0 0.0
    %1692 = vmatprep.subr.mxu0 0.0
    %1693 = vmatpush1.msra.mxu0 0.0
    %1694 = vmatprep.subr.mxu0 0.0
    %1695 = vmatpush1.msra.mxu0 0.0
    %1696 = vmatprep.subr.mxu0 0.0
    %1697 = vmatpush1.msra.mxu0 0.0
    %1698 = vmatprep.mubr.f32.mxu0 0.0
    %1699 = vmatmul.mubr.f32.gmra.mrb[0].mxu0 %v1632
    %v1700 = vpop.f32.mrb[0].mxu0
    %v1701 = vadd.f32 0.0, %v1700
    %v1702 = vpop.f32.mrb[0].mxu0
    %1703 = vdwg.mxu0
    %1705 = vrot.lane.b32.xlu0 %v1631, 32
    %v1706 = vpop.permute.xlu0 %1705
    %v1707 = vsel %vm175, %v1706, 0
    %1709 = vmatprep.subr.mxu0 0.0
    %1710 = vmatpush1.msra.mxu0 %v160
    %1711 = vmatprep.subr.mxu0 0.0
    %1712 = vmatpush1.msra.mxu0 %v161
    %1713 = vmatprep.subr.mxu0 0.0
    %1714 = vmatpush1.msra.mxu0 %v162
    %1715 = vmatprep.subr.mxu0 0.0
    %1716 = vmatpush1.msra.mxu0 %v163
    %1717 = vmatprep.subr.mxu0 0.0
    %1718 = vmatpush1.msra.mxu0 0.0
    %1719 = vmatprep.subr.mxu0 0.0
    %1720 = vmatpush1.msra.mxu0 0.0
    %1721 = vmatprep.subr.mxu0 0.0
    %1722 = vmatpush1.msra.mxu0 0.0
    %1723 = vmatprep.subr.mxu0 0.0
    %1724 = vmatpush1.msra.mxu0 0.0
    %1725 = vmatprep.subr.mxu0 0.0
    %1726 = vmatpush1.msra.mxu0 0.0
    %1727 = vmatprep.subr.mxu0 0.0
    %1728 = vmatpush1.msra.mxu0 0.0
    %1729 = vmatprep.subr.mxu0 0.0
    %1730 = vmatpush1.msra.mxu0 0.0
    %1731 = vmatprep.subr.mxu0 0.0
    %1732 = vmatpush1.msra.mxu0 0.0
    %1733 = vmatprep.subr.mxu0 0.0
    %1734 = vmatpush1.msra.mxu0 0.0
    %1735 = vmatprep.subr.mxu0 0.0
    %1736 = vmatpush1.msra.mxu0 0.0
    %1737 = vmatprep.subr.mxu0 0.0
    %1738 = vmatpush1.msra.mxu0 0.0
    %1739 = vmatprep.subr.mxu0 0.0
    %1740 = vmatpush1.msra.mxu0 0.0
    %1741 = vmatprep.subr.mxu0 0.0
    %1742 = vmatpush1.msra.mxu0 0.0
    %1743 = vmatprep.subr.mxu0 0.0
    %1744 = vmatpush1.msra.mxu0 0.0
    %1745 = vmatprep.subr.mxu0 0.0
    %1746 = vmatpush1.msra.mxu0 0.0
    %1747 = vmatprep.subr.mxu0 0.0
    %1748 = vmatpush1.msra.mxu0 0.0
    %1749 = vmatprep.subr.mxu0 0.0
    %1750 = vmatpush1.msra.mxu0 0.0
    %1751 = vmatprep.subr.mxu0 0.0
    %1752 = vmatpush1.msra.mxu0 0.0
    %1753 = vmatprep.subr.mxu0 0.0
    %1754 = vmatpush1.msra.mxu0 0.0
    %1755 = vmatprep.subr.mxu0 0.0
    %1756 = vmatpush1.msra.mxu0 0.0
    %1757 = vmatprep.subr.mxu0 0.0
    %1758 = vmatpush1.msra.mxu0 0.0
    %1759 = vmatprep.subr.mxu0 0.0
    %1760 = vmatpush1.msra.mxu0 0.0
    %1761 = vmatprep.subr.mxu0 0.0
    %1762 = vmatpush1.msra.mxu0 0.0
    %1763 = vmatprep.subr.mxu0 0.0
    %1764 = vmatpush1.msra.mxu0 0.0
    %1765 = vmatprep.subr.mxu0 0.0
    %1766 = vmatpush1.msra.mxu0 0.0
    %1767 = vmatprep.subr.mxu0 0.0
    %1768 = vmatpush1.msra.mxu0 0.0
    %1769 = vmatprep.subr.mxu0 0.0
    %1770 = vmatpush1.msra.mxu0 0.0
    %1771 = vmatprep.subr.mxu0 0.0
    %1772 = vmatpush1.msra.mxu0 0.0
    %1773 = vmatprep.mubr.f32.mxu0 0.0
    %1774 = vmatmul.mubr.f32.gmra.mrb[0].mxu0 %v1707
    %v1775 = vpop.f32.mrb[0].mxu0
    %v1776 = vadd.f32 %v1701, %v1775
    %v1777 = vpop.f32.mrb[0].mxu0
    %1778 = vdwg.mxu0
    %v1779 = vadd.f32 %v1776, %v173
    %v1780 = vxor.u32 %v1779, 2147483648
    %v1781 = vmul.f32 %v1780, 1.442695
    %v1782 = vpow.pop %v1781
    %v1783 = vadd.f32 %v1782, 1.0
    %v1784 = vrcp.pop %v1783
    %v1785 = vmul.f32 1.0, %v1784
    %v1786 = vtanh.pop %v1779
    %v1787 = vmul.f32 %v1785, %v1525
    %1789 = vrot.lane.b32.xlu0 %v1786, 64
    %v1790 = vpop.permute.xlu0 %1789
    %v1792 = vmul.f32 %v1785, %v1790
    %1794 = vrot.lane.b32.xlu0 %v1792, 32
    %v1795 = vpop.permute.xlu0 %1794
    %v1797 = vadd.f32 %v1787, %v1795
    %v1798 = vtanh.pop %v1797
    %1800 = vrot.lane.b32.xlu0 %v1798, 64
    %v1801 = vpop.permute.xlu0 %1800
    %v1803 = vmul.f32 %v1785, %v1801
    %1805 = vrot.lane.b32.xlu0 %v1803, 32
    %v1806 = vpop.permute.xlu0 %1805
    %1808 = vst.msk [vmem:[#allocation2 + $0x28] sm:$0xff] %vm175, %v1806
    %1809 = vmatprep.subr.mxu0 0.0
    %1810 = vmatpush1.msra.mxu0 %v156
    %1811 = vmatprep.subr.mxu0 0.0
    %1812 = vmatpush1.msra.mxu0 %v157
    %1813 = vmatprep.subr.mxu0 0.0
    %1814 = vmatpush1.msra.mxu0 %v158
    %1815 = vmatprep.subr.mxu0 0.0
    %1816 = vmatpush1.msra.mxu0 %v159
    %1817 = vmatprep.subr.mxu0 0.0
    %1818 = vmatpush1.msra.mxu0 0.0
    %1819 = vmatprep.subr.mxu0 0.0
    %1820 = vmatpush1.msra.mxu0 0.0
    %1821 = vmatprep.subr.mxu0 0.0
    %1822 = vmatpush1.msra.mxu0 0.0
    %1823 = vmatprep.subr.mxu0 0.0
    %1824 = vmatpush1.msra.mxu0 0.0
    %1825 = vmatprep.subr.mxu0 0.0
    %1826 = vmatpush1.msra.mxu0 0.0
    %1827 = vmatprep.subr.mxu0 0.0
    %1828 = vmatpush1.msra.mxu0 0.0
    %1829 = vmatprep.subr.mxu0 0.0
    %1830 = vmatpush1.msra.mxu0 0.0
    %1831 = vmatprep.subr.mxu0 0.0
    %1832 = vmatpush1.msra.mxu0 0.0
    %1833 = vmatprep.subr.mxu0 0.0
    %1834 = vmatpush1.msra.mxu0 0.0
    %1835 = vmatprep.subr.mxu0 0.0
    %1836 = vmatpush1.msra.mxu0 0.0
    %1837 = vmatprep.subr.mxu0 0.0
    %1838 = vmatpush1.msra.mxu0 0.0
    %1839 = vmatprep.subr.mxu0 0.0
    %1840 = vmatpush1.msra.mxu0 0.0
    %1841 = vmatprep.subr.mxu0 0.0
    %1842 = vmatpush1.msra.mxu0 0.0
    %1843 = vmatprep.subr.mxu0 0.0
    %1844 = vmatpush1.msra.mxu0 0.0
    %1845 = vmatprep.subr.mxu0 0.0
    %1846 = vmatpush1.msra.mxu0 0.0
    %1847 = vmatprep.subr.mxu0 0.0
    %1848 = vmatpush1.msra.mxu0 0.0
    %1849 = vmatprep.subr.mxu0 0.0
    %1850 = vmatpush1.msra.mxu0 0.0
    %1851 = vmatprep.subr.mxu0 0.0
    %1852 = vmatpush1.msra.mxu0 0.0
    %1853 = vmatprep.subr.mxu0 0.0
    %1854 = vmatpush1.msra.mxu0 0.0
    %1855 = vmatprep.subr.mxu0 0.0
    %1856 = vmatpush1.msra.mxu0 0.0
    %1857 = vmatprep.subr.mxu0 0.0
    %1858 = vmatpush1.msra.mxu0 0.0
    %1859 = vmatprep.subr.mxu0 0.0
    %1860 = vmatpush1.msra.mxu0 0.0
    %1861 = vmatprep.subr.mxu0 0.0
    %1862 = vmatpush1.msra.mxu0 0.0
    %1863 = vmatprep.subr.mxu0 0.0
    %1864 = vmatpush1.msra.mxu0 0.0
    %1865 = vmatprep.subr.mxu0 0.0
    %1866 = vmatpush1.msra.mxu0 0.0
    %1867 = vmatprep.subr.mxu0 0.0
    %1868 = vmatpush1.msra.mxu0 0.0
    %1869 = vmatprep.subr.mxu0 0.0
    %1870 = vmatpush1.msra.mxu0 0.0
    %1871 = vmatprep.subr.mxu0 0.0
    %1872 = vmatpush1.msra.mxu0 0.0
    %1873 = vmatprep.mubr.f32.mxu0 0.0
    %1874 = vmatmul.mubr.f32.gmra.mrb[0].mxu0 %v1707
    %v1875 = vpop.f32.mrb[0].mxu0
    %v1876 = vadd.f32 0.0, %v1875
    %v1877 = vpop.f32.mrb[0].mxu0
    %1878 = vdwg.mxu0
    %v1879 = vadd.f32 %v153, %v1876
    %v1880 = vxor.u32 %v1879, 2147483648
    %v1881 = vmul.f32 %v1880, 1.442695
    %v1882 = vpow.pop %v1881
    %v1883 = vadd.f32 %v1882, 1.0
    %v1884 = vrcp.pop %v1883
    %v1885 = vmul.f32 1.0, %v1884
    %v1886 = vtanh.pop %v1879
    %v1887 = vmul.f32 %v1885, %v1625
    %1889 = vrot.lane.b32.xlu0 %v1886, 64
    %v1890 = vpop.permute.xlu0 %1889
    %v1892 = vmul.f32 %v1885, %v1890
    %1894 = vrot.lane.b32.xlu0 %v1892, 32
    %v1895 = vpop.permute.xlu0 %1894
    %v1897 = vadd.f32 %v1887, %v1895
    %v1898 = vtanh.pop %v1897
    %1900 = vrot.lane.b32.xlu0 %v1898, 64
    %v1901 = vpop.permute.xlu0 %1900
    %v1903 = vmul.f32 %v1885, %v1901
    %v1904 = vsel %vm175, %v1806, 0
    %1906 = vmatprep.subr.mxu0 0.0
    %1907 = vmatpush1.msra.mxu0 %v164
    %1908 = vmatprep.subr.mxu0 0.0
    %1909 = vmatpush1.msra.mxu0 %v165
    %1910 = vmatprep.subr.mxu0 0.0
    %1911 = vmatpush1.msra.mxu0 %v166
    %1912 = vmatprep.subr.mxu0 0.0
    %1913 = vmatpush1.msra.mxu0 %v167
    %1914 = vmatprep.subr.mxu0 0.0
    %1915 = vmatpush1.msra.mxu0 0.0
    %1916 = vmatprep.subr.mxu0 0.0
    %1917 = vmatpush1.msra.mxu0 0.0
    %1918 = vmatprep.subr.mxu0 0.0
    %1919 = vmatpush1.msra.mxu0 0.0
    %1920 = vmatprep.subr.mxu0 0.0
    %1921 = vmatpush1.msra.mxu0 0.0
    %1922 = vmatprep.subr.mxu0 0.0
    %1923 = vmatpush1.msra.mxu0 0.0
    %1924 = vmatprep.subr.mxu0 0.0
    %1925 = vmatpush1.msra.mxu0 0.0
    %1926 = vmatprep.subr.mxu0 0.0
    %1927 = vmatpush1.msra.mxu0 0.0
    %1928 = vmatprep.subr.mxu0 0.0
    %1929 = vmatpush1.msra.mxu0 0.0
    %1930 = vmatprep.subr.mxu0 0.0
    %1931 = vmatpush1.msra.mxu0 0.0
    %1932 = vmatprep.subr.mxu0 0.0
    %1933 = vmatpush1.msra.mxu0 0.0
    %1934 = vmatprep.subr.mxu0 0.0
    %1935 = vmatpush1.msra.mxu0 0.0
    %1936 = vmatprep.subr.mxu0 0.0
    %1937 = vmatpush1.msra.mxu0 0.0
    %1938 = vmatprep.subr.mxu0 0.0
    %1939 = vmatpush1.msra.mxu0 0.0
    %1940 = vmatprep.subr.mxu0 0.0
    %1941 = vmatpush1.msra.mxu0 0.0
    %1942 = vmatprep.subr.mxu0 0.0
    %1943 = vmatpush1.msra.mxu0 0.0
    %1944 = vmatprep.subr.mxu0 0.0
    %1945 = vmatpush1.msra.mxu0 0.0
    %1946 = vmatprep.subr.mxu0 0.0
    %1947 = vmatpush1.msra.mxu0 0.0
    %1948 = vmatprep.subr.mxu0 0.0
    %1949 = vmatpush1.msra.mxu0 0.0
    %1950 = vmatprep.subr.mxu0 0.0
    %1951 = vmatpush1.msra.mxu0 0.0
    %1952 = vmatprep.subr.mxu0 0.0
    %1953 = vmatpush1.msra.mxu0 0.0
    %1954 = vmatprep.subr.mxu0 0.0
    %1955 = vmatpush1.msra.mxu0 0.0
    %1956 = vmatprep.subr.mxu0 0.0
    %1957 = vmatpush1.msra.mxu0 0.0
    %1958 = vmatprep.subr.mxu0 0.0
    %1959 = vmatpush1.msra.mxu0 0.0
    %1960 = vmatprep.subr.mxu0 0.0
    %1961 = vmatpush1.msra.mxu0 0.0
    %1962 = vmatprep.subr.mxu0 0.0
    %1963 = vmatpush1.msra.mxu0 0.0
    %1964 = vmatprep.subr.mxu0 0.0
    %1965 = vmatpush1.msra.mxu0 0.0
    %1966 = vmatprep.subr.mxu0 0.0
    %1967 = vmatpush1.msra.mxu0 0.0
    %1968 = vmatprep.subr.mxu0 0.0
    %1969 = vmatpush1.msra.mxu0 0.0
    %1970 = vmatprep.mubr.f32.mxu0 0.0
    %1971 = vmatmul.mubr.f32.gmra.mrb[0].mxu0 %v1904
    %v1972 = vpop.f32.mrb[0].mxu0
    %v1973 = vadd.f32 0.0, %v1972
    %v1974 = vpop.f32.mrb[0].mxu0
    %1975 = vdwg.mxu0
    %1977 = vrot.lane.b32.xlu0 %v1903, 32
    %v1978 = vpop.permute.xlu0 %1977
    %v1979 = vsel %vm175, %v1978, 0
    %1981 = vmatprep.subr.mxu0 0.0
    %1982 = vmatpush1.msra.mxu0 %v160
    %1983 = vmatprep.subr.mxu0 0.0
    %1984 = vmatpush1.msra.mxu0 %v161
    %1985 = vmatprep.subr.mxu0 0.0
    %1986 = vmatpush1.msra.mxu0 %v162
    %1987 = vmatprep.subr.mxu0 0.0
    %1988 = vmatpush1.msra.mxu0 %v163
    %1989 = vmatprep.subr.mxu0 0.0
    %1990 = vmatpush1.msra.mxu0 0.0
    %1991 = vmatprep.subr.mxu0 0.0
    %1992 = vmatpush1.msra.mxu0 0.0
    %1993 = vmatprep.subr.mxu0 0.0
    %1994 = vmatpush1.msra.mxu0 0.0
    %1995 = vmatprep.subr.mxu0 0.0
    %1996 = vmatpush1.msra.mxu0 0.0
    %1997 = vmatprep.subr.mxu0 0.0
    %1998 = vmatpush1.msra.mxu0 0.0
    %1999 = vmatprep.subr.mxu0 0.0
    %2000 = vmatpush1.msra.mxu0 0.0
    %2001 = vmatprep.subr.mxu0 0.0
    %2002 = vmatpush1.msra.mxu0 0.0
    %2003 = vmatprep.subr.mxu0 0.0
    %2004 = vmatpush1.msra.mxu0 0.0
    %2005 = vmatprep.subr.mxu0 0.0
    %2006 = vmatpush1.msra.mxu0 0.0
    %2007 = vmatprep.subr.mxu0 0.0
    %2008 = vmatpush1.msra.mxu0 0.0
    %2009 = vmatprep.subr.mxu0 0.0
    %2010 = vmatpush1.msra.mxu0 0.0
    %2011 = vmatprep.subr.mxu0 0.0
    %2012 = vmatpush1.msra.mxu0 0.0
    %2013 = vmatprep.subr.mxu0 0.0
    %2014 = vmatpush1.msra.mxu0 0.0
    %2015 = vmatprep.subr.mxu0 0.0
    %2016 = vmatpush1.msra.mxu0 0.0
    %2017 = vmatprep.subr.mxu0 0.0
    %2018 = vmatpush1.msra.mxu0 0.0
    %2019 = vmatprep.subr.mxu0 0.0
    %2020 = vmatpush1.msra.mxu0 0.0
    %2021 = vmatprep.subr.mxu0 0.0
    %2022 = vmatpush1.msra.mxu0 0.0
    %2023 = vmatprep.subr.mxu0 0.0
    %2024 = vmatpush1.msra.mxu0 0.0
    %2025 = vmatprep.subr.mxu0 0.0
    %2026 = vmatpush1.msra.mxu0 0.0
    %2027 = vmatprep.subr.mxu0 0.0
    %2028 = vmatpush1.msra.mxu0 0.0
    %2029 = vmatprep.subr.mxu0 0.0
    %2030 = vmatpush1.msra.mxu0 0.0
    %2031 = vmatprep.subr.mxu0 0.0
    %2032 = vmatpush1.msra.mxu0 0.0
    %2033 = vmatprep.subr.mxu0 0.0
    %2034 = vmatpush1.msra.mxu0 0.0
    %2035 = vmatprep.subr.mxu0 0.0
    %2036 = vmatpush1.msra.mxu0 0.0
    %2037 = vmatprep.subr.mxu0 0.0
    %2038 = vmatpush1.msra.mxu0 0.0
    %2039 = vmatprep.subr.mxu0 0.0
    %2040 = vmatpush1.msra.mxu0 0.0
    %2041 = vmatprep.subr.mxu0 0.0
    %2042 = vmatpush1.msra.mxu0 0.0
    %2043 = vmatprep.subr.mxu0 0.0
    %2044 = vmatpush1.msra.mxu0 0.0
    %2045 = vmatprep.mubr.f32.mxu0 0.0
    %2046 = vmatmul.mubr.f32.gmra.mrb[0].mxu0 %v1979
    %v2047 = vpop.f32.mrb[0].mxu0
    %v2048 = vadd.f32 %v1973, %v2047
    %v2049 = vpop.f32.mrb[0].mxu0
    %2050 = vdwg.mxu0
    %v2051 = vadd.f32 %v2048, %v173
    %v2052 = vxor.u32 %v2051, 2147483648
    %v2053 = vmul.f32 %v2052, 1.442695
    %v2054 = vpow.pop %v2053
    %v2055 = vadd.f32 %v2054, 1.0
    %v2056 = vrcp.pop %v2055
    %v2057 = vmul.f32 1.0, %v2056
    %v2058 = vtanh.pop %v2051
    %v2059 = vmul.f32 %v2057, %v1797
    %2061 = vrot.lane.b32.xlu0 %v2058, 64
    %v2062 = vpop.permute.xlu0 %2061
    %v2064 = vmul.f32 %v2057, %v2062
    %2066 = vrot.lane.b32.xlu0 %v2064, 32
    %v2067 = vpop.permute.xlu0 %2066
    %v2069 = vadd.f32 %v2059, %v2067
    %v2070 = vtanh.pop %v2069
    %2072 = vrot.lane.b32.xlu0 %v2070, 64
    %v2073 = vpop.permute.xlu0 %2072
    %v2075 = vmul.f32 %v2057, %v2073
    %2077 = vrot.lane.b32.xlu0 %v2075, 32
    %v2078 = vpop.permute.xlu0 %2077
    %2080 = vst.msk [vmem:[#allocation2 + $0x30] sm:$0xff] %vm175, %v2078
    %2081 = vmatprep.subr.mxu0 0.0
    %2082 = vmatpush1.msra.mxu0 %v156
    %2083 = vmatprep.subr.mxu0 0.0
    %2084 = vmatpush1.msra.mxu0 %v157
    %2085 = vmatprep.subr.mxu0 0.0
    %2086 = vmatpush1.msra.mxu0 %v158
    %2087 = vmatprep.subr.mxu0 0.0
    %2088 = vmatpush1.msra.mxu0 %v159
    %2089 = vmatprep.subr.mxu0 0.0
    %2090 = vmatpush1.msra.mxu0 0.0
    %2091 = vmatprep.subr.mxu0 0.0
    %2092 = vmatpush1.msra.mxu0 0.0
    %2093 = vmatprep.subr.mxu0 0.0
    %2094 = vmatpush1.msra.mxu0 0.0
    %2095 = vmatprep.subr.mxu0 0.0
    %2096 = vmatpush1.msra.mxu0 0.0
    %2097 = vmatprep.subr.mxu0 0.0
    %2098 = vmatpush1.msra.mxu0 0.0
    %2099 = vmatprep.subr.mxu0 0.0
    %2100 = vmatpush1.msra.mxu0 0.0
    %2101 = vmatprep.subr.mxu0 0.0
    %2102 = vmatpush1.msra.mxu0 0.0
    %2103 = vmatprep.subr.mxu0 0.0
    %2104 = vmatpush1.msra.mxu0 0.0
    %2105 = vmatprep.subr.mxu0 0.0
    %2106 = vmatpush1.msra.mxu0 0.0
    %2107 = vmatprep.subr.mxu0 0.0
    %2108 = vmatpush1.msra.mxu0 0.0
    %2109 = vmatprep.subr.mxu0 0.0
    %2110 = vmatpush1.msra.mxu0 0.0
    %2111 = vmatprep.subr.mxu0 0.0
    %2112 = vmatpush1.msra.mxu0 0.0
    %2113 = vmatprep.subr.mxu0 0.0
    %2114 = vmatpush1.msra.mxu0 0.0
    %2115 = vmatprep.subr.mxu0 0.0
    %2116 = vmatpush1.msra.mxu0 0.0
    %2117 = vmatprep.subr.mxu0 0.0
    %2118 = vmatpush1.msra.mxu0 0.0
    %2119 = vmatprep.subr.mxu0 0.0
    %2120 = vmatpush1.msra.mxu0 0.0
    %2121 = vmatprep.subr.mxu0 0.0
    %2122 = vmatpush1.msra.mxu0 0.0
    %2123 = vmatprep.subr.mxu0 0.0
    %2124 = vmatpush1.msra.mxu0 0.0
    %2125 = vmatprep.subr.mxu0 0.0
    %2126 = vmatpush1.msra.mxu0 0.0
    %2127 = vmatprep.subr.mxu0 0.0
    %2128 = vmatpush1.msra.mxu0 0.0
    %2129 = vmatprep.subr.mxu0 0.0
    %2130 = vmatpush1.msra.mxu0 0.0
    %2131 = vmatprep.subr.mxu0 0.0
    %2132 = vmatpush1.msra.mxu0 0.0
    %2133 = vmatprep.subr.mxu0 0.0
    %2134 = vmatpush1.msra.mxu0 0.0
    %2135 = vmatprep.subr.mxu0 0.0
    %2136 = vmatpush1.msra.mxu0 0.0
    %2137 = vmatprep.subr.mxu0 0.0
    %2138 = vmatpush1.msra.mxu0 0.0
    %2139 = vmatprep.subr.mxu0 0.0
    %2140 = vmatpush1.msra.mxu0 0.0
    %2141 = vmatprep.subr.mxu0 0.0
    %2142 = vmatpush1.msra.mxu0 0.0
    %2143 = vmatprep.subr.mxu0 0.0
    %2144 = vmatpush1.msra.mxu0 0.0
    %2145 = vmatprep.mubr.f32.mxu0 0.0
    %2146 = vmatmul.mubr.f32.gmra.mrb[0].mxu0 %v1979
    %v2147 = vpop.f32.mrb[0].mxu0
    %v2148 = vadd.f32 0.0, %v2147
    %v2149 = vpop.f32.mrb[0].mxu0
    %2150 = vdwg.mxu0
    %v2151 = vadd.f32 %v153, %v2148
    %v2152 = vxor.u32 %v2151, 2147483648
    %v2153 = vmul.f32 %v2152, 1.442695
    %v2154 = vpow.pop %v2153
    %v2155 = vadd.f32 %v2154, 1.0
    %v2156 = vrcp.pop %v2155
    %v2157 = vmul.f32 1.0, %v2156
    %v2158 = vtanh.pop %v2151
    %v2159 = vmul.f32 %v2157, %v1897
    %2161 = vrot.lane.b32.xlu0 %v2158, 64
    %v2162 = vpop.permute.xlu0 %2161
    %v2164 = vmul.f32 %v2157, %v2162
    %2166 = vrot.lane.b32.xlu0 %v2164, 32
    %v2167 = vpop.permute.xlu0 %2166
    %v2169 = vadd.f32 %v2159, %v2167
    %v2170 = vtanh.pop %v2169
    %2172 = vrot.lane.b32.xlu0 %v2170, 64
    %v2173 = vpop.permute.xlu0 %2172
    %v2175 = vmul.f32 %v2157, %v2173
    %v2176 = vsel %vm175, %v2078, 0
    %2178 = vmatprep.subr.mxu0 0.0
    %2179 = vmatpush1.msra.mxu0 %v164
    %2180 = vmatprep.subr.mxu0 0.0
    %2181 = vmatpush1.msra.mxu0 %v165
    %2182 = vmatprep.subr.mxu0 0.0
    %2183 = vmatpush1.msra.mxu0 %v166
    %2184 = vmatprep.subr.mxu0 0.0
    %2185 = vmatpush1.msra.mxu0 %v167
    %2186 = vmatprep.subr.mxu0 0.0
    %2187 = vmatpush1.msra.mxu0 0.0
    %2188 = vmatprep.subr.mxu0 0.0
    %2189 = vmatpush1.msra.mxu0 0.0
    %2190 = vmatprep.subr.mxu0 0.0
    %2191 = vmatpush1.msra.mxu0 0.0
    %2192 = vmatprep.subr.mxu0 0.0
    %2193 = vmatpush1.msra.mxu0 0.0
    %2194 = vmatprep.subr.mxu0 0.0
    %2195 = vmatpush1.msra.mxu0 0.0
    %2196 = vmatprep.subr.mxu0 0.0
    %2197 = vmatpush1.msra.mxu0 0.0
    %2198 = vmatprep.subr.mxu0 0.0
    %2199 = vmatpush1.msra.mxu0 0.0
    %2200 = vmatprep.subr.mxu0 0.0
    %2201 = vmatpush1.msra.mxu0 0.0
    %2202 = vmatprep.subr.mxu0 0.0
    %2203 = vmatpush1.msra.mxu0 0.0
    %2204 = vmatprep.subr.mxu0 0.0
    %2205 = vmatpush1.msra.mxu0 0.0
    %2206 = vmatprep.subr.mxu0 0.0
    %2207 = vmatpush1.msra.mxu0 0.0
    %2208 = vmatprep.subr.mxu0 0.0
    %2209 = vmatpush1.msra.mxu0 0.0
    %2210 = vmatprep.subr.mxu0 0.0
    %2211 = vmatpush1.msra.mxu0 0.0
    %2212 = vmatprep.subr.mxu0 0.0
    %2213 = vmatpush1.msra.mxu0 0.0
    %2214 = vmatprep.subr.mxu0 0.0
    %2215 = vmatpush1.msra.mxu0 0.0
    %2216 = vmatprep.subr.mxu0 0.0
    %2217 = vmatpush1.msra.mxu0 0.0
    %2218 = vmatprep.subr.mxu0 0.0
    %2219 = vmatpush1.msra.mxu0 0.0
    %2220 = vmatprep.subr.mxu0 0.0
    %2221 = vmatpush1.msra.mxu0 0.0
    %2222 = vmatprep.subr.mxu0 0.0
    %2223 = vmatpush1.msra.mxu0 0.0
    %2224 = vmatprep.subr.mxu0 0.0
    %2225 = vmatpush1.msra.mxu0 0.0
    %2226 = vmatprep.subr.mxu0 0.0
    %2227 = vmatpush1.msra.mxu0 0.0
    %2228 = vmatprep.subr.mxu0 0.0
    %2229 = vmatpush1.msra.mxu0 0.0
    %2230 = vmatprep.subr.mxu0 0.0
    %2231 = vmatpush1.msra.mxu0 0.0
    %2232 = vmatprep.subr.mxu0 0.0
    %2233 = vmatpush1.msra.mxu0 0.0
    %2234 = vmatprep.subr.mxu0 0.0
    %2235 = vmatpush1.msra.mxu0 0.0
    %2236 = vmatprep.subr.mxu0 0.0
    %2237 = vmatpush1.msra.mxu0 0.0
    %2238 = vmatprep.subr.mxu0 0.0
    %2239 = vmatpush1.msra.mxu0 0.0
    %2240 = vmatprep.subr.mxu0 0.0
    %2241 = vmatpush1.msra.mxu0 0.0
    %2242 = vmatprep.mubr.f32.mxu0 0.0
    %2243 = vmatmul.mubr.f32.gmra.mrb[0].mxu0 %v2176
    %v2244 = vpop.f32.mrb[0].mxu0
    %v2245 = vadd.f32 0.0, %v2244
    %v2246 = vpop.f32.mrb[0].mxu0
    %2247 = vdwg.mxu0
    %2249 = vrot.lane.b32.xlu0 %v2175, 32
    %v2250 = vpop.permute.xlu0 %2249
    %v2251 = vsel %vm175, %v2250, 0
    %2253 = vmatprep.subr.mxu0 0.0
    %2254 = vmatpush1.msra.mxu0 %v160
    %2255 = vmatprep.subr.mxu0 0.0
    %2256 = vmatpush1.msra.mxu0 %v161
    %2257 = vmatprep.subr.mxu0 0.0
    %2258 = vmatpush1.msra.mxu0 %v162
    %2259 = vmatprep.subr.mxu0 0.0
    %2260 = vmatpush1.msra.mxu0 %v163
    %2261 = vmatprep.subr.mxu0 0.0
    %2262 = vmatpush1.msra.mxu0 0.0
    %2263 = vmatprep.subr.mxu0 0.0
    %2264 = vmatpush1.msra.mxu0 0.0
    %2265 = vmatprep.subr.mxu0 0.0
    %2266 = vmatpush1.msra.mxu0 0.0
    %2267 = vmatprep.subr.mxu0 0.0
    %2268 = vmatpush1.msra.mxu0 0.0
    %2269 = vmatprep.subr.mxu0 0.0
    %2270 = vmatpush1.msra.mxu0 0.0
    %2271 = vmatprep.subr.mxu0 0.0
    %2272 = vmatpush1.msra.mxu0 0.0
    %2273 = vmatprep.subr.mxu0 0.0
    %2274 = vmatpush1.msra.mxu0 0.0
    %2275 = vmatprep.subr.mxu0 0.0
    %2276 = vmatpush1.msra.mxu0 0.0
    %2277 = vmatprep.subr.mxu0 0.0
    %2278 = vmatpush1.msra.mxu0 0.0
    %2279 = vmatprep.subr.mxu0 0.0
    %2280 = vmatpush1.msra.mxu0 0.0
    %2281 = vmatprep.subr.mxu0 0.0
    %2282 = vmatpush1.msra.mxu0 0.0
    %2283 = vmatprep.subr.mxu0 0.0
    %2284 = vmatpush1.msra.mxu0 0.0
    %2285 = vmatprep.subr.mxu0 0.0
    %2286 = vmatpush1.msra.mxu0 0.0
    %2287 = vmatprep.subr.mxu0 0.0
    %2288 = vmatpush1.msra.mxu0 0.0
    %2289 = vmatprep.subr.mxu0 0.0
    %2290 = vmatpush1.msra.mxu0 0.0
    %2291 = vmatprep.subr.mxu0 0.0
    %2292 = vmatpush1.msra.mxu0 0.0
    %2293 = vmatprep.subr.mxu0 0.0
    %2294 = vmatpush1.msra.mxu0 0.0
    %2295 = vmatprep.subr.mxu0 0.0
    %2296 = vmatpush1.msra.mxu0 0.0
    %2297 = vmatprep.subr.mxu0 0.0
    %2298 = vmatpush1.msra.mxu0 0.0
    %2299 = vmatprep.subr.mxu0 0.0
    %2300 = vmatpush1.msra.mxu0 0.0
    %2301 = vmatprep.subr.mxu0 0.0
    %2302 = vmatpush1.msra.mxu0 0.0
    %2303 = vmatprep.subr.mxu0 0.0
    %2304 = vmatpush1.msra.mxu0 0.0
    %2305 = vmatprep.subr.mxu0 0.0
    %2306 = vmatpush1.msra.mxu0 0.0
    %2307 = vmatprep.subr.mxu0 0.0
    %2308 = vmatpush1.msra.mxu0 0.0
    %2309 = vmatprep.subr.mxu0 0.0
    %2310 = vmatpush1.msra.mxu0 0.0
    %2311 = vmatprep.subr.mxu0 0.0
    %2312 = vmatpush1.msra.mxu0 0.0
    %2313 = vmatprep.subr.mxu0 0.0
    %2314 = vmatpush1.msra.mxu0 0.0
    %2315 = vmatprep.subr.mxu0 0.0
    %2316 = vmatpush1.msra.mxu0 0.0
    %2317 = vmatprep.mubr.f32.mxu0 0.0
    %2318 = vmatmul.mubr.f32.gmra.mrb[0].mxu0 %v2251
    %v2319 = vpop.f32.mrb[0].mxu0
    %v2320 = vadd.f32 %v2245, %v2319
    %v2321 = vpop.f32.mrb[0].mxu0
    %2322 = vdwg.mxu0
    %v2323 = vadd.f32 %v2320, %v173
    %v2324 = vxor.u32 %v2323, 2147483648
    %v2325 = vmul.f32 %v2324, 1.442695
    %v2326 = vpow.pop %v2325
    %v2327 = vadd.f32 %v2326, 1.0
    %v2328 = vrcp.pop %v2327
    %v2329 = vmul.f32 1.0, %v2328
    %v2330 = vtanh.pop %v2323
    %v2331 = vmul.f32 %v2329, %v2069
    %2333 = vrot.lane.b32.xlu0 %v2330, 64
    %v2334 = vpop.permute.xlu0 %2333
    %v2336 = vmul.f32 %v2329, %v2334
    %2338 = vrot.lane.b32.xlu0 %v2336, 32
    %v2339 = vpop.permute.xlu0 %2338
    %v2341 = vadd.f32 %v2331, %v2339
    %v2342 = vtanh.pop %v2341
    %2344 = vrot.lane.b32.xlu0 %v2342, 64
    %v2345 = vpop.permute.xlu0 %2344
    %v2347 = vmul.f32 %v2329, %v2345
    %2349 = vrot.lane.b32.xlu0 %v2347, 32
    %v2350 = vpop.permute.xlu0 %2349
    %2352 = vst.msk [vmem:[#allocation2 + $0x38] sm:$0xff] %vm175, %v2350
    %v2353 = vld [vmem:[#allocation2] sm:$0xff]
    %v2354 = vld [vmem:[#allocation2 + $0x8] sm:$0xff]
    %v2355 = vld [vmem:[#allocation2 + $0x10] sm:$0xff]
    %v2356 = vld [vmem:[#allocation2 + $0x18] sm:$0xff]
    %v2357 = vld [vmem:[#allocation2 + $0x20] sm:$0xff]
    %v2358 = vld [vmem:[#allocation2 + $0x28] sm:$0xff]
    %v2359 = vld [vmem:[#allocation2 + $0x30] sm:$0xff]
    %v2360 = vld [vmem:[#allocation2 + $0x38] sm:$0xff]
    %v2361 = vld [vmem:[%s7] sm:$0xff]
    %v2362 = vld [vmem:[%s7 + $0x8] sm:$0xff]
    %v2363 = vld [vmem:[%s7 + $0x10] sm:$0xff]
    %v2364 = vld [vmem:[%s7 + $0x18] sm:$0xff]
    %v2365 = vld [vmem:[%s8] sm:$0x1]
    %v2367 = vlaneseq
    %v2368 = vshrl.u32 %v2367, 7
    %v2369 = vsub.s32 0, %v2368
    %v2370 = vrot.slane %v2365, %v2369
    %v2373 = vsel %vm175, %v2353, 0
    %v2376 = vsel %vm175, %v2354, 0
    %v2379 = vsel %vm175, %v2355, 0
    %v2382 = vsel %vm175, %v2356, 0
    %v2385 = vsel %vm175, %v2357, 0
    %v2388 = vsel %vm175, %v2358, 0
    %v2391 = vsel %vm175, %v2359, 0
    %v2394 = vsel %vm175, %v2360, 0
    %2396 = vmatprep.subr.mxu0 0.0
    %2397 = vmatpush1.msra.mxu0 %v2361
    %2398 = vmatprep.subr.mxu0 0.0
    %2399 = vmatpush1.msra.mxu0 %v2362
    %2400 = vmatprep.subr.mxu0 0.0
    %2401 = vmatpush1.msra.mxu0 %v2363
    %2402 = vmatprep.subr.mxu0 0.0
    %2403 = vmatpush1.msra.mxu0 %v2364
    %2404 = vmatprep.subr.mxu0 0.0
    %2405 = vmatpush1.msra.mxu0 0.0
    %2406 = vmatprep.subr.mxu0 0.0
    %2407 = vmatpush1.msra.mxu0 0.0
    %2408 = vmatprep.subr.mxu0 0.0
    %2409 = vmatpush1.msra.mxu0 0.0
    %2410 = vmatprep.subr.mxu0 0.0
    %2411 = vmatpush1.msra.mxu0 0.0
    %2412 = vmatprep.subr.mxu0 0.0
    %2413 = vmatpush1.msra.mxu0 0.0
    %2414 = vmatprep.subr.mxu0 0.0
    %2415 = vmatpush1.msra.mxu0 0.0
    %2416 = vmatprep.subr.mxu0 0.0
    %2417 = vmatpush1.msra.mxu0 0.0
    %2418 = vmatprep.subr.mxu0 0.0
    %2419 = vmatpush1.msra.mxu0 0.0
    %2420 = vmatprep.subr.mxu0 0.0
    %2421 = vmatpush1.msra.mxu0 0.0
    %2422 = vmatprep.subr.mxu0 0.0
    %2423 = vmatpush1.msra.mxu0 0.0
    %2424 = vmatprep.subr.mxu0 0.0
    %2425 = vmatpush1.msra.mxu0 0.0
    %2426 = vmatprep.subr.mxu0 0.0
    %2427 = vmatpush1.msra.mxu0 0.0
    %2428 = vmatprep.subr.mxu0 0.0
    %2429 = vmatpush1.msra.mxu0 0.0
    %2430 = vmatprep.subr.mxu0 0.0
    %2431 = vmatpush1.msra.mxu0 0.0
    %2432 = vmatprep.subr.mxu0 0.0
    %2433 = vmatpush1.msra.mxu0 0.0
    %2434 = vmatprep.subr.mxu0 0.0
    %2435 = vmatpush1.msra.mxu0 0.0
    %2436 = vmatprep.subr.mxu0 0.0
    %2437 = vmatpush1.msra.mxu0 0.0
    %2438 = vmatprep.subr.mxu0 0.0
    %2439 = vmatpush1.msra.mxu0 0.0
    %2440 = vmatprep.subr.mxu0 0.0
    %2441 = vmatpush1.msra.mxu0 0.0
    %2442 = vmatprep.subr.mxu0 0.0
    %2443 = vmatpush1.msra.mxu0 0.0
    %2444 = vmatprep.subr.mxu0 0.0
    %2445 = vmatpush1.msra.mxu0 0.0
    %2446 = vmatprep.subr.mxu0 0.0
    %2447 = vmatpush1.msra.mxu0 0.0
    %2448 = vmatprep.subr.mxu0 0.0
    %2449 = vmatpush1.msra.mxu0 0.0
    %2450 = vmatprep.subr.mxu0 0.0
    %2451 = vmatpush1.msra.mxu0 0.0
    %2452 = vmatprep.subr.mxu0 0.0
    %2453 = vmatpush1.msra.mxu0 0.0
    %2454 = vmatprep.subr.mxu0 0.0
    %2455 = vmatpush1.msra.mxu0 0.0
    %2456 = vmatprep.subr.mxu0 0.0
    %2457 = vmatpush1.msra.mxu0 0.0
    %2458 = vmatprep.subr.mxu0 0.0
    %2459 = vmatpush1.msra.mxu0 0.0
    %2460 = vmatprep.mubr.f32.mxu0 0.0
    %2461 = vmatmul.mubr.f32.gmra.mrb[0].mxu0 %v2373
    %v2462 = vpop.f32.mrb[0].mxu0
    %v2463 = vadd.f32 %v2370, %v2462
    %v2464 = vpop.f32.mrb[0].mxu0
    %2465 = vmatprep.mubr.f32.mxu0 0.0
    %2466 = vmatmul.mubr.f32.gmra.mrb[0].mxu0 %v2376
    %v2467 = vpop.f32.mrb[0].mxu0
    %v2468 = vadd.f32 %v2370, %v2467
    %v2469 = vpop.f32.mrb[0].mxu0
    %2470 = vmatprep.mubr.f32.mxu0 0.0
    %2471 = vmatmul.mubr.f32.gmra.mrb[0].mxu0 %v2379
    %v2472 = vpop.f32.mrb[0].mxu0
    %v2473 = vadd.f32 %v2370, %v2472
    %v2474 = vpop.f32.mrb[0].mxu0
    %2475 = vmatprep.mubr.f32.mxu0 0.0
    %2476 = vmatmul.mubr.f32.gmra.mrb[0].mxu0 %v2382
    %v2477 = vpop.f32.mrb[0].mxu0
    %v2478 = vadd.f32 %v2370, %v2477
    %v2479 = vpop.f32.mrb[0].mxu0
    %2480 = vmatprep.mubr.f32.mxu0 0.0
    %2481 = vmatmul.mubr.f32.gmra.mrb[0].mxu0 %v2385
    %v2482 = vpop.f32.mrb[0].mxu0
    %v2483 = vadd.f32 %v2370, %v2482
    %v2484 = vpop.f32.mrb[0].mxu0
    %2485 = vmatprep.mubr.f32.mxu0 0.0
    %2486 = vmatmul.mubr.f32.gmra.mrb[0].mxu0 %v2388
    %v2487 = vpop.f32.mrb[0].mxu0
    %v2488 = vadd.f32 %v2370, %v2487
    %v2489 = vpop.f32.mrb[0].mxu0
    %2490 = vmatprep.mubr.f32.mxu0 0.0
    %2491 = vmatmul.mubr.f32.gmra.mrb[0].mxu0 %v2391
    %v2492 = vpop.f32.mrb[0].mxu0
    %v2493 = vadd.f32 %v2370, %v2492
    %v2494 = vpop.f32.mrb[0].mxu0
    %2495 = vmatprep.mubr.f32.mxu0 0.0
    %2496 = vmatmul.mubr.f32.gmra.mrb[0].mxu0 %v2394
    %v2497 = vpop.f32.mrb[0].mxu0
    %v2498 = vadd.f32 %v2370, %v2497
    %v2499 = vpop.f32.mrb[0].mxu0
    %2500 = vdwg.mxu0
    %v2501 = vmax.f32 %v2463, 0.0
    %v2502 = vmax.f32 %v2468, 0.0
    %v2503 = vmax.f32 %v2473, 0.0
    %v2504 = vmax.f32 %v2478, 0.0
    %v2505 = vmax.f32 %v2483, 0.0
    %v2506 = vmax.f32 %v2488, 0.0
    %v2507 = vmax.f32 %v2493, 0.0
    %v2508 = vmax.f32 %v2498, 0.0
    %2509 = vst.msk [vmem:[#allocation9] sm:$0xff] %vm82, %v2501
    %2511 = vrot.lane.b32.xlu0 %v2502, 16
    %v2512 = vpop.permute.xlu0 %2511
    %vm2514 = vcmask 261248
    %2515 = vst.msk [vmem:[#allocation9] sm:$0xff] %vm2514, %v2512
    %2517 = vrot.lane.b32.xlu0 %v2503, 32
    %v2518 = vpop.permute.xlu0 %2517
    %vm2520 = vcmask 392448
    %2521 = vst.msk [vmem:[#allocation9] sm:$0xff] %vm2520, %v2518
    %2523 = vrot.lane.b32.xlu0 %v2504, 48
    %v2524 = vpop.permute.xlu0 %2523
    %vm2526 = vcmask 523648
    %2527 = vst.msk [vmem:[#allocation9] sm:$0xff] %vm2526, %v2524
    %2529 = vrot.lane.b32.xlu0 %v2505, 64
    %v2530 = vpop.permute.xlu0 %2529
    %vm2532 = vcmask 654848
    %2533 = vst.msk [vmem:[#allocation9] sm:$0xff] %vm2532, %v2530
    %2535 = vrot.lane.b32.xlu0 %v2506, 80
    %v2536 = vpop.permute.xlu0 %2535
    %vm2538 = vcmask 786048
    %2539 = vst.msk [vmem:[#allocation9] sm:$0xff] %vm2538, %v2536
    %2541 = vrot.lane.b32.xlu0 %v2507, 96
    %v2542 = vpop.permute.xlu0 %2541
    %vm2544 = vcmask 917248
    %2545 = vst.msk [vmem:[#allocation9] sm:$0xff] %vm2544, %v2542
    %2547 = vrot.lane.b32.xlu0 %v2508, 112
    %v2548 = vpop.permute.xlu0 %2547
    %vm2550 = vcmask 1048448
    %2551 = vst.msk [vmem:[#allocation9] sm:$0xff] %vm2550, %v2548
    // Predicated region
    $region50: #{tpu_custom_call.1} parent=1 // pred_check
      _
    $region51: #{tpu_custom_call.1} parent=1 // pred_check_branch
      %2553 = sbr.rel (0) target = $region53
    $region52: #{tpu_custom_call.1} parent=1 // pred_region
      %s2555 = ssub.s32 128, 128
      %2556 = vsyncadd [#allocation5], %s2555
      %s2558 = sshll.u32 [#allocation9], 4
      %s2559 = int_to_ptr.vmem [resolvable:$true] %s2558
      %2561 = dma.vmem_to_hbm [thread:$0]  %s2559, 128, %s9, [#allocation5]
    $region53: #{tpu_custom_call.1} parent=1 // pred_fallthru
      _
    // Predicated region
    $region54: #{tpu_custom_call.1} parent=1 // pred_check
      _
    $region55: #{tpu_custom_call.1} parent=1 // pred_check_branch
      %2563 = sbr.rel (0) target = $region57
    $region56: #{tpu_custom_call.1} parent=1 // pred_region
      %2564 = dma.done [#allocation5], 128
    $region57: #{tpu_custom_call.1} parent=1 // pred_fallthru
      _
    %2565 = vsyncpa [#allocation4], 1
    %2566 = vsyncpa [#allocation7], 1
    %2567 = vsyncpa [#allocation5], 1

</llo_original>
